<compile_context>
chip_gen: v6e
topology: v6e:2x2x1
jax: 0.10.0
libtpu: 0.0.40
codegen_flags: <defaults>
</compile_context>

<pallas_src>
import functools
import math

import jax
import jax.numpy as jnp
from jax.experimental import pallas as pl
from jax.experimental.pallas import tpu as pltpu

Q_TILE = 256        # query-row tile of the score matrix (256-wide MXU on v6e/v7x; 128 on v5e)
TARGET_ROWS = 256   # target batch-fused rows (Bb*C) per grid step


def _layer_norm(v, w, b):
    # WithBias LayerNorm over the last dim (biased variance, eps=1e-5), f32 math.
    mu = jnp.mean(v, axis=-1, keepdims=True)
    var = jnp.mean((v - mu) ** 2, axis=-1, keepdims=True)
    return (v - mu) * jax.lax.rsqrt(var + 1e-5) * w + b


def transformer_block_kernel(x_ref, wqkvT_ref, woT_ref,
                             ln1w_ref, ln1b_ref, ln2w_ref, ln2b_ref,
                             win_ref, wout_ref, temp_ref,
                             o_ref, attn_scr, *, q_tile):
    f32 = jnp.float32
    bf16 = jnp.bfloat16

    R, S = x_ref.shape                 # R = Bb*C fused rows, S = dim = H*W
    C = win_ref.shape[1]               # channels
    Bb = R // C                        # batch elements fused into this grid step
    hidden = wout_ref.shape[1]

    x = x_ref[...].astype(f32)

    # ---- norm1 (f32 VPU math; rsqrt on the EUP) ----
    y = _layer_norm(x, ln1w_ref[...], ln1b_ref[...])                       # (R, S)
    y_bf = y.astype(bf16)

    # ---- fused Q/K/V projection: one MXU pass with M = Bb*C rows ----
    qkv = jnp.dot(y_bf, wqkvT_ref[...], preferred_element_type=f32)        # (R, 3S)
    q = qkv[:, :S]                     # lane-aligned free views (S % 128 == 0)
    k = qkv[:, S:2 * S]
    v = qkv[:, 2 * S:]

    temp = temp_ref[0, 0]              # scalar temperature (num_heads == 1), from SMEM

    tq = q_tile if (q_tile < S and S % q_tile == 0) else S
    n_tiles = S // tq
    dn_scores = (((0,), (0,)), ((), ()))   # contract channel axis of q-tile vs k
    dn_outs = (((1,), (1,)), ((), ()))     # contract key axis of v vs probs

    # ---- attention, per batch element (normalize / softmax are per-batch) ----
    # Static loops: Bb and n_tiles are small; every (C, tq) tile goes straight into
    # the VMEM scratch accumulator (no concatenate copy, bounded live ranges).
    # TODO(synk): switch to lax.fori_loop + pl.ds offsets if Bb * n_tiles grows large.
    for b in range(Bb):
        r0, r1 = b * C, (b + 1) * C                                        # sublane-aligned
        q_b, k_b, v_b = q[r0:r1], k[r0:r1], v[r0:r1]                       # (C, S) f32 views
        # F.normalize(dim=-1) over channels (eps 1e-12 on the norm); fold temperature
        # into q here, before the bf16 cast, so the (tq, S) score tile needs no scaling.
        q_scale = temp * jax.lax.rsqrt(
            jnp.maximum(jnp.sum(q_b * q_b, axis=0, keepdims=True), 1e-24))
        k_scale = jax.lax.rsqrt(
            jnp.maximum(jnp.sum(k_b * k_b, axis=0, keepdims=True), 1e-24))
        qn_b = (q_b * q_scale).astype(bf16)
        kn_b = (k_b * k_scale).astype(bf16)
        v_bf = v_b.astype(bf16)
        for t in range(n_tiles):
            c0 = t * tq
            s = jax.lax.dot_general(qn_b[:, c0:c0 + tq], kn_b, dn_scores,
                                    preferred_element_type=f32)            # (tq, S)
            m = jnp.max(s, axis=-1, keepdims=True)                         # softmax in f32
            e = jnp.exp(s - m)
            p = e * pl.reciprocal(jnp.sum(e, axis=-1, keepdims=True), approx=True)
            out_t = jax.lax.dot_general(v_bf, p.astype(bf16), dn_outs,
                                        preferred_element_type=f32)        # (C, tq)
            attn_scr[r0:r1, c0:c0 + tq] = out_t                            # aligned store

    # ---- project_out: one batch-fused MXU pass with M = Bb*C ----
    out = jnp.dot(attn_scr[...].astype(bf16), woT_ref[...],
                  preferred_element_type=f32)                              # (R, S)

    # residual on the *normalized* x (the PyTorch forward reassigns x = norm1(x))
    x2 = y + out

    # ---- norm2 + FFN (gated-GELU pointwise projections over channels) ----
    y2 = _layer_norm(x2, ln2w_ref[...], ln2b_ref[...])
    win = win_ref[...]
    wout = wout_ref[...]
    for b in range(Bb):                # FFN contracts over C, which is per-batch
        r0, r1 = b * C, (b + 1) * C
        z = jnp.dot(win, y2[r0:r1].astype(bf16), preferred_element_type=f32)   # (2H, S)
        # tanh-GELU keeps the nonlinearity on the EUP (differs from exact erf by <~1e-3)
        g = jax.nn.gelu(z[:hidden], approximate=True) * z[hidden:]             # (H, S)
        ffn_b = jnp.dot(wout, g.astype(bf16), preferred_element_type=f32)      # (C, S)
        o_ref[r0:r1, :] = (x2[r0:r1] + ffn_b).astype(o_ref.dtype)


def _pick_batch_block(B, C, target_rows=TARGET_ROWS):
    """Pick Bb (batch elems fused per grid step) so Bb*C rows feed the MXU."""
    bb = max(1, min(B, max(1, target_rows // max(C, 1))))
    while bb > 1 and B % bb != 0:
        bb -= 1
    # Keep at least two grid steps when possible so v7x's two TensorCores both get work.
    if B // bb == 1 and bb % 2 == 0:
        bb //= 2
    # Block's second-minor dim (Bb*C) must be a multiple of 8 unless it spans the array.
    if (bb * C) % 8 != 0 and bb != B:
        bb = B
    return bb


def _vmem_cap_bytes():
    # Generation-aware ceiling: ~7/8 of physical VMEM, capped at 100 MiB
    # (=> ~56 MiB on v7x's 64 MiB/TC, up to 100 MiB on v5e/v6e's 128 MiB).
    try:
        phys = int(getattr(pltpu.get_tpu_info(), "vmem_capacity_bytes", 64 * 1024 * 1024))
    except Exception:
        phys = 64 * 1024 * 1024
    return min((phys * 7) // 8, 100 * 1024 * 1024)


def prepare_params(params):
    """One-time weight prep (transpose / cast / QKV fusion) — hoisted off the hot path."""
    bf16 = jnp.bfloat16
    f32 = jnp.float32
    S = params["wq"].shape[0]
    wqkvT = jnp.concatenate(
        [params["wq"].T, params["wk"].T, params["wv"].T], axis=1).astype(bf16)  # (S, 3S)
    return {
        "wqkvT": wqkvT,
        "woT": params["wo"].T.astype(bf16),
        "ln1w": params["ln1_w"].reshape(1, S).astype(f32),
        "ln1b": params["ln1_b"].reshape(1, S).astype(f32),
        "ln2w": params["ln2_w"].reshape(1, S).astype(f32),
        "ln2b": params["ln2_b"].reshape(1, S).astype(f32),
        "win": params["ffn_in"].astype(bf16),
        "wout": params["ffn_out"].astype(bf16),
        # TODO(synk): temperature broadcasting assumes num_heads == 1 (as the module uses it).
        "temp": params["temperature"].reshape(-1)[:1].reshape(1, 1).astype(f32),
    }


def transformer_block(x, prepped, *, q_tile=Q_TILE):
    """x: (B, C, H, W) -> (B, C, H, W). `prepped` comes from prepare_params()."""
    B, C, Hh, Ww = x.shape
    S = Hh * Ww
    hidden = prepped["wout"].shape[1]
    assert prepped["wqkvT"].shape == (S, 3 * S)

    bb = _pick_batch_block(B, C)
    n_steps = B // bb
    R = bb * C                               # fused rows per grid step (matmul M dim)
    tq = q_tile if (q_tile < S and S % q_tile == 0) else S

    x2d = x.reshape(B * C, S)
    const = lambda i: (0, 0)

    # VMEM budget: bf16 weights (pipeline double-buffers them), f32 activations,
    # one (tq, S) score tile, f32 attention scratch; 2x headroom, generation-aware cap,
    # no artificial 32 MiB floor.
    w_bytes = (4 * S * S + 3 * hidden * C) * 2 + 4 * S * 4
    io_bytes = 2 * (R * S * 4) * 2
    act_bytes = 10 * R * S * 4 + 2 * tq * S * 4 + 3 * hidden * S * 4
    vmem_limit = int(min(max(2 * (2 * w_bytes + io_bytes + act_bytes),
                             4 * 1024 * 1024), _vmem_cap_bytes()))

    cost = pl.CostEstimate(
        flops=int(B * C * S * (12 * S + 6 * hidden)),
        transcendentals=int(B * S * S + B * hidden * S),
        bytes_accessed=int(2 * B * C * S * 4 + w_bytes))

    out2d = pl.pallas_call(
        functools.partial(transformer_block_kernel, q_tile=q_tile),
        out_shape=jax.ShapeDtypeStruct((B * C, S), x.dtype),
        grid_spec=pltpu.PrefetchScalarGridSpec(
            num_scalar_prefetch=0,
            grid=(n_steps,),
            in_specs=[
                pl.BlockSpec((R, S), lambda i: (i, 0)),             # x rows (Bb*C, S)
                pl.BlockSpec((S, 3 * S), const),                    # [Wq|Wk|Wv]^T fused, bf16
                pl.BlockSpec((S, S), const),                        # Wo^T, bf16
                pl.BlockSpec((1, S), const),                        # ln1 weight
                pl.BlockSpec((1, S), const),                        # ln1 bias
                pl.BlockSpec((1, S), const),                        # ln2 weight
                pl.BlockSpec((1, S), const),                        # ln2 bias
                pl.BlockSpec((2 * hidden, C), const),               # ffn project_in, bf16
                pl.BlockSpec((C, hidden), const),                   # ffn project_out, bf16
                pl.BlockSpec(memory_space=pltpu.MemorySpace.SMEM),  # temperature scalar
            ],
            out_specs=pl.BlockSpec((R, S), lambda i: (i, 0)),
            scratch_shapes=[pltpu.VMEM((R, S), jnp.float32)],       # attention accumulator
        ),
        compiler_params=pltpu.CompilerParams(
            dimension_semantics=("parallel",),       # independent batch blocks -> megacore
            vmem_limit_bytes=vmem_limit),
        cost_estimate=cost,
    )(x2d, prepped["wqkvT"], prepped["woT"],
      prepped["ln1w"], prepped["ln1b"], prepped["ln2w"], prepped["ln2b"],
      prepped["win"], prepped["wout"], prepped["temp"])

    return out2d.reshape(B, C, Hh, Ww)


def make_params(key, dim, channels, ffn_expansion_factor, num_heads=1):
    hidden = int(channels * ffn_expansion_factor)
    ks = jax.random.split(key, 6)
    lin = lambda k, o, i: (jax.random.normal(k, (o, i), jnp.float32) / math.sqrt(i))
    return {
        "wq": lin(ks[0], dim, dim),
        "wk": lin(ks[1], dim, dim),
        "wv": lin(ks[2], dim, dim),
        "wo": lin(ks[3], dim, dim),
        "ln1_w": jnp.ones((dim,), jnp.float32),
        "ln1_b": jnp.zeros((dim,), jnp.float32),
        "ln2_w": jnp.ones((dim,), jnp.float32),
        "ln2_b": jnp.zeros((dim,), jnp.float32),
        "temperature": jnp.ones((num_heads, 1, 1), jnp.float32),
        "ffn_in": lin(ks[4], 2 * hidden, channels),
        "ffn_out": lin(ks[5], channels, hidden),
    }


def reference(x, params):
    """Pure-JAX f32 reference of the same forward pass (for self-check)."""
    B, C, Hh, Ww = x.shape
    S = Hh * Ww
    x3 = x.reshape(B, C, S).astype(jnp.float32)

    def ln(v, w, b):
        mu = jnp.mean(v, -1, keepdims=True)
        var = jnp.mean((v - mu) ** 2, -1, keepdims=True)
        return (v - mu) / jnp.sqrt(var + 1e-5) * w + b

    y = ln(x3, params["ln1_w"], params["ln1_b"])
    q = jnp.einsum("bcs,ts->bct", y, params["wq"]).transpose(0, 2, 1)
    k = jnp.einsum("bcs,ts->bct", y, params["wk"]).transpose(0, 2, 1)
    v = jnp.einsum("bcs,ts->bct", y, params["wv"]).transpose(0, 2, 1)
    nrm = lambda a: a / jnp.maximum(jnp.sqrt(jnp.sum(a * a, -1, keepdims=True)), 1e-12)
    q, k = nrm(q), nrm(k)
    attn = jnp.einsum("bqc,bkc->bqk", q, k) * params["temperature"][0, 0, 0]
    attn = jax.nn.softmax(attn, -1)
    out = jnp.einsum("bqk,bkc->bqc", attn, v).transpose(0, 2, 1)
    out = jnp.einsum("bcs,ts->bct", out, params["wo"])
    x2 = y + out
    y2 = ln(x2, params["ln2_w"], params["ln2_b"])
    z = jnp.einsum("hc,bcs->bhs", params["ffn_in"], y2)
    hdim = params["ffn_in"].shape[0] // 2
    g = jax.nn.gelu(z[:, :hdim], approximate=False) * z[:, hdim:]
    ffn = jnp.einsum("ch,bhs->bcs", params["ffn_out"], g)
    return (x2 + ffn).reshape(B, C, Hh, Ww)


if __name__ == "__main__":
    # dim = H*W = 256 (lane-dense), channels = 8 (sublane-aligned), batch 4 so the
    # batch-fusion path is exercised (Bb=2 -> 16 MXU rows per step, 2 grid steps).
    B, C, Hh, Ww = 4, 8, 16, 16
    dim = Hh * Ww
    ffn_expansion_factor = 2

    key = jax.random.PRNGKey(0)
    kx, kp = jax.random.split(key)
    x = jax.random.normal(kx, (B, C, Hh, Ww), jnp.float32)
    params = make_params(kp, dim, C, ffn_expansion_factor, num_heads=1)
    prepped = prepare_params(params)

    out = jax.block_until_ready(transformer_block(x, prepped))
    ref = reference(x, params)

    assert out.shape == (B, C, Hh, Ww)
    # bf16 MXU operands + approx reciprocal / tanh-GELU vs f32 reference -> loosened tol.
    max_abs = float(jnp.max(jnp.abs(out - ref)))
    rel_l2 = float(jnp.linalg.norm(out - ref) / jnp.linalg.norm(ref))
    assert max_abs < 1e-1 and rel_l2 < 2e-2, ("mismatch vs reference", max_abs, rel_l2)

    print("KERNEL_OK")
</pallas_src>

<mosaic_0001>
module attributes {stable_mosaic.version = 11 : i64} {
  func.func @transformer_block_kernel(%arg0: i32, %arg1: memref<16x256xf32, #tpu.memory_space<vmem>>, %arg2: memref<256x768xbf16, #tpu.memory_space<vmem>>, %arg3: memref<256x256xbf16, #tpu.memory_space<vmem>>, %arg4: memref<1x256xf32, #tpu.memory_space<vmem>>, %arg5: memref<1x256xf32, #tpu.memory_space<vmem>>, %arg6: memref<1x256xf32, #tpu.memory_space<vmem>>, %arg7: memref<1x256xf32, #tpu.memory_space<vmem>>, %arg8: memref<32x8xbf16, #tpu.memory_space<vmem>>, %arg9: memref<8x16xbf16, #tpu.memory_space<vmem>>, %arg10: memref<1x1xf32, #tpu.memory_space<smem>>, %arg11: memref<16x256xf32, #tpu.memory_space<vmem>>, %arg12: memref<16x256xf32, #tpu.memory_space<vmem>>) attributes {dimension_semantics = [#tpu.dimension_semantics<parallel>], iteration_bounds = array<i64: 2>, scalar_prefetch = 0 : i64, scratch_operands = 1 : i64, tpu.core_type = #tpu.core_type<tc>, window_params = [{transform_indices = @transform_0, window_bounds = array<i64: 16, 256>}, {pipeline_mode = #tpu.pipeline_mode<synchronous>, transform_indices = @transform_1, window_bounds = array<i64: 256, 768>}, {pipeline_mode = #tpu.pipeline_mode<synchronous>, transform_indices = @transform_2, window_bounds = array<i64: 256, 256>}, {pipeline_mode = #tpu.pipeline_mode<synchronous>, transform_indices = @transform_3, window_bounds = array<i64: 1, 256>}, {pipeline_mode = #tpu.pipeline_mode<synchronous>, transform_indices = @transform_4, window_bounds = array<i64: 1, 256>}, {pipeline_mode = #tpu.pipeline_mode<synchronous>, transform_indices = @transform_5, window_bounds = array<i64: 1, 256>}, {pipeline_mode = #tpu.pipeline_mode<synchronous>, transform_indices = @transform_6, window_bounds = array<i64: 1, 256>}, {pipeline_mode = #tpu.pipeline_mode<synchronous>, transform_indices = @transform_7, window_bounds = array<i64: 32, 8>}, {pipeline_mode = #tpu.pipeline_mode<synchronous>, transform_indices = @transform_8, window_bounds = array<i64: 8, 16>}, {transform_indices = @transform_9, window_bounds = array<i64: 1, 1>}, {transform_indices = @transform_10, window_bounds = array<i64: 16, 256>}]} {
    %c0 = arith.constant 0 : index
    %c0_0 = arith.constant 0 : index
    %0 = vector.load %arg1[%c0, %c0_0] : memref<16x256xf32, #tpu.memory_space<vmem>>, vector<16x256xf32>
    %c0_1 = arith.constant 0 : index
    %c0_2 = arith.constant 0 : index
    %1 = vector.load %arg4[%c0_1, %c0_2] : memref<1x256xf32, #tpu.memory_space<vmem>>, vector<1x256xf32>
    %c0_3 = arith.constant 0 : index
    %c0_4 = arith.constant 0 : index
    %2 = vector.load %arg5[%c0_3, %c0_4] : memref<1x256xf32, #tpu.memory_space<vmem>>, vector<1x256xf32>
    %cst = arith.constant dense<0.000000e+00> : vector<16xf32>
    %3 = vector.multi_reduction <add>, %0, %cst [1] : vector<16x256xf32> to vector<16xf32>
    %4 = vector.shape_cast %3 : vector<16xf32> to vector<16x1xf32>
    %cst_5 = arith.constant 2.560000e+02 : f32
    %5 = vector.broadcast %cst_5 : f32 to vector<16x1xf32>
    %6 = arith.divf %4, %5 : vector<16x1xf32>
    %7 = vector.broadcast %6 : vector<16x1xf32> to vector<16x256xf32>
    %8 = arith.subf %0, %7 : vector<16x256xf32>
    %9 = arith.mulf %8, %8 : vector<16x256xf32>
    %cst_6 = arith.constant dense<0.000000e+00> : vector<16xf32>
    %10 = vector.multi_reduction <add>, %9, %cst_6 [1] : vector<16x256xf32> to vector<16xf32>
    %11 = vector.shape_cast %10 : vector<16xf32> to vector<16x1xf32>
    %cst_7 = arith.constant 2.560000e+02 : f32
    %12 = vector.broadcast %cst_7 : f32 to vector<16x1xf32>
    %13 = arith.divf %11, %12 : vector<16x1xf32>
    %14 = vector.broadcast %6 : vector<16x1xf32> to vector<16x256xf32>
    %15 = arith.subf %0, %14 : vector<16x256xf32>
    %cst_8 = arith.constant 9.99999974E-6 : f32
    %16 = vector.broadcast %cst_8 : f32 to vector<16x1xf32>
    %17 = arith.addf %13, %16 : vector<16x1xf32>
    %18 = math.rsqrt %17 : vector<16x1xf32>
    %19 = vector.broadcast %18 : vector<16x1xf32> to vector<16x256xf32>
    %20 = arith.mulf %15, %19 : vector<16x256xf32>
    %21 = vector.broadcast %1 : vector<1x256xf32> to vector<16x256xf32>
    %22 = arith.mulf %20, %21 : vector<16x256xf32>
    %23 = vector.broadcast %2 : vector<1x256xf32> to vector<16x256xf32>
    %24 = arith.addf %22, %23 : vector<16x256xf32>
    %25 = arith.truncf %24 : vector<16x256xf32> to vector<16x256xbf16>
    %c0_9 = arith.constant 0 : index
    %c0_10 = arith.constant 0 : index
    %26 = vector.load %arg2[%c0_9, %c0_10] : memref<256x768xbf16, #tpu.memory_space<vmem>>, vector<256x768xbf16>
    %cst_11 = arith.constant dense<0.000000e+00> : vector<16x768xf32>
    %27 = tpu.matmul %25, %26, %cst_11 {dimension_numbers = #tpu.dot_dimension_numbers<[1], [0], [0], [1], [0, 0, 1, 1], [], []>} : vector<16x256xbf16>, vector<256x768xbf16>, vector<16x768xf32> -> vector<16x768xf32>
    %28 = vector.extract_strided_slice %27 {offsets = [0, 0], sizes = [16, 256], strides = [1, 1]} : vector<16x768xf32> to vector<16x256xf32>
    %29 = vector.extract_strided_slice %27 {offsets = [0, 256], sizes = [16, 256], strides = [1, 1]} : vector<16x768xf32> to vector<16x256xf32>
    %30 = vector.extract_strided_slice %27 {offsets = [0, 512], sizes = [16, 256], strides = [1, 1]} : vector<16x768xf32> to vector<16x256xf32>
    %c0_12 = arith.constant 0 : index
    %c0_13 = arith.constant 0 : index
    %31 = memref.load %arg10[%c0_12, %c0_13] : memref<1x1xf32, #tpu.memory_space<smem>>
    %32 = vector.extract_strided_slice %28 {offsets = [0, 0], sizes = [8, 256], strides = [1, 1]} : vector<16x256xf32> to vector<8x256xf32>
    %33 = vector.extract_strided_slice %29 {offsets = [0, 0], sizes = [8, 256], strides = [1, 1]} : vector<16x256xf32> to vector<8x256xf32>
    %34 = vector.extract_strided_slice %30 {offsets = [0, 0], sizes = [8, 256], strides = [1, 1]} : vector<16x256xf32> to vector<8x256xf32>
    %35 = arith.mulf %32, %32 : vector<8x256xf32>
    %cst_14 = arith.constant dense<0.000000e+00> : vector<256xf32>
    %36 = vector.multi_reduction <add>, %35, %cst_14 [0] : vector<8x256xf32> to vector<256xf32>
    %37 = vector.shape_cast %36 : vector<256xf32> to vector<1x256xf32>
    %cst_15 = arith.constant 1.000000e-24 : f32
    %38 = vector.broadcast %cst_15 : f32 to vector<1x256xf32>
    %39 = arith.maximumf %37, %38 : vector<1x256xf32>
    %40 = math.rsqrt %39 : vector<1x256xf32>
    %41 = vector.broadcast %31 : f32 to vector<1x256xf32>
    %42 = arith.mulf %41, %40 : vector<1x256xf32>
    %43 = arith.mulf %33, %33 : vector<8x256xf32>
    %cst_16 = arith.constant dense<0.000000e+00> : vector<256xf32>
    %44 = vector.multi_reduction <add>, %43, %cst_16 [0] : vector<8x256xf32> to vector<256xf32>
    %45 = vector.shape_cast %44 : vector<256xf32> to vector<1x256xf32>
    %cst_17 = arith.constant 1.000000e-24 : f32
    %46 = vector.broadcast %cst_17 : f32 to vector<1x256xf32>
    %47 = arith.maximumf %45, %46 : vector<1x256xf32>
    %48 = math.rsqrt %47 : vector<1x256xf32>
    %49 = vector.broadcast %42 : vector<1x256xf32> to vector<8x256xf32>
    %50 = arith.mulf %32, %49 : vector<8x256xf32>
    %51 = arith.truncf %50 : vector<8x256xf32> to vector<8x256xbf16>
    %52 = vector.broadcast %48 : vector<1x256xf32> to vector<8x256xf32>
    %53 = arith.mulf %33, %52 : vector<8x256xf32>
    %54 = arith.truncf %53 : vector<8x256xf32> to vector<8x256xbf16>
    %55 = arith.truncf %34 : vector<8x256xf32> to vector<8x256xbf16>
    %cst_18 = arith.constant dense<0.000000e+00> : vector<256x256xf32>
    %56 = tpu.matmul %51, %54, %cst_18 {dimension_numbers = #tpu.dot_dimension_numbers<[0], [0], [1], [1], [0, 1, 1, 1], [], []>} : vector<8x256xbf16>, vector<8x256xbf16>, vector<256x256xf32> -> vector<256x256xf32>
    %cst_19 = arith.constant dense<0xFF800000> : vector<256xf32>
    %57 = vector.multi_reduction <maximumf>, %56, %cst_19 [1] : vector<256x256xf32> to vector<256xf32>
    %58 = vector.shape_cast %57 : vector<256xf32> to vector<256x1xf32>
    %59 = vector.broadcast %58 : vector<256x1xf32> to vector<256x256xf32>
    %60 = arith.subf %56, %59 : vector<256x256xf32>
    %61 = math.exp %60 : vector<256x256xf32>
    %cst_20 = arith.constant dense<0.000000e+00> : vector<256xf32>
    %62 = vector.multi_reduction <add>, %61, %cst_20 [1] : vector<256x256xf32> to vector<256xf32>
    %63 = vector.shape_cast %62 : vector<256xf32> to vector<256x1xf32>
    %64 = tpu.reciprocal %63 {approx = true} : vector<256x1xf32> -> vector<256x1xf32>
    %65 = vector.broadcast %64 : vector<256x1xf32> to vector<256x256xf32>
    %66 = arith.mulf %61, %65 : vector<256x256xf32>
    %67 = arith.truncf %66 : vector<256x256xf32> to vector<256x256xbf16>
    %cst_21 = arith.constant dense<0.000000e+00> : vector<8x256xf32>
    %68 = tpu.matmul %55, %67, %cst_21 {dimension_numbers = #tpu.dot_dimension_numbers<[1], [1], [0], [0], [0, 0, 1, 0], [], []>} : vector<8x256xbf16>, vector<256x256xbf16>, vector<8x256xf32> -> vector<8x256xf32>
    %c0_22 = arith.constant 0 : index
    %c0_23 = arith.constant 0 : index
    %69 = vector.load %arg12[%c0_22, %c0_23] : memref<16x256xf32, #tpu.memory_space<vmem>>, vector<8x256xf32>
    tpu.vector_store %arg12[%c0_22, %c0_23], %68 {strides = array<i32>} : memref<16x256xf32, #tpu.memory_space<vmem>>, vector<8x256xf32>,
    %70 = vector.extract_strided_slice %28 {offsets = [8, 0], sizes = [8, 256], strides = [1, 1]} : vector<16x256xf32> to vector<8x256xf32>
    %71 = vector.extract_strided_slice %29 {offsets = [8, 0], sizes = [8, 256], strides = [1, 1]} : vector<16x256xf32> to vector<8x256xf32>
    %72 = vector.extract_strided_slice %30 {offsets = [8, 0], sizes = [8, 256], strides = [1, 1]} : vector<16x256xf32> to vector<8x256xf32>
    %73 = arith.mulf %70, %70 : vector<8x256xf32>
    %cst_24 = arith.constant dense<0.000000e+00> : vector<256xf32>
    %74 = vector.multi_reduction <add>, %73, %cst_24 [0] : vector<8x256xf32> to vector<256xf32>
    %75 = vector.shape_cast %74 : vector<256xf32> to vector<1x256xf32>
    %cst_25 = arith.constant 1.000000e-24 : f32
    %76 = vector.broadcast %cst_25 : f32 to vector<1x256xf32>
    %77 = arith.maximumf %75, %76 : vector<1x256xf32>
    %78 = math.rsqrt %77 : vector<1x256xf32>
    %79 = vector.broadcast %31 : f32 to vector<1x256xf32>
    %80 = arith.mulf %79, %78 : vector<1x256xf32>
    %81 = arith.mulf %71, %71 : vector<8x256xf32>
    %cst_26 = arith.constant dense<0.000000e+00> : vector<256xf32>
    %82 = vector.multi_reduction <add>, %81, %cst_26 [0] : vector<8x256xf32> to vector<256xf32>
    %83 = vector.shape_cast %82 : vector<256xf32> to vector<1x256xf32>
    %cst_27 = arith.constant 1.000000e-24 : f32
    %84 = vector.broadcast %cst_27 : f32 to vector<1x256xf32>
    %85 = arith.maximumf %83, %84 : vector<1x256xf32>
    %86 = math.rsqrt %85 : vector<1x256xf32>
    %87 = vector.broadcast %80 : vector<1x256xf32> to vector<8x256xf32>
    %88 = arith.mulf %70, %87 : vector<8x256xf32>
    %89 = arith.truncf %88 : vector<8x256xf32> to vector<8x256xbf16>
    %90 = vector.broadcast %86 : vector<1x256xf32> to vector<8x256xf32>
    %91 = arith.mulf %71, %90 : vector<8x256xf32>
    %92 = arith.truncf %91 : vector<8x256xf32> to vector<8x256xbf16>
    %93 = arith.truncf %72 : vector<8x256xf32> to vector<8x256xbf16>
    %cst_28 = arith.constant dense<0.000000e+00> : vector<256x256xf32>
    %94 = tpu.matmul %89, %92, %cst_28 {dimension_numbers = #tpu.dot_dimension_numbers<[0], [0], [1], [1], [0, 1, 1, 1], [], []>} : vector<8x256xbf16>, vector<8x256xbf16>, vector<256x256xf32> -> vector<256x256xf32>
    %cst_29 = arith.constant dense<0xFF800000> : vector<256xf32>
    %95 = vector.multi_reduction <maximumf>, %94, %cst_29 [1] : vector<256x256xf32> to vector<256xf32>
    %96 = vector.shape_cast %95 : vector<256xf32> to vector<256x1xf32>
    %97 = vector.broadcast %96 : vector<256x1xf32> to vector<256x256xf32>
    %98 = arith.subf %94, %97 : vector<256x256xf32>
    %99 = math.exp %98 : vector<256x256xf32>
    %cst_30 = arith.constant dense<0.000000e+00> : vector<256xf32>
    %100 = vector.multi_reduction <add>, %99, %cst_30 [1] : vector<256x256xf32> to vector<256xf32>
    %101 = vector.shape_cast %100 : vector<256xf32> to vector<256x1xf32>
    %102 = tpu.reciprocal %101 {approx = true} : vector<256x1xf32> -> vector<256x1xf32>
    %103 = vector.broadcast %102 : vector<256x1xf32> to vector<256x256xf32>
    %104 = arith.mulf %99, %103 : vector<256x256xf32>
    %105 = arith.truncf %104 : vector<256x256xf32> to vector<256x256xbf16>
    %cst_31 = arith.constant dense<0.000000e+00> : vector<8x256xf32>
    %106 = tpu.matmul %93, %105, %cst_31 {dimension_numbers = #tpu.dot_dimension_numbers<[1], [1], [0], [0], [0, 0, 1, 0], [], []>} : vector<8x256xbf16>, vector<256x256xbf16>, vector<8x256xf32> -> vector<8x256xf32>
    %c8 = arith.constant 8 : index
    %c0_32 = arith.constant 0 : index
    %107 = vector.load %arg12[%c8, %c0_32] : memref<16x256xf32, #tpu.memory_space<vmem>>, vector<8x256xf32>
    tpu.vector_store %arg12[%c8, %c0_32], %106 {strides = array<i32>} : memref<16x256xf32, #tpu.memory_space<vmem>>, vector<8x256xf32>,
    %c0_33 = arith.constant 0 : index
    %c0_34 = arith.constant 0 : index
    %108 = vector.load %arg12[%c0_33, %c0_34] : memref<16x256xf32, #tpu.memory_space<vmem>>, vector<16x256xf32>
    %109 = arith.truncf %108 : vector<16x256xf32> to vector<16x256xbf16>
    %c0_35 = arith.constant 0 : index
    %c0_36 = arith.constant 0 : index
    %110 = vector.load %arg3[%c0_35, %c0_36] : memref<256x256xbf16, #tpu.memory_space<vmem>>, vector<256x256xbf16>
    %cst_37 = arith.constant dense<0.000000e+00> : vector<16x256xf32>
    %111 = tpu.matmul %109, %110, %cst_37 {dimension_numbers = #tpu.dot_dimension_numbers<[1], [0], [0], [1], [0, 0, 1, 1], [], []>} : vector<16x256xbf16>, vector<256x256xbf16>, vector<16x256xf32> -> vector<16x256xf32>
    %112 = arith.addf %24, %111 : vector<16x256xf32>
    %c0_38 = arith.constant 0 : index
    %c0_39 = arith.constant 0 : index
    %113 = vector.load %arg6[%c0_38, %c0_39] : memref<1x256xf32, #tpu.memory_space<vmem>>, vector<1x256xf32>
    %c0_40 = arith.constant 0 : index
    %c0_41 = arith.constant 0 : index
    %114 = vector.load %arg7[%c0_40, %c0_41] : memref<1x256xf32, #tpu.memory_space<vmem>>, vector<1x256xf32>
    %cst_42 = arith.constant dense<0.000000e+00> : vector<16xf32>
    %115 = vector.multi_reduction <add>, %112, %cst_42 [1] : vector<16x256xf32> to vector<16xf32>
    %116 = vector.shape_cast %115 : vector<16xf32> to vector<16x1xf32>
    %cst_43 = arith.constant 2.560000e+02 : f32
    %117 = vector.broadcast %cst_43 : f32 to vector<16x1xf32>
    %118 = arith.divf %116, %117 : vector<16x1xf32>
    %119 = vector.broadcast %118 : vector<16x1xf32> to vector<16x256xf32>
    %120 = arith.subf %112, %119 : vector<16x256xf32>
    %121 = arith.mulf %120, %120 : vector<16x256xf32>
    %cst_44 = arith.constant dense<0.000000e+00> : vector<16xf32>
    %122 = vector.multi_reduction <add>, %121, %cst_44 [1] : vector<16x256xf32> to vector<16xf32>
    %123 = vector.shape_cast %122 : vector<16xf32> to vector<16x1xf32>
    %cst_45 = arith.constant 2.560000e+02 : f32
    %124 = vector.broadcast %cst_45 : f32 to vector<16x1xf32>
    %125 = arith.divf %123, %124 : vector<16x1xf32>
    %126 = vector.broadcast %118 : vector<16x1xf32> to vector<16x256xf32>
    %127 = arith.subf %112, %126 : vector<16x256xf32>
    %cst_46 = arith.constant 9.99999974E-6 : f32
    %128 = vector.broadcast %cst_46 : f32 to vector<16x1xf32>
    %129 = arith.addf %125, %128 : vector<16x1xf32>
    %130 = math.rsqrt %129 : vector<16x1xf32>
    %131 = vector.broadcast %130 : vector<16x1xf32> to vector<16x256xf32>
    %132 = arith.mulf %127, %131 : vector<16x256xf32>
    %133 = vector.broadcast %113 : vector<1x256xf32> to vector<16x256xf32>
    %134 = arith.mulf %132, %133 : vector<16x256xf32>
    %135 = vector.broadcast %114 : vector<1x256xf32> to vector<16x256xf32>
    %136 = arith.addf %134, %135 : vector<16x256xf32>
    %c0_47 = arith.constant 0 : index
    %c0_48 = arith.constant 0 : index
    %137 = vector.load %arg8[%c0_47, %c0_48] : memref<32x8xbf16, #tpu.memory_space<vmem>>, vector<32x8xbf16>
    %c0_49 = arith.constant 0 : index
    %c0_50 = arith.constant 0 : index
    %138 = vector.load %arg9[%c0_49, %c0_50] : memref<8x16xbf16, #tpu.memory_space<vmem>>, vector<8x16xbf16>
    %139 = vector.extract_strided_slice %136 {offsets = [0, 0], sizes = [8, 256], strides = [1, 1]} : vector<16x256xf32> to vector<8x256xf32>
    %140 = arith.truncf %139 : vector<8x256xf32> to vector<8x256xbf16>
    %cst_51 = arith.constant dense<0.000000e+00> : vector<32x256xf32>
    %141 = tpu.matmul %137, %140, %cst_51 {dimension_numbers = #tpu.dot_dimension_numbers<[1], [0], [0], [1], [0, 0, 1, 1], [], []>} : vector<32x8xbf16>, vector<8x256xbf16>, vector<32x256xf32> -> vector<32x256xf32>
    %142 = vector.extract_strided_slice %141 {offsets = [0, 0], sizes = [16, 256], strides = [1, 1]} : vector<32x256xf32> to vector<16x256xf32>
    %143 = arith.mulf %142, %142 : vector<16x256xf32>
    %144 = arith.mulf %142, %143 : vector<16x256xf32>
    %cst_52 = arith.constant 4.471500e-02 : f32
    %145 = vector.broadcast %cst_52 : f32 to vector<16x256xf32>
    %146 = arith.mulf %145, %144 : vector<16x256xf32>
    %147 = arith.addf %142, %146 : vector<16x256xf32>
    %cst_53 = arith.constant 0.797884583 : f32
    %148 = vector.broadcast %cst_53 : f32 to vector<16x256xf32>
    %149 = arith.mulf %148, %147 : vector<16x256xf32>
    %150 = math.tanh %149 : vector<16x256xf32>
    %cst_54 = arith.constant 1.000000e+00 : f32
    %151 = vector.broadcast %cst_54 : f32 to vector<16x256xf32>
    %152 = arith.addf %151, %150 : vector<16x256xf32>
    %cst_55 = arith.constant 5.000000e-01 : f32
    %153 = vector.broadcast %cst_55 : f32 to vector<16x256xf32>
    %154 = arith.mulf %153, %152 : vector<16x256xf32>
    %155 = arith.mulf %142, %154 : vector<16x256xf32>
    %156 = vector.extract_strided_slice %141 {offsets = [16, 0], sizes = [16, 256], strides = [1, 1]} : vector<32x256xf32> to vector<16x256xf32>
    %157 = arith.mulf %155, %156 : vector<16x256xf32>
    %158 = arith.truncf %157 : vector<16x256xf32> to vector<16x256xbf16>
    %cst_56 = arith.constant dense<0.000000e+00> : vector<8x256xf32>
    %159 = tpu.matmul %138, %158, %cst_56 {dimension_numbers = #tpu.dot_dimension_numbers<[1], [0], [0], [1], [0, 0, 1, 1], [], []>} : vector<8x16xbf16>, vector<16x256xbf16>, vector<8x256xf32> -> vector<8x256xf32>
    %160 = vector.extract_strided_slice %112 {offsets = [0, 0], sizes = [8, 256], strides = [1, 1]} : vector<16x256xf32> to vector<8x256xf32>
    %161 = arith.addf %160, %159 : vector<8x256xf32>
    %c0_57 = arith.constant 0 : index
    %c0_58 = arith.constant 0 : index
    %162 = vector.load %arg11[%c0_57, %c0_58] : memref<16x256xf32, #tpu.memory_space<vmem>>, vector<8x256xf32>
    tpu.vector_store %arg11[%c0_57, %c0_58], %161 {strides = array<i32>} : memref<16x256xf32, #tpu.memory_space<vmem>>, vector<8x256xf32>,
    %163 = vector.extract_strided_slice %136 {offsets = [8, 0], sizes = [8, 256], strides = [1, 1]} : vector<16x256xf32> to vector<8x256xf32>
    %164 = arith.truncf %163 : vector<8x256xf32> to vector<8x256xbf16>
    %cst_59 = arith.constant dense<0.000000e+00> : vector<32x256xf32>
    %165 = tpu.matmul %137, %164, %cst_59 {dimension_numbers = #tpu.dot_dimension_numbers<[1], [0], [0], [1], [0, 0, 1, 1], [], []>} : vector<32x8xbf16>, vector<8x256xbf16>, vector<32x256xf32> -> vector<32x256xf32>
    %166 = vector.extract_strided_slice %165 {offsets = [0, 0], sizes = [16, 256], strides = [1, 1]} : vector<32x256xf32> to vector<16x256xf32>
    %167 = arith.mulf %166, %166 : vector<16x256xf32>
    %168 = arith.mulf %166, %167 : vector<16x256xf32>
    %cst_60 = arith.constant 4.471500e-02 : f32
    %169 = vector.broadcast %cst_60 : f32 to vector<16x256xf32>
    %170 = arith.mulf %169, %168 : vector<16x256xf32>
    %171 = arith.addf %166, %170 : vector<16x256xf32>
    %cst_61 = arith.constant 0.797884583 : f32
    %172 = vector.broadcast %cst_61 : f32 to vector<16x256xf32>
    %173 = arith.mulf %172, %171 : vector<16x256xf32>
    %174 = math.tanh %173 : vector<16x256xf32>
    %cst_62 = arith.constant 1.000000e+00 : f32
    %175 = vector.broadcast %cst_62 : f32 to vector<16x256xf32>
    %176 = arith.addf %175, %174 : vector<16x256xf32>
    %cst_63 = arith.constant 5.000000e-01 : f32
    %177 = vector.broadcast %cst_63 : f32 to vector<16x256xf32>
    %178 = arith.mulf %177, %176 : vector<16x256xf32>
    %179 = arith.mulf %166, %178 : vector<16x256xf32>
    %180 = vector.extract_strided_slice %165 {offsets = [16, 0], sizes = [16, 256], strides = [1, 1]} : vector<32x256xf32> to vector<16x256xf32>
    %181 = arith.mulf %179, %180 : vector<16x256xf32>
    %182 = arith.truncf %181 : vector<16x256xf32> to vector<16x256xbf16>
    %cst_64 = arith.constant dense<0.000000e+00> : vector<8x256xf32>
    %183 = tpu.matmul %138, %182, %cst_64 {dimension_numbers = #tpu.dot_dimension_numbers<[1], [0], [0], [1], [0, 0, 1, 1], [], []>} : vector<8x16xbf16>, vector<16x256xbf16>, vector<8x256xf32> -> vector<8x256xf32>
    %184 = vector.extract_strided_slice %112 {offsets = [8, 0], sizes = [8, 256], strides = [1, 1]} : vector<16x256xf32> to vector<8x256xf32>
    %185 = arith.addf %184, %183 : vector<8x256xf32>
    %c8_65 = arith.constant 8 : index
    %c0_66 = arith.constant 0 : index
    %186 = vector.load %arg11[%c8_65, %c0_66] : memref<16x256xf32, #tpu.memory_space<vmem>>, vector<8x256xf32>
    tpu.vector_store %arg11[%c8_65, %c0_66], %185 {strides = array<i32>} : memref<16x256xf32, #tpu.memory_space<vmem>>, vector<8x256xf32>,
    return
  }
  func.func @transform_0(%arg0: i32) -> (i32, i32) {
    %c0_i32 = arith.constant 0 : i32
    %c0_i32_0 = arith.constant 0 : i32
    return %arg0, %c0_i32 : i32, i32
  }
  func.func @transform_1(%arg0: i32) -> (i32, i32) {
    %c0_i32 = arith.constant 0 : i32
    %c0_i32_0 = arith.constant 0 : i32
    %c0_i32_1 = arith.constant 0 : i32
    return %c0_i32, %c0_i32_0 : i32, i32
  }
  func.func @transform_2(%arg0: i32) -> (i32, i32) {
    %c0_i32 = arith.constant 0 : i32
    %c0_i32_0 = arith.constant 0 : i32
    %c0_i32_1 = arith.constant 0 : i32
    return %c0_i32, %c0_i32_0 : i32, i32
  }
  func.func @transform_3(%arg0: i32) -> (i32, i32) {
    %c0_i32 = arith.constant 0 : i32
    %c0_i32_0 = arith.constant 0 : i32
    %c0_i32_1 = arith.constant 0 : i32
    return %c0_i32, %c0_i32_0 : i32, i32
  }
  func.func @transform_4(%arg0: i32) -> (i32, i32) {
    %c0_i32 = arith.constant 0 : i32
    %c0_i32_0 = arith.constant 0 : i32
    %c0_i32_1 = arith.constant 0 : i32
    return %c0_i32, %c0_i32_0 : i32, i32
  }
  func.func @transform_5(%arg0: i32) -> (i32, i32) {
    %c0_i32 = arith.constant 0 : i32
    %c0_i32_0 = arith.constant 0 : i32
    %c0_i32_1 = arith.constant 0 : i32
    return %c0_i32, %c0_i32_0 : i32, i32
  }
  func.func @transform_6(%arg0: i32) -> (i32, i32) {
    %c0_i32 = arith.constant 0 : i32
    %c0_i32_0 = arith.constant 0 : i32
    %c0_i32_1 = arith.constant 0 : i32
    return %c0_i32, %c0_i32_0 : i32, i32
  }
  func.func @transform_7(%arg0: i32) -> (i32, i32) {
    %c0_i32 = arith.constant 0 : i32
    %c0_i32_0 = arith.constant 0 : i32
    %c0_i32_1 = arith.constant 0 : i32
    return %c0_i32, %c0_i32_0 : i32, i32
  }
  func.func @transform_8(%arg0: i32) -> (i32, i32) {
    %c0_i32 = arith.constant 0 : i32
    %c0_i32_0 = arith.constant 0 : i32
    %c0_i32_1 = arith.constant 0 : i32
    return %c0_i32, %c0_i32_0 : i32, i32
  }
  func.func @transform_9(%arg0: i32) -> (i32, i32) {
    %c0_i32 = arith.constant 0 : i32
    %c0_i32_0 = arith.constant 0 : i32
    %c0_i32_1 = arith.constant 0 : i32
    return %c0_i32, %c0_i32_0 : i32, i32
  }
  func.func @transform_10(%arg0: i32) -> (i32, i32) {
    %c0_i32 = arith.constant 0 : i32
    %c0_i32_0 = arith.constant 0 : i32
    return %arg0, %c0_i32 : i32, i32
  }
}

</mosaic_0001>

<llo_original>
// kernel: tpu_custom_call.1
$region0: #{tpu_custom_call.1}
  #allocation0 [shape = 'u32[]', space=smem, size = 0x4, offset = 0x4, fixed_abs, tag = 'smem constant byte address 0x4 - core index']
  #allocation1 [shape = 'u32[144,128]{1,0:T(1,128)}', space=vmem, size = 0x12000, scoped, tag = 'internal scratch']
  #allocation2 [shape = 'f32[16,256]{1,0:T(8,128)}', space=vmem, size = 0x4000, scoped, tag = 'scratch operand']
  #allocation3 [shape = 'f32[1,1]{1,0:T(1,128)S(6)}', space=smem, size = 0x200, scoped, tag = 'scoped memory for tpu_custom_call.1']
  %s0 = inlined_call_operand.hbm [shape: f32[32,256], index: 0, kind: input, shape index: {}]
  %s1 = inlined_call_operand.hbm [shape: bf16[256,768], index: 1, kind: input, shape index: {}]
  %s2 = inlined_call_operand.hbm [shape: bf16[256,256], index: 2, kind: input, shape index: {}]
  %s3 = inlined_call_operand.vmem [shape: f32[1,256], index: 3, kind: input, shape index: {}]
  %s4 = inlined_call_operand.vmem [shape: f32[1,256], index: 4, kind: input, shape index: {}]
  %s5 = inlined_call_operand.vmem [shape: f32[1,256], index: 5, kind: input, shape index: {}]
  %s6 = inlined_call_operand.vmem [shape: f32[1,256], index: 6, kind: input, shape index: {}]
  %s7 = inlined_call_operand.vmem [shape: bf16[32,8], index: 7, kind: input, shape index: {}]
  %s8 = inlined_call_operand.vmem [shape: bf16[8,16], index: 8, kind: input, shape index: {}]
  %s9 = inlined_call_operand.<no memory space> [shape: f32[1,1], index: 9, kind: input, shape index: {}]
  %s10 = inlined_call_operand.hbm [shape: f32[32,256], index: 10, kind: output, shape index: {}]
  %s11 = sld [smem:[#allocation0]]
  $region85: #{tpu_custom_call.1} parent=0
    _
  %s13 = ssub.s32 1, %s11
  %s14 = scalar_select 0, %s13, %s11
  %15 = sst [smem:[#allocation3]] %s9
  $region1: #{tpu_custom_call.1} parent=0
    #allocation4 [shape = 'u8[32768]{0}', space=vmem, size = 0x8000, scoped, tag = 'input window, operand 0']
    #allocation5 [shape = 's32[2]{0}', space=sflag, size = 0x8, scoped, tag = 'scoped memory for tpu_custom_call.1']
    #allocation6 [shape = 's32[2]{0}', space=sflag, size = 0x8, scoped, tag = 'scoped memory for tpu_custom_call.1']
    #allocation7 [shape = 'u8[393216]{0}', space=vmem, size = 0x60000, scoped, tag = 'input window, operand 1, single buffered']
    #allocation8 [shape = 's32[1]{0}', space=sflag, size = 0x4, scoped, tag = 'scoped memory for tpu_custom_call.1']
    #allocation9 [shape = 'u8[131072]{0}', space=vmem, size = 0x20000, scoped, tag = 'input window, operand 2, single buffered']
    #allocation10 [shape = 'u8[32768]{0}', space=vmem, size = 0x8000, scoped, tag = 'output window, operand 0']
    %16 = vsyncpa [#allocation5], 0
    %s17 = scalar_lea.sflag [#allocation5], 1
    %18 = vsyncpa %s17, 0
    %19 = vsyncpa [#allocation8], 0
    %20 = vsyncpa [#allocation6], 0
    %s21 = scalar_lea.sflag [#allocation6], 1
    %22 = vsyncpa %s21, 0
    loop: start=0, step=1, limit=4
    $region2: #{tpu_custom_call.1} parent=1 // loop_pre_header
      _
    $region3: #{tpu_custom_call.1} parent=1 // loop_header
      %s24 = sphi 0, %s28
      %p25 = scmp.ge.s32.totalorder %s24, 4
      %s34 = sphi 0, %s36
      %s37 = sphi 0, %s34
      %s38 = sphi 0, %s37
      %s54 = sphi 0, %s38
      %s58 = sphi 0, %s58
      %s60 = sphi 0, %s58
      %s61 = sphi 0, %s60
      %s75 = sphi 0, %s61
      %s79 = sphi 0, %s79
      %s81 = sphi 0, %s79
      %s82 = sphi 0, %s81
      %s96 = sphi 0, %s82
      %s100 = sphi 0, %s100
      %s102 = sphi 0, %s100
      %s103 = sphi 0, %s102
      %s117 = sphi 0, %s103
      %s121 = sphi 0, %s121
      %s123 = sphi 0, %s121
      %s124 = sphi 0, %s123
      %s138 = sphi 0, %s124
      %s142 = sphi 0, %s142
      %s144 = sphi 0, %s142
      %s145 = sphi 0, %s144
      %s159 = sphi 0, %s145
      %s163 = sphi 0, %s163
      %s165 = sphi 0, %s163
      %s166 = sphi 0, %s165
      %s180 = sphi 0, %s166
      %s184 = sphi 0, %s184
      %s186 = sphi 0, %s184
      %s187 = sphi 0, %s186
      %s201 = sphi 0, %s187
      %s205 = sphi 0, %s205
      %s207 = sphi 0, %s205
      %s208 = sphi 0, %s207
      %s222 = sphi 0, %s208
      %s226 = sphi 0, %s226
      %s228 = sphi 0, %s226
      %s229 = sphi 0, %s228
      %s243 = sphi 0, %s229
      %s249 = sphi 0, %s251
      %s252 = sphi 0, %s249
      %s253 = sphi 0, %s252
      %s269 = sphi 0, %s253
    $region4: #{tpu_custom_call.1} parent=1 // loop_header_branch
      %27 = sbr.rel (%p25) target = $region8
    $region5: #{tpu_custom_call.1} parent=1 // loop_body
      %s29 = ssub.s32 %s24, 1
      %s30 = ssub.s32 %s24, 2
      %s31 = sadd.s32 %s24, 1
      %s32 = ssub.s32 %s24, %s31
      %p33 = scmp.eq.s32.totalorder %s32, 0
      %s35 = sadd.s32 %s34, 1
      %s36 = scalar_select %p33, %s34, %s35
      %p39 = pneg %p33
      %p40 = scmp.eq.s32.totalorder %s24, 1
      %p41 = por %p39, %p40
      %p42 = scmp.ne.s32.totalorder %s34, %s37
      %p43 = scmp.eq.s32.totalorder %s24, 0
      %p44 = por %p42, %p43
      %p45 = scmp.ne.s32.totalorder %s34, %s37
      %p46 = scmp.eq.s32.totalorder %s29, 1
      %p47 = por %p45, %p46
      %p48 = scmp.ne.s32.totalorder %s37, %s38
      %p49 = scmp.eq.s32.totalorder %s29, 0
      %p50 = por %p48, %p49
      %p51 = scmp.ne.s32.totalorder %s37, %s38
      %p52 = scmp.eq.s32.totalorder %s30, 1
      %p53 = por %p51, %p52
      %p55 = scmp.ne.s32.totalorder %s38, %s54
      %p56 = scmp.eq.s32.totalorder %s30, 0
      %p57 = por %p55, %p56
      %s59 = sadd.s32 %s58, 1
      %p62 = scmp.eq.s32.totalorder %s24, 1
      %p63 = scmp.ne.s32.totalorder %s58, %s60
      %p64 = scmp.eq.s32.totalorder %s24, 0
      %p65 = por %p63, %p64
      %p66 = scmp.ne.s32.totalorder %s58, %s60
      %p67 = scmp.eq.s32.totalorder %s29, 1
      %p68 = por %p66, %p67
      %p69 = scmp.ne.s32.totalorder %s60, %s61
      %p70 = scmp.eq.s32.totalorder %s29, 0
      %p71 = por %p69, %p70
      %p72 = scmp.ne.s32.totalorder %s60, %s61
      %p73 = scmp.eq.s32.totalorder %s30, 1
      %p74 = por %p72, %p73
      %p76 = scmp.ne.s32.totalorder %s61, %s75
      %p77 = scmp.eq.s32.totalorder %s30, 0
      %p78 = por %p76, %p77
      %s80 = sadd.s32 %s79, 1
      %p83 = scmp.eq.s32.totalorder %s24, 1
      %p84 = scmp.ne.s32.totalorder %s79, %s81
      %p85 = scmp.eq.s32.totalorder %s24, 0
      %p86 = por %p84, %p85
      %p87 = scmp.ne.s32.totalorder %s79, %s81
      %p88 = scmp.eq.s32.totalorder %s29, 1
      %p89 = por %p87, %p88
      %p90 = scmp.ne.s32.totalorder %s81, %s82
      %p91 = scmp.eq.s32.totalorder %s29, 0
      %p92 = por %p90, %p91
      %p93 = scmp.ne.s32.totalorder %s81, %s82
      %p94 = scmp.eq.s32.totalorder %s30, 1
      %p95 = por %p93, %p94
      %p97 = scmp.ne.s32.totalorder %s82, %s96
      %p98 = scmp.eq.s32.totalorder %s30, 0
      %p99 = por %p97, %p98
      %s101 = sadd.s32 %s100, 1
      %p104 = scmp.eq.s32.totalorder %s24, 1
      %p105 = scmp.ne.s32.totalorder %s100, %s102
      %p106 = scmp.eq.s32.totalorder %s24, 0
      %p107 = por %p105, %p106
      %p108 = scmp.ne.s32.totalorder %s100, %s102
      %p109 = scmp.eq.s32.totalorder %s29, 1
      %p110 = por %p108, %p109
      %p111 = scmp.ne.s32.totalorder %s102, %s103
      %p112 = scmp.eq.s32.totalorder %s29, 0
      %p113 = por %p111, %p112
      %p114 = scmp.ne.s32.totalorder %s102, %s103
      %p115 = scmp.eq.s32.totalorder %s30, 1
      %p116 = por %p114, %p115
      %p118 = scmp.ne.s32.totalorder %s103, %s117
      %p119 = scmp.eq.s32.totalorder %s30, 0
      %p120 = por %p118, %p119
      %s122 = sadd.s32 %s121, 1
      %p125 = scmp.eq.s32.totalorder %s24, 1
      %p126 = scmp.ne.s32.totalorder %s121, %s123
      %p127 = scmp.eq.s32.totalorder %s24, 0
      %p128 = por %p126, %p127
      %p129 = scmp.ne.s32.totalorder %s121, %s123
      %p130 = scmp.eq.s32.totalorder %s29, 1
      %p131 = por %p129, %p130
      %p132 = scmp.ne.s32.totalorder %s123, %s124
      %p133 = scmp.eq.s32.totalorder %s29, 0
      %p134 = por %p132, %p133
      %p135 = scmp.ne.s32.totalorder %s123, %s124
      %p136 = scmp.eq.s32.totalorder %s30, 1
      %p137 = por %p135, %p136
      %p139 = scmp.ne.s32.totalorder %s124, %s138
      %p140 = scmp.eq.s32.totalorder %s30, 0
      %p141 = por %p139, %p140
      %s143 = sadd.s32 %s142, 1
      %p146 = scmp.eq.s32.totalorder %s24, 1
      %p147 = scmp.ne.s32.totalorder %s142, %s144
      %p148 = scmp.eq.s32.totalorder %s24, 0
      %p149 = por %p147, %p148
      %p150 = scmp.ne.s32.totalorder %s142, %s144
      %p151 = scmp.eq.s32.totalorder %s29, 1
      %p152 = por %p150, %p151
      %p153 = scmp.ne.s32.totalorder %s144, %s145
      %p154 = scmp.eq.s32.totalorder %s29, 0
      %p155 = por %p153, %p154
      %p156 = scmp.ne.s32.totalorder %s144, %s145
      %p157 = scmp.eq.s32.totalorder %s30, 1
      %p158 = por %p156, %p157
      %p160 = scmp.ne.s32.totalorder %s145, %s159
      %p161 = scmp.eq.s32.totalorder %s30, 0
      %p162 = por %p160, %p161
      %s164 = sadd.s32 %s163, 1
      %p167 = scmp.eq.s32.totalorder %s24, 1
      %p168 = scmp.ne.s32.totalorder %s163, %s165
      %p169 = scmp.eq.s32.totalorder %s24, 0
      %p170 = por %p168, %p169
      %p171 = scmp.ne.s32.totalorder %s163, %s165
      %p172 = scmp.eq.s32.totalorder %s29, 1
      %p173 = por %p171, %p172
      %p174 = scmp.ne.s32.totalorder %s165, %s166
      %p175 = scmp.eq.s32.totalorder %s29, 0
      %p176 = por %p174, %p175
      %p177 = scmp.ne.s32.totalorder %s165, %s166
      %p178 = scmp.eq.s32.totalorder %s30, 1
      %p179 = por %p177, %p178
      %p181 = scmp.ne.s32.totalorder %s166, %s180
      %p182 = scmp.eq.s32.totalorder %s30, 0
      %p183 = por %p181, %p182
      %s185 = sadd.s32 %s184, 1
      %p188 = scmp.eq.s32.totalorder %s24, 1
      %p189 = scmp.ne.s32.totalorder %s184, %s186
      %p190 = scmp.eq.s32.totalorder %s24, 0
      %p191 = por %p189, %p190
      %p192 = scmp.ne.s32.totalorder %s184, %s186
      %p193 = scmp.eq.s32.totalorder %s29, 1
      %p194 = por %p192, %p193
      %p195 = scmp.ne.s32.totalorder %s186, %s187
      %p196 = scmp.eq.s32.totalorder %s29, 0
      %p197 = por %p195, %p196
      %p198 = scmp.ne.s32.totalorder %s186, %s187
      %p199 = scmp.eq.s32.totalorder %s30, 1
      %p200 = por %p198, %p199
      %p202 = scmp.ne.s32.totalorder %s187, %s201
      %p203 = scmp.eq.s32.totalorder %s30, 0
      %p204 = por %p202, %p203
      %s206 = sadd.s32 %s205, 1
      %p209 = scmp.eq.s32.totalorder %s24, 1
      %p210 = scmp.ne.s32.totalorder %s205, %s207
      %p211 = scmp.eq.s32.totalorder %s24, 0
      %p212 = por %p210, %p211
      %p213 = scmp.ne.s32.totalorder %s205, %s207
      %p214 = scmp.eq.s32.totalorder %s29, 1
      %p215 = por %p213, %p214
      %p216 = scmp.ne.s32.totalorder %s207, %s208
      %p217 = scmp.eq.s32.totalorder %s29, 0
      %p218 = por %p216, %p217
      %p219 = scmp.ne.s32.totalorder %s207, %s208
      %p220 = scmp.eq.s32.totalorder %s30, 1
      %p221 = por %p219, %p220
      %p223 = scmp.ne.s32.totalorder %s208, %s222
      %p224 = scmp.eq.s32.totalorder %s30, 0
      %p225 = por %p223, %p224
      %s227 = sadd.s32 %s226, 1
      %p230 = scmp.eq.s32.totalorder %s24, 1
      %p231 = scmp.ne.s32.totalorder %s226, %s228
      %p232 = scmp.eq.s32.totalorder %s24, 0
      %p233 = por %p231, %p232
      %p234 = scmp.ne.s32.totalorder %s226, %s228
      %p235 = scmp.eq.s32.totalorder %s29, 1
      %p236 = por %p234, %p235
      %p237 = scmp.ne.s32.totalorder %s228, %s229
      %p238 = scmp.eq.s32.totalorder %s29, 0
      %p239 = por %p237, %p238
      %p240 = scmp.ne.s32.totalorder %s228, %s229
      %p241 = scmp.eq.s32.totalorder %s30, 1
      %p242 = por %p240, %p241
      %p244 = scmp.ne.s32.totalorder %s229, %s243
      %p245 = scmp.eq.s32.totalorder %s30, 0
      %p246 = por %p244, %p245
      %s247 = ssub.s32 %s24, %s31
      %p248 = scmp.eq.s32.totalorder %s247, 0
      %s250 = sadd.s32 %s249, 1
      %s251 = scalar_select %p248, %s249, %s250
      %p254 = pneg %p248
      %p255 = scmp.eq.s32.totalorder %s24, 1
      %p256 = por %p254, %p255
      %p257 = scmp.ne.s32.totalorder %s249, %s252
      %p258 = scmp.eq.s32.totalorder %s24, 0
      %p259 = por %p257, %p258
      %p260 = scmp.ne.s32.totalorder %s249, %s252
      %p261 = scmp.eq.s32.totalorder %s29, 1
      %p262 = por %p260, %p261
      %p263 = scmp.ne.s32.totalorder %s252, %s253
      %p264 = scmp.eq.s32.totalorder %s29, 0
      %p265 = por %p263, %p264
      %p266 = scmp.ne.s32.totalorder %s252, %s253
      %p267 = scmp.eq.s32.totalorder %s30, 1
      %p268 = por %p266, %p267
      %p270 = scmp.ne.s32.totalorder %s253, %s269
      %p271 = scmp.eq.s32.totalorder %s30, 0
      %p272 = por %p270, %p271
      %p273 = scmp.le.s32.totalorder 1, %s24
      %p274 = scmp.lt.s32.totalorder %s24, 3
      %p275 = pnand %p273, %p274
      %p276 = pneg %p275
      // Predicated region
      $region9: #{tpu_custom_call.1} parent=5 // pred_check
        _
      $region10: #{tpu_custom_call.1} parent=5 // pred_check_branch
        %278 = sbr.rel (%p275) target = $region12
      $region11: #{tpu_custom_call.1} parent=5 // pred_region
        %s279 = ssub.s32 %s24, 1
        // Predicated region
        $region13: #{tpu_custom_call.1} parent=11 // pred_check
          %p280 = pneg %p71
        $region14: #{tpu_custom_call.1} parent=11 // pred_check_branch
          %282 = sbr.rel (%p280) target = $region16
        $region15: #{tpu_custom_call.1} parent=11 // pred_region
          %s284 = ssub.s32 12288, 12288
          %285 = vsyncadd [#allocation8], %s284
          %s286 = sshll.u32 [#allocation7], 4
          %s287 = int_to_ptr.vmem [resolvable:$true] %s286
          %292 = dma.hbm_to_vmem [thread:$0]  %s1, 12288, %s287, [#allocation8], 384, 384, 24
        $region16: #{tpu_custom_call.1} parent=11 // pred_fallthru
          _
        // Predicated region
        $region17: #{tpu_custom_call.1} parent=11 // pred_check
          %p293 = pneg %p92
        $region18: #{tpu_custom_call.1} parent=11 // pred_check_branch
          %295 = sbr.rel (%p293) target = $region20
        $region19: #{tpu_custom_call.1} parent=11 // pred_region
          %s297 = ssub.s32 4096, 4096
          %298 = vsyncadd [#allocation8], %s297
          %s299 = sshll.u32 [#allocation9], 4
          %s300 = int_to_ptr.vmem [resolvable:$true] %s299
          %305 = dma.hbm_to_vmem [thread:$0]  %s2, 4096, %s300, [#allocation8], 128, 128, 8
        $region20: #{tpu_custom_call.1} parent=11 // pred_fallthru
          _
        // Predicated region
        $region21: #{tpu_custom_call.1} parent=11 // pred_check
          %p306 = pneg %p113
        $region22: #{tpu_custom_call.1} parent=11 // pred_check_branch
          %308 = sbr.rel (%p306) target = $region24
        $region23: #{tpu_custom_call.1} parent=11 // pred_region
          _
        $region24: #{tpu_custom_call.1} parent=11 // pred_fallthru
          _
        // Predicated region
        $region25: #{tpu_custom_call.1} parent=11 // pred_check
          %p309 = pneg %p134
        $region26: #{tpu_custom_call.1} parent=11 // pred_check_branch
          %311 = sbr.rel (%p309) target = $region28
        $region27: #{tpu_custom_call.1} parent=11 // pred_region
          _
        $region28: #{tpu_custom_call.1} parent=11 // pred_fallthru
          _
        // Predicated region
        $region29: #{tpu_custom_call.1} parent=11 // pred_check
          %p312 = pneg %p155
        $region30: #{tpu_custom_call.1} parent=11 // pred_check_branch
          %314 = sbr.rel (%p312) target = $region32
        $region31: #{tpu_custom_call.1} parent=11 // pred_region
          _
        $region32: #{tpu_custom_call.1} parent=11 // pred_fallthru
          _
        // Predicated region
        $region33: #{tpu_custom_call.1} parent=11 // pred_check
          %p315 = pneg %p176
        $region34: #{tpu_custom_call.1} parent=11 // pred_check_branch
          %317 = sbr.rel (%p315) target = $region36
        $region35: #{tpu_custom_call.1} parent=11 // pred_region
          _
        $region36: #{tpu_custom_call.1} parent=11 // pred_fallthru
          _
        // Predicated region
        $region37: #{tpu_custom_call.1} parent=11 // pred_check
          %p318 = pneg %p197
        $region38: #{tpu_custom_call.1} parent=11 // pred_check_branch
          %320 = sbr.rel (%p318) target = $region40
        $region39: #{tpu_custom_call.1} parent=11 // pred_region
          _
        $region40: #{tpu_custom_call.1} parent=11 // pred_fallthru
          _
        // Predicated region
        $region41: #{tpu_custom_call.1} parent=11 // pred_check
          %p321 = pneg %p218
        $region42: #{tpu_custom_call.1} parent=11 // pred_check_branch
          %323 = sbr.rel (%p321) target = $region44
        $region43: #{tpu_custom_call.1} parent=11 // pred_region
          _
        $region44: #{tpu_custom_call.1} parent=11 // pred_fallthru
          _
        // Predicated region
        $region45: #{tpu_custom_call.1} parent=11 // pred_check
          %p324 = pneg %p239
        $region46: #{tpu_custom_call.1} parent=11 // pred_check_branch
          %326 = sbr.rel (%p324) target = $region48
        $region47: #{tpu_custom_call.1} parent=11 // pred_region
          _
        $region48: #{tpu_custom_call.1} parent=11 // pred_fallthru
          _
      $region12: #{tpu_custom_call.1} parent=5 // pred_fallthru
        _
      %p327 = scmp.lt.s32.totalorder %s24, 2
      // Predicated region
      $region49: #{tpu_custom_call.1} parent=5 // pred_check
        %p328 = pneg %p327
      $region50: #{tpu_custom_call.1} parent=5 // pred_check_branch
        %330 = sbr.rel (%p328) target = $region52
      $region51: #{tpu_custom_call.1} parent=5 // pred_region
        // Predicated region
        $region53: #{tpu_custom_call.1} parent=51 // pred_check
          %p331 = pneg %p44
        $region54: #{tpu_custom_call.1} parent=51 // pred_check_branch
          %333 = sbr.rel (%p331) target = $region56
        $region55: #{tpu_custom_call.1} parent=51 // pred_region
          %s334 = sand.u32 %s34, 1
          %s335 = scalar_lea.sflag [#allocation5], %s334
          %s336 = sand.u32 %s34, 1
          %s337 = smul.addr %s336, 32
          %s338 = scalar_lea.vmem [#allocation4], %s337
          %s339 = smul.u32 2, %s24
          %s341 = ssub.s32 512, 512
          %342 = vsyncadd %s335, %s341
          %s343 = smul.addr %s339, 2
          %s344 = smul.addr %s343, 128
          %s345 = scalar_lea.hbm %s0, %s344
          %s346 = sshll.u32 %s338, 4
          %s347 = int_to_ptr.vmem [resolvable:$true] %s346
          %352 = dma.hbm_to_vmem [thread:$0]  %s345, 512, %s347, %s335, 256, 256, 16
        $region56: #{tpu_custom_call.1} parent=51 // pred_fallthru
          _
      $region52: #{tpu_custom_call.1} parent=5 // pred_fallthru
        _
      %p353 = scmp.le.s32.totalorder 1, %s24
      %p354 = scmp.lt.s32.totalorder %s24, 3
      %p355 = pnand %p353, %p354
      %p356 = pneg %p355
      // Predicated region
      $region57: #{tpu_custom_call.1} parent=5 // pred_check
        _
      $region58: #{tpu_custom_call.1} parent=5 // pred_check_branch
        %358 = sbr.rel (%p355) target = $region60
      $region59: #{tpu_custom_call.1} parent=5 // pred_region
        %s359 = ssub.s32 %s24, 1
        %s360 = sand.u32 %s37, 1
        %s361 = scalar_lea.sflag [#allocation5], %s360
        %s362 = sand.u32 %s37, 1
        %s363 = smul.addr %s362, 32
        %s364 = scalar_lea.vmem [#allocation4], %s363
        // Predicated region
        $region61: #{tpu_custom_call.1} parent=59 // pred_check
          %p365 = pneg %p50
        $region62: #{tpu_custom_call.1} parent=59 // pred_check_branch
          %367 = sbr.rel (%p365) target = $region64
        $region63: #{tpu_custom_call.1} parent=59 // pred_region
          %368 = dma.done %s361, 512
        $region64: #{tpu_custom_call.1} parent=59 // pred_fallthru
          _
        // Predicated region
        $region65: #{tpu_custom_call.1} parent=59 // pred_check
          %p369 = pneg %p71
        $region66: #{tpu_custom_call.1} parent=59 // pred_check_branch
          %371 = sbr.rel (%p369) target = $region68
        $region67: #{tpu_custom_call.1} parent=59 // pred_region
          %372 = dma.done [#allocation8], 12288
        $region68: #{tpu_custom_call.1} parent=59 // pred_fallthru
          _
        // Predicated region
        $region69: #{tpu_custom_call.1} parent=59 // pred_check
          %p373 = pneg %p92
        $region70: #{tpu_custom_call.1} parent=59 // pred_check_branch
          %375 = sbr.rel (%p373) target = $region72
        $region71: #{tpu_custom_call.1} parent=59 // pred_region
          %376 = dma.done [#allocation8], 4096
        $region72: #{tpu_custom_call.1} parent=59 // pred_fallthru
          _
        %s377 = sand.u32 %s37, 1
        %s378 = scalar_lea.sflag [#allocation5], %s377
        %s379 = sand.u32 %s37, 1
        %s380 = smul.addr %s379, 32
        %s381 = scalar_lea.vmem [#allocation4], %s380
        %p382 = pneg %p50
        %p383 = pneg %p47
        %p384 = pneg %p71
        %p385 = pneg %p68
        %p386 = pneg %p92
        %p387 = pneg %p89
        %p388 = pneg %p113
        %p389 = pneg %p110
        %p390 = pneg %p134
        %p391 = pneg %p131
        %p392 = pneg %p155
        %p393 = pneg %p152
        %p394 = pneg %p176
        %p395 = pneg %p173
        %p396 = pneg %p197
        %p397 = pneg %p194
        %p398 = pneg %p218
        %p399 = pneg %p215
        %p400 = pneg %p239
        %p401 = pneg %p236
        %p402 = pneg %p265
        %p403 = pneg %p262
        %s404 = sand.u32 %s252, 1
        %s405 = scalar_lea.sflag [#allocation6], %s404
        %s406 = sand.u32 %s252, 1
        %s407 = smul.addr %s406, 32
        %s408 = scalar_lea.vmem [#allocation10], %s407
        %s409 = smul.u32 2, %s29
        %s410 = smul.u32 2, %s29
        %v412 = vld [vmem:[%s364] sm:$0xff]
        %v413 = vld [vmem:[%s364 + $0x8] sm:$0xff]
        %v414 = vld [vmem:[%s364 + $0x10] sm:$0xff]
        %v415 = vld [vmem:[%s364 + $0x18] sm:$0xff]
        %v416 = vld [vmem:[%s3] sm:$0x3]
        %v417 = vld [vmem:[%s4] sm:$0x3]
        %v418 = vadd.f32 %v412, %v413
        %419 = vadd.xlane.f32.xlu0 %v418
        %v420 = vpop.xlane.xlu0 %419
        %v421 = vadd.f32 %v414, %v415
        %422 = vadd.xlane.f32.xlu0 %v421
        %v423 = vpop.xlane.xlu0 %422
        %v424 = vrcp.pop 256.0
        %v425 = vmul.f32 %v420, %v424
        %v426 = vmul.f32 %v423, %v424
        %v427 = vsub.f32 %v412, %v425
        %v428 = vsub.f32 %v413, %v425
        %v429 = vsub.f32 %v414, %v426
        %v430 = vsub.f32 %v415, %v426
        %v431 = vmul.f32 %v427, %v427
        %v432 = vmul.f32 %v428, %v428
        %v433 = vmul.f32 %v429, %v429
        %v434 = vmul.f32 %v430, %v430
        %v435 = vadd.f32 %v431, %v432
        %436 = vadd.xlane.f32.xlu0 %v435
        %v437 = vpop.xlane.xlu0 %436
        %v438 = vadd.f32 %v433, %v434
        %439 = vadd.xlane.f32.xlu0 %v438
        %v440 = vpop.xlane.xlu0 %439
        %v441 = vmul.f32 %v437, %v424
        %v442 = vmul.f32 %v440, %v424
        %v443 = vadd.f32 %v441, 1e-05
        %v444 = vadd.f32 %v442, 1e-05
        %v445 = vrsqrt.pop %v443
        %v446 = vrsqrt.pop %v444
        %v447 = vmul.f32 %v427, %v445
        %v448 = vmul.f32 %v428, %v445
        %v449 = vmul.f32 %v429, %v446
        %v450 = vmul.f32 %v430, %v446
        %v452 = vlaneseq
        %v453 = vshrl.u32 %v452, 7
        %v454 = vsub.s32 0, %v453
        %v455 = vrot.slane %v416, %v454
        %v456 = vlaneseq
        %v457 = vshrl.u32 %v456, 7
        %v458 = vsub.s32 1, %v457
        %v459 = vrot.slane %v416, %v458
        %v462 = vmul.f32 %v447, %v455
        %v463 = vmul.f32 %v448, %v459
        %v464 = vmul.f32 %v449, %v455
        %v465 = vmul.f32 %v450, %v459
        %v467 = vlaneseq
        %v468 = vshrl.u32 %v467, 7
        %v469 = vsub.s32 0, %v468
        %v470 = vrot.slane %v417, %v469
        %v471 = vlaneseq
        %v472 = vshrl.u32 %v471, 7
        %v473 = vsub.s32 1, %v472
        %v474 = vrot.slane %v417, %v473
        %v477 = vadd.f32 %v462, %v470
        %v478 = vadd.f32 %v463, %v474
        %v479 = vadd.f32 %v464, %v470
        %v480 = vadd.f32 %v465, %v474
        %v481 = vpack.c.bf16 %v479, %v477
        %v482 = vpack.c.bf16 %v480, %v478
        %v483 = vld [vmem:[#allocation7] sm:$0xff]
        %v484 = vld [vmem:[#allocation7 + $0x8] sm:$0xff]
        %v485 = vld [vmem:[#allocation7 + $0x10] sm:$0xff]
        %v486 = vld [vmem:[#allocation7 + $0x18] sm:$0xff]
        %v487 = vld [vmem:[#allocation7 + $0x20] sm:$0xff]
        %v488 = vld [vmem:[#allocation7 + $0x28] sm:$0xff]
        %v489 = vld [vmem:[#allocation7 + $0x30] sm:$0xff]
        %v490 = vld [vmem:[#allocation7 + $0x38] sm:$0xff]
        %v491 = vld [vmem:[#allocation7 + $0x40] sm:$0xff]
        %v492 = vld [vmem:[#allocation7 + $0x48] sm:$0xff]
        %v493 = vld [vmem:[#allocation7 + $0x50] sm:$0xff]
        %v494 = vld [vmem:[#allocation7 + $0x58] sm:$0xff]
        %v495 = vld [vmem:[#allocation7 + $0x60] sm:$0xff]
        %v496 = vld [vmem:[#allocation7 + $0x68] sm:$0xff]
        %v497 = vld [vmem:[#allocation7 + $0x70] sm:$0xff]
        %v498 = vld [vmem:[#allocation7 + $0x78] sm:$0xff]
        %v499 = vld [vmem:[#allocation7 + $0x80] sm:$0xff]
        %v500 = vld [vmem:[#allocation7 + $0x88] sm:$0xff]
        %v501 = vld [vmem:[#allocation7 + $0x90] sm:$0xff]
        %v502 = vld [vmem:[#allocation7 + $0x98] sm:$0xff]
        %v503 = vld [vmem:[#allocation7 + $0xa0] sm:$0xff]
        %v504 = vld [vmem:[#allocation7 + $0xa8] sm:$0xff]
        %v505 = vld [vmem:[#allocation7 + $0xb0] sm:$0xff]
        %v506 = vld [vmem:[#allocation7 + $0xb8] sm:$0xff]
        %v507 = vld [vmem:[#allocation7 + $0xc0] sm:$0xff]
        %v508 = vld [vmem:[#allocation7 + $0xc8] sm:$0xff]
        %v509 = vld [vmem:[#allocation7 + $0xd0] sm:$0xff]
        %v510 = vld [vmem:[#allocation7 + $0xd8] sm:$0xff]
        %v511 = vld [vmem:[#allocation7 + $0xe0] sm:$0xff]
        %v512 = vld [vmem:[#allocation7 + $0xe8] sm:$0xff]
        %v513 = vld [vmem:[#allocation7 + $0xf0] sm:$0xff]
        %v514 = vld [vmem:[#allocation7 + $0xf8] sm:$0xff]
        %v515 = vld [vmem:[#allocation7 + $0x100] sm:$0xff]
        %v516 = vld [vmem:[#allocation7 + $0x108] sm:$0xff]
        %v517 = vld [vmem:[#allocation7 + $0x110] sm:$0xff]
        %v518 = vld [vmem:[#allocation7 + $0x118] sm:$0xff]
        %v519 = vld [vmem:[#allocation7 + $0x120] sm:$0xff]
        %v520 = vld [vmem:[#allocation7 + $0x128] sm:$0xff]
        %v521 = vld [vmem:[#allocation7 + $0x130] sm:$0xff]
        %v522 = vld [vmem:[#allocation7 + $0x138] sm:$0xff]
        %v523 = vld [vmem:[#allocation7 + $0x140] sm:$0xff]
        %v524 = vld [vmem:[#allocation7 + $0x148] sm:$0xff]
        %v525 = vld [vmem:[#allocation7 + $0x150] sm:$0xff]
        %v526 = vld [vmem:[#allocation7 + $0x158] sm:$0xff]
        %v527 = vld [vmem:[#allocation7 + $0x160] sm:$0xff]
        %v528 = vld [vmem:[#allocation7 + $0x168] sm:$0xff]
        %v529 = vld [vmem:[#allocation7 + $0x170] sm:$0xff]
        %v530 = vld [vmem:[#allocation7 + $0x178] sm:$0xff]
        %v531 = vld [vmem:[#allocation7 + $0x180] sm:$0xff]
        %v532 = vld [vmem:[#allocation7 + $0x188] sm:$0xff]
        %v533 = vld [vmem:[#allocation7 + $0x190] sm:$0xff]
        %v534 = vld [vmem:[#allocation7 + $0x198] sm:$0xff]
        %v535 = vld [vmem:[#allocation7 + $0x1a0] sm:$0xff]
        %v536 = vld [vmem:[#allocation7 + $0x1a8] sm:$0xff]
        %v537 = vld [vmem:[#allocation7 + $0x1b0] sm:$0xff]
        %v538 = vld [vmem:[#allocation7 + $0x1b8] sm:$0xff]
        %v539 = vld [vmem:[#allocation7 + $0x1c0] sm:$0xff]
        %v540 = vld [vmem:[#allocation7 + $0x1c8] sm:$0xff]
        %v541 = vld [vmem:[#allocation7 + $0x1d0] sm:$0xff]
        %v542 = vld [vmem:[#allocation7 + $0x1d8] sm:$0xff]
        %v543 = vld [vmem:[#allocation7 + $0x1e0] sm:$0xff]
        %v544 = vld [vmem:[#allocation7 + $0x1e8] sm:$0xff]
        %v545 = vld [vmem:[#allocation7 + $0x1f0] sm:$0xff]
        %v546 = vld [vmem:[#allocation7 + $0x1f8] sm:$0xff]
        %v547 = vld [vmem:[#allocation7 + $0x200] sm:$0xff]
        %v548 = vld [vmem:[#allocation7 + $0x208] sm:$0xff]
        %v549 = vld [vmem:[#allocation7 + $0x210] sm:$0xff]
        %v550 = vld [vmem:[#allocation7 + $0x218] sm:$0xff]
        %v551 = vld [vmem:[#allocation7 + $0x220] sm:$0xff]
        %v552 = vld [vmem:[#allocation7 + $0x228] sm:$0xff]
        %v553 = vld [vmem:[#allocation7 + $0x230] sm:$0xff]
        %v554 = vld [vmem:[#allocation7 + $0x238] sm:$0xff]
        %v555 = vld [vmem:[#allocation7 + $0x240] sm:$0xff]
        %v556 = vld [vmem:[#allocation7 + $0x248] sm:$0xff]
        %v557 = vld [vmem:[#allocation7 + $0x250] sm:$0xff]
        %v558 = vld [vmem:[#allocation7 + $0x258] sm:$0xff]
        %v559 = vld [vmem:[#allocation7 + $0x260] sm:$0xff]
        %v560 = vld [vmem:[#allocation7 + $0x268] sm:$0xff]
        %v561 = vld [vmem:[#allocation7 + $0x270] sm:$0xff]
        %v562 = vld [vmem:[#allocation7 + $0x278] sm:$0xff]
        %v563 = vld [vmem:[#allocation7 + $0x280] sm:$0xff]
        %v564 = vld [vmem:[#allocation7 + $0x288] sm:$0xff]
        %v565 = vld [vmem:[#allocation7 + $0x290] sm:$0xff]
        %v566 = vld [vmem:[#allocation7 + $0x298] sm:$0xff]
        %v567 = vld [vmem:[#allocation7 + $0x2a0] sm:$0xff]
        %v568 = vld [vmem:[#allocation7 + $0x2a8] sm:$0xff]
        %v569 = vld [vmem:[#allocation7 + $0x2b0] sm:$0xff]
        %v570 = vld [vmem:[#allocation7 + $0x2b8] sm:$0xff]
        %v571 = vld [vmem:[#allocation7 + $0x2c0] sm:$0xff]
        %v572 = vld [vmem:[#allocation7 + $0x2c8] sm:$0xff]
        %v573 = vld [vmem:[#allocation7 + $0x2d0] sm:$0xff]
        %v574 = vld [vmem:[#allocation7 + $0x2d8] sm:$0xff]
        %v575 = vld [vmem:[#allocation7 + $0x2e0] sm:$0xff]
        %v576 = vld [vmem:[#allocation7 + $0x2e8] sm:$0xff]
        %v577 = vld [vmem:[#allocation7 + $0x2f0] sm:$0xff]
        %v578 = vld [vmem:[#allocation7 + $0x2f8] sm:$0xff]
        %v675 = vunpack.c.l.b16 %v483
        %v676 = vunpack.c.h.b16 %v483
        %v677 = vunpack.c.l.b16 %v484
        %v678 = vunpack.c.h.b16 %v484
        %v679 = vunpack.c.l.b16 %v485
        %v680 = vunpack.c.h.b16 %v485
        %v681 = vunpack.c.l.b16 %v486
        %v682 = vunpack.c.h.b16 %v486
        %v683 = vunpack.c.l.b16 %v487
        %v684 = vunpack.c.h.b16 %v487
        %v685 = vunpack.c.l.b16 %v488
        %v686 = vunpack.c.h.b16 %v488
        %v687 = vunpack.c.l.b16 %v489
        %v688 = vunpack.c.h.b16 %v489
        %v689 = vunpack.c.l.b16 %v490
        %v690 = vunpack.c.h.b16 %v490
        %v691 = vunpack.c.l.b16 %v491
        %v692 = vunpack.c.h.b16 %v491
        %v693 = vunpack.c.l.b16 %v492
        %v694 = vunpack.c.h.b16 %v492
        %v695 = vunpack.c.l.b16 %v493
        %v696 = vunpack.c.h.b16 %v493
        %v697 = vunpack.c.l.b16 %v494
        %v698 = vunpack.c.h.b16 %v494
        %v699 = vunpack.c.l.b16 %v495
        %v700 = vunpack.c.h.b16 %v495
        %v701 = vunpack.c.l.b16 %v496
        %v702 = vunpack.c.h.b16 %v496
        %v703 = vunpack.c.l.b16 %v497
        %v704 = vunpack.c.h.b16 %v497
        %v705 = vunpack.c.l.b16 %v498
        %v706 = vunpack.c.h.b16 %v498
        %v707 = vunpack.c.l.b16 %v499
        %v708 = vunpack.c.h.b16 %v499
        %v709 = vunpack.c.l.b16 %v500
        %v710 = vunpack.c.h.b16 %v500
        %v711 = vunpack.c.l.b16 %v501
        %v712 = vunpack.c.h.b16 %v501
        %v713 = vunpack.c.l.b16 %v502
        %v714 = vunpack.c.h.b16 %v502
        %v715 = vunpack.c.l.b16 %v503
        %v716 = vunpack.c.h.b16 %v503
        %v717 = vunpack.c.l.b16 %v504
        %v718 = vunpack.c.h.b16 %v504
        %v719 = vunpack.c.l.b16 %v505
        %v720 = vunpack.c.h.b16 %v505
        %v721 = vunpack.c.l.b16 %v506
        %v722 = vunpack.c.h.b16 %v506
        %v723 = vunpack.c.l.b16 %v507
        %v724 = vunpack.c.h.b16 %v507
        %v725 = vunpack.c.l.b16 %v508
        %v726 = vunpack.c.h.b16 %v508
        %v727 = vunpack.c.l.b16 %v509
        %v728 = vunpack.c.h.b16 %v509
        %v729 = vunpack.c.l.b16 %v510
        %v730 = vunpack.c.h.b16 %v510
        %v731 = vunpack.c.l.b16 %v511
        %v732 = vunpack.c.h.b16 %v511
        %v733 = vunpack.c.l.b16 %v512
        %v734 = vunpack.c.h.b16 %v512
        %v735 = vunpack.c.l.b16 %v513
        %v736 = vunpack.c.h.b16 %v513
        %v737 = vunpack.c.l.b16 %v514
        %v738 = vunpack.c.h.b16 %v514
        %v739 = vunpack.c.l.b16 %v515
        %v740 = vunpack.c.h.b16 %v515
        %v741 = vunpack.c.l.b16 %v516
        %v742 = vunpack.c.h.b16 %v516
        %v743 = vunpack.c.l.b16 %v517
        %v744 = vunpack.c.h.b16 %v517
        %v745 = vunpack.c.l.b16 %v518
        %v746 = vunpack.c.h.b16 %v518
        %v747 = vunpack.c.l.b16 %v519
        %v748 = vunpack.c.h.b16 %v519
        %v749 = vunpack.c.l.b16 %v520
        %v750 = vunpack.c.h.b16 %v520
        %v751 = vunpack.c.l.b16 %v521
        %v752 = vunpack.c.h.b16 %v521
        %v753 = vunpack.c.l.b16 %v522
        %v754 = vunpack.c.h.b16 %v522
        %v755 = vunpack.c.l.b16 %v523
        %v756 = vunpack.c.h.b16 %v523
        %v757 = vunpack.c.l.b16 %v524
        %v758 = vunpack.c.h.b16 %v524
        %v759 = vunpack.c.l.b16 %v525
        %v760 = vunpack.c.h.b16 %v525
        %v761 = vunpack.c.l.b16 %v526
        %v762 = vunpack.c.h.b16 %v526
        %v763 = vunpack.c.l.b16 %v527
        %v764 = vunpack.c.h.b16 %v527
        %v765 = vunpack.c.l.b16 %v528
        %v766 = vunpack.c.h.b16 %v528
        %v767 = vunpack.c.l.b16 %v529
        %v768 = vunpack.c.h.b16 %v529
        %v769 = vunpack.c.l.b16 %v530
        %v770 = vunpack.c.h.b16 %v530
        %v771 = vunpack.c.l.b16 %v531
        %v772 = vunpack.c.h.b16 %v531
        %v773 = vunpack.c.l.b16 %v532
        %v774 = vunpack.c.h.b16 %v532
        %v775 = vunpack.c.l.b16 %v533
        %v776 = vunpack.c.h.b16 %v533
        %v777 = vunpack.c.l.b16 %v534
        %v778 = vunpack.c.h.b16 %v534
        %v779 = vunpack.c.l.b16 %v535
        %v780 = vunpack.c.h.b16 %v535
        %v781 = vunpack.c.l.b16 %v536
        %v782 = vunpack.c.h.b16 %v536
        %v783 = vunpack.c.l.b16 %v537
        %v784 = vunpack.c.h.b16 %v537
        %v785 = vunpack.c.l.b16 %v538
        %v786 = vunpack.c.h.b16 %v538
        %v787 = vunpack.c.l.b16 %v539
        %v788 = vunpack.c.h.b16 %v539
        %v789 = vunpack.c.l.b16 %v540
        %v790 = vunpack.c.h.b16 %v540
        %v791 = vunpack.c.l.b16 %v541
        %v792 = vunpack.c.h.b16 %v541
        %v793 = vunpack.c.l.b16 %v542
        %v794 = vunpack.c.h.b16 %v542
        %v795 = vunpack.c.l.b16 %v543
        %v796 = vunpack.c.h.b16 %v543
        %v797 = vunpack.c.l.b16 %v544
        %v798 = vunpack.c.h.b16 %v544
        %v799 = vunpack.c.l.b16 %v545
        %v800 = vunpack.c.h.b16 %v545
        %v801 = vunpack.c.l.b16 %v546
        %v802 = vunpack.c.h.b16 %v546
        %v803 = vunpack.c.l.b16 %v547
        %v804 = vunpack.c.h.b16 %v547
        %v805 = vunpack.c.l.b16 %v548
        %v806 = vunpack.c.h.b16 %v548
        %v807 = vunpack.c.l.b16 %v549
        %v808 = vunpack.c.h.b16 %v549
        %v809 = vunpack.c.l.b16 %v550
        %v810 = vunpack.c.h.b16 %v550
        %v811 = vunpack.c.l.b16 %v551
        %v812 = vunpack.c.h.b16 %v551
        %v813 = vunpack.c.l.b16 %v552
        %v814 = vunpack.c.h.b16 %v552
        %v815 = vunpack.c.l.b16 %v553
        %v816 = vunpack.c.h.b16 %v553
        %v817 = vunpack.c.l.b16 %v554
        %v818 = vunpack.c.h.b16 %v554
        %v819 = vunpack.c.l.b16 %v555
        %v820 = vunpack.c.h.b16 %v555
        %v821 = vunpack.c.l.b16 %v556
        %v822 = vunpack.c.h.b16 %v556
        %v823 = vunpack.c.l.b16 %v557
        %v824 = vunpack.c.h.b16 %v557
        %v825 = vunpack.c.l.b16 %v558
        %v826 = vunpack.c.h.b16 %v558
        %v827 = vunpack.c.l.b16 %v559
        %v828 = vunpack.c.h.b16 %v559
        %v829 = vunpack.c.l.b16 %v560
        %v830 = vunpack.c.h.b16 %v560
        %v831 = vunpack.c.l.b16 %v561
        %v832 = vunpack.c.h.b16 %v561
        %v833 = vunpack.c.l.b16 %v562
        %v834 = vunpack.c.h.b16 %v562
        %v835 = vunpack.c.l.b16 %v563
        %v836 = vunpack.c.h.b16 %v563
        %v837 = vunpack.c.l.b16 %v564
        %v838 = vunpack.c.h.b16 %v564
        %v839 = vunpack.c.l.b16 %v565
        %v840 = vunpack.c.h.b16 %v565
        %v841 = vunpack.c.l.b16 %v566
        %v842 = vunpack.c.h.b16 %v566
        %v843 = vunpack.c.l.b16 %v567
        %v844 = vunpack.c.h.b16 %v567
        %v845 = vunpack.c.l.b16 %v568
        %v846 = vunpack.c.h.b16 %v568
        %v847 = vunpack.c.l.b16 %v569
        %v848 = vunpack.c.h.b16 %v569
        %v849 = vunpack.c.l.b16 %v570
        %v850 = vunpack.c.h.b16 %v570
        %v851 = vunpack.c.l.b16 %v571
        %v852 = vunpack.c.h.b16 %v571
        %v853 = vunpack.c.l.b16 %v572
        %v854 = vunpack.c.h.b16 %v572
        %v855 = vunpack.c.l.b16 %v573
        %v856 = vunpack.c.h.b16 %v573
        %v857 = vunpack.c.l.b16 %v574
        %v858 = vunpack.c.h.b16 %v574
        %v859 = vunpack.c.l.b16 %v575
        %v860 = vunpack.c.h.b16 %v575
        %v861 = vunpack.c.l.b16 %v576
        %v862 = vunpack.c.h.b16 %v576
        %v863 = vunpack.c.l.b16 %v577
        %v864 = vunpack.c.h.b16 %v577
        %v865 = vunpack.c.l.b16 %v578
        %v866 = vunpack.c.h.b16 %v578
        %v867 = vpack.c.b16 %v681, %v675
        %v868 = vpack.c.b16 %v682, %v676
        %v869 = vpack.c.b16 %v683, %v677
        %v870 = vpack.c.b16 %v684, %v678
        %v871 = vpack.c.b16 %v685, %v679
        %v872 = vpack.c.b16 %v686, %v680
        %v873 = vpack.c.b16 %v693, %v687
        %v874 = vpack.c.b16 %v694, %v688
        %v875 = vpack.c.b16 %v695, %v689
        %v876 = vpack.c.b16 %v696, %v690
        %v877 = vpack.c.b16 %v697, %v691
        %v878 = vpack.c.b16 %v698, %v692
        %v879 = vpack.c.b16 %v705, %v699
        %v880 = vpack.c.b16 %v706, %v700
        %v881 = vpack.c.b16 %v707, %v701
        %v882 = vpack.c.b16 %v708, %v702
        %v883 = vpack.c.b16 %v709, %v703
        %v884 = vpack.c.b16 %v710, %v704
        %v885 = vpack.c.b16 %v717, %v711
        %v886 = vpack.c.b16 %v718, %v712
        %v887 = vpack.c.b16 %v719, %v713
        %v888 = vpack.c.b16 %v720, %v714
        %v889 = vpack.c.b16 %v721, %v715
        %v890 = vpack.c.b16 %v722, %v716
        %v891 = vpack.c.b16 %v729, %v723
        %v892 = vpack.c.b16 %v730, %v724
        %v893 = vpack.c.b16 %v731, %v725
        %v894 = vpack.c.b16 %v732, %v726
        %v895 = vpack.c.b16 %v733, %v727
        %v896 = vpack.c.b16 %v734, %v728
        %v897 = vpack.c.b16 %v741, %v735
        %v898 = vpack.c.b16 %v742, %v736
        %v899 = vpack.c.b16 %v743, %v737
        %v900 = vpack.c.b16 %v744, %v738
        %v901 = vpack.c.b16 %v745, %v739
        %v902 = vpack.c.b16 %v746, %v740
        %v903 = vpack.c.b16 %v753, %v747
        %v904 = vpack.c.b16 %v754, %v748
        %v905 = vpack.c.b16 %v755, %v749
        %v906 = vpack.c.b16 %v756, %v750
        %v907 = vpack.c.b16 %v757, %v751
        %v908 = vpack.c.b16 %v758, %v752
        %v909 = vpack.c.b16 %v765, %v759
        %v910 = vpack.c.b16 %v766, %v760
        %v911 = vpack.c.b16 %v767, %v761
        %v912 = vpack.c.b16 %v768, %v762
        %v913 = vpack.c.b16 %v769, %v763
        %v914 = vpack.c.b16 %v770, %v764
        %v915 = vpack.c.b16 %v777, %v771
        %v916 = vpack.c.b16 %v778, %v772
        %v917 = vpack.c.b16 %v779, %v773
        %v918 = vpack.c.b16 %v780, %v774
        %v919 = vpack.c.b16 %v781, %v775
        %v920 = vpack.c.b16 %v782, %v776
        %v921 = vpack.c.b16 %v789, %v783
        %v922 = vpack.c.b16 %v790, %v784
        %v923 = vpack.c.b16 %v791, %v785
        %v924 = vpack.c.b16 %v792, %v786
        %v925 = vpack.c.b16 %v793, %v787
        %v926 = vpack.c.b16 %v794, %v788
        %v927 = vpack.c.b16 %v801, %v795
        %v928 = vpack.c.b16 %v802, %v796
        %v929 = vpack.c.b16 %v803, %v797
        %v930 = vpack.c.b16 %v804, %v798
        %v931 = vpack.c.b16 %v805, %v799
        %v932 = vpack.c.b16 %v806, %v800
        %v933 = vpack.c.b16 %v813, %v807
        %v934 = vpack.c.b16 %v814, %v808
        %v935 = vpack.c.b16 %v815, %v809
        %v936 = vpack.c.b16 %v816, %v810
        %v937 = vpack.c.b16 %v817, %v811
        %v938 = vpack.c.b16 %v818, %v812
        %v939 = vpack.c.b16 %v825, %v819
        %v940 = vpack.c.b16 %v826, %v820
        %v941 = vpack.c.b16 %v827, %v821
        %v942 = vpack.c.b16 %v828, %v822
        %v943 = vpack.c.b16 %v829, %v823
        %v944 = vpack.c.b16 %v830, %v824
        %v945 = vpack.c.b16 %v837, %v831
        %v946 = vpack.c.b16 %v838, %v832
        %v947 = vpack.c.b16 %v839, %v833
        %v948 = vpack.c.b16 %v840, %v834
        %v949 = vpack.c.b16 %v841, %v835
        %v950 = vpack.c.b16 %v842, %v836
        %v951 = vpack.c.b16 %v849, %v843
        %v952 = vpack.c.b16 %v850, %v844
        %v953 = vpack.c.b16 %v851, %v845
        %v954 = vpack.c.b16 %v852, %v846
        %v955 = vpack.c.b16 %v853, %v847
        %v956 = vpack.c.b16 %v854, %v848
        %v957 = vpack.c.b16 %v861, %v855
        %v958 = vpack.c.b16 %v862, %v856
        %v959 = vpack.c.b16 %v863, %v857
        %v960 = vpack.c.b16 %v864, %v858
        %v961 = vpack.c.b16 %v865, %v859
        %v962 = vpack.c.b16 %v866, %v860
        %1059 = vmatprep.subr.bf16.mxu0 %v910
        %1060 = vmatpush1.bf16.msra.mxu0 %v909
        %1061 = vmatprep.subr.bf16.mxu0 %v904
        %1062 = vmatpush1.bf16.msra.mxu0 %v903
        %1063 = vmatprep.subr.bf16.mxu0 %v898
        %1064 = vmatpush1.bf16.msra.mxu0 %v897
        %1065 = vmatprep.subr.bf16.mxu0 %v892
        %1066 = vmatpush1.bf16.msra.mxu0 %v891
        %1067 = vmatprep.subr.bf16.mxu0 %v886
        %1068 = vmatpush1.bf16.msra.mxu0 %v885
        %1069 = vmatprep.subr.bf16.mxu0 %v880
        %1070 = vmatpush1.bf16.msra.mxu0 %v879
        %1071 = vmatprep.subr.bf16.mxu0 %v874
        %1072 = vmatpush1.bf16.msra.mxu0 %v873
        %1073 = vmatprep.subr.bf16.mxu0 %v868
        %1074 = vmatpush1.bf16.msra.mxu0 %v867
        %1075 = vmatprep.subr.bf16.mxu0 %v958
        %1076 = vmatpush2.bf16.msra.mxu0 %v957
        %1077 = vmatprep.subr.bf16.mxu0 %v952
        %1078 = vmatpush2.bf16.msra.mxu0 %v951
        %1079 = vmatprep.subr.bf16.mxu0 %v946
        %1080 = vmatpush2.bf16.msra.mxu0 %v945
        %1081 = vmatprep.subr.bf16.mxu0 %v940
        %1082 = vmatpush2.bf16.msra.mxu0 %v939
        %1083 = vmatprep.subr.bf16.mxu0 %v934
        %1084 = vmatpush2.bf16.msra.mxu0 %v933
        %1085 = vmatprep.subr.bf16.mxu0 %v928
        %1086 = vmatpush2.bf16.msra.mxu0 %v927
        %1087 = vmatprep.subr.bf16.mxu0 %v922
        %1088 = vmatpush2.bf16.msra.mxu0 %v921
        %1089 = vmatprep.subr.bf16.mxu0 %v916
        %1090 = vmatpush2.bf16.msra.mxu0 %v915
        %1091 = vmatprep.mubr.bf16.mxu0 %v482
        %1092 = vmatmul.mubr.bf16.gmra.mxu0 %v481
        %v1093 = vpop.f32.mrf.mxu0
        %v1094 = vadd.f32 0.0, %v1093
        %v1095 = vpop.f32.mrf.mxu0
        %v1096 = vadd.f32 0.0, %v1095
        %v1097 = vpop.f32.mrf.mxu0
        %v1098 = vadd.f32 0.0, %v1097
        %v1099 = vpop.f32.mrf.mxu0
        %v1100 = vadd.f32 0.0, %v1099
        %1101 = vdwg.mxu0
        %1102 = vmatprep.subr.bf16.mxu0 %v912
        %1103 = vmatpush1.bf16.msra.mxu0 %v911
        %1104 = vmatprep.subr.bf16.mxu0 %v906
        %1105 = vmatpush1.bf16.msra.mxu0 %v905
        %1106 = vmatprep.subr.bf16.mxu0 %v900
        %1107 = vmatpush1.bf16.msra.mxu0 %v899
        %1108 = vmatprep.subr.bf16.mxu0 %v894
        %1109 = vmatpush1.bf16.msra.mxu0 %v893
        %1110 = vmatprep.subr.bf16.mxu0 %v888
        %1111 = vmatpush1.bf16.msra.mxu0 %v887
        %1112 = vmatprep.subr.bf16.mxu0 %v882
        %1113 = vmatpush1.bf16.msra.mxu0 %v881
        %1114 = vmatprep.subr.bf16.mxu0 %v876
        %1115 = vmatpush1.bf16.msra.mxu0 %v875
        %1116 = vmatprep.subr.bf16.mxu0 %v870
        %1117 = vmatpush1.bf16.msra.mxu0 %v869
        %1118 = vmatprep.subr.bf16.mxu0 %v960
        %1119 = vmatpush2.bf16.msra.mxu0 %v959
        %1120 = vmatprep.subr.bf16.mxu0 %v954
        %1121 = vmatpush2.bf16.msra.mxu0 %v953
        %1122 = vmatprep.subr.bf16.mxu0 %v948
        %1123 = vmatpush2.bf16.msra.mxu0 %v947
        %1124 = vmatprep.subr.bf16.mxu0 %v942
        %1125 = vmatpush2.bf16.msra.mxu0 %v941
        %1126 = vmatprep.subr.bf16.mxu0 %v936
        %1127 = vmatpush2.bf16.msra.mxu0 %v935
        %1128 = vmatprep.subr.bf16.mxu0 %v930
        %1129 = vmatpush2.bf16.msra.mxu0 %v929
        %1130 = vmatprep.subr.bf16.mxu0 %v924
        %1131 = vmatpush2.bf16.msra.mxu0 %v923
        %1132 = vmatprep.subr.bf16.mxu0 %v918
        %1133 = vmatpush2.bf16.msra.mxu0 %v917
        %1134 = vmatprep.mubr.bf16.mxu0 %v482
        %1135 = vmatmul.mubr.bf16.gmra.mxu0 %v481
        %v1136 = vpop.f32.mrf.mxu0
        %v1137 = vadd.f32 0.0, %v1136
        %v1138 = vpop.f32.mrf.mxu0
        %v1139 = vadd.f32 0.0, %v1138
        %v1140 = vpop.f32.mrf.mxu0
        %v1141 = vadd.f32 0.0, %v1140
        %v1142 = vpop.f32.mrf.mxu0
        %v1143 = vadd.f32 0.0, %v1142
        %1144 = vdwg.mxu0
        %1145 = vmatprep.subr.bf16.mxu0 %v914
        %1146 = vmatpush1.bf16.msra.mxu0 %v913
        %1147 = vmatprep.subr.bf16.mxu0 %v908
        %1148 = vmatpush1.bf16.msra.mxu0 %v907
        %1149 = vmatprep.subr.bf16.mxu0 %v902
        %1150 = vmatpush1.bf16.msra.mxu0 %v901
        %1151 = vmatprep.subr.bf16.mxu0 %v896
        %1152 = vmatpush1.bf16.msra.mxu0 %v895
        %1153 = vmatprep.subr.bf16.mxu0 %v890
        %1154 = vmatpush1.bf16.msra.mxu0 %v889
        %1155 = vmatprep.subr.bf16.mxu0 %v884
        %1156 = vmatpush1.bf16.msra.mxu0 %v883
        %1157 = vmatprep.subr.bf16.mxu0 %v878
        %1158 = vmatpush1.bf16.msra.mxu0 %v877
        %1159 = vmatprep.subr.bf16.mxu0 %v872
        %1160 = vmatpush1.bf16.msra.mxu0 %v871
        %1161 = vmatprep.subr.bf16.mxu0 %v962
        %1162 = vmatpush2.bf16.msra.mxu0 %v961
        %1163 = vmatprep.subr.bf16.mxu0 %v956
        %1164 = vmatpush2.bf16.msra.mxu0 %v955
        %1165 = vmatprep.subr.bf16.mxu0 %v950
        %1166 = vmatpush2.bf16.msra.mxu0 %v949
        %1167 = vmatprep.subr.bf16.mxu0 %v944
        %1168 = vmatpush2.bf16.msra.mxu0 %v943
        %1169 = vmatprep.subr.bf16.mxu0 %v938
        %1170 = vmatpush2.bf16.msra.mxu0 %v937
        %1171 = vmatprep.subr.bf16.mxu0 %v932
        %1172 = vmatpush2.bf16.msra.mxu0 %v931
        %1173 = vmatprep.subr.bf16.mxu0 %v926
        %1174 = vmatpush2.bf16.msra.mxu0 %v925
        %1175 = vmatprep.subr.bf16.mxu0 %v920
        %1176 = vmatpush2.bf16.msra.mxu0 %v919
        %1177 = vmatprep.mubr.bf16.mxu0 %v482
        %1178 = vmatmul.mubr.bf16.gmra.mxu0 %v481
        %v1179 = vpop.f32.mrf.mxu0
        %v1180 = vadd.f32 0.0, %v1179
        %v1181 = vpop.f32.mrf.mxu0
        %v1182 = vadd.f32 0.0, %v1181
        %v1183 = vpop.f32.mrf.mxu0
        %v1184 = vadd.f32 0.0, %v1183
        %v1185 = vpop.f32.mrf.mxu0
        %v1186 = vadd.f32 0.0, %v1185
        %1187 = vdwg.mxu0
        %s1188 = sld [smem:[#allocation3]]
        %v1189 = vmul.f32 %v1094, %v1094
        %v1190 = vmul.f32 %v1096, %v1096
        %v1191 = vrot.slane %v1189, 4
        %v1192 = vadd.f32 %v1189, %v1191
        %v1193 = vrot.slane %v1192, 2
        %v1194 = vadd.f32 %v1192, %v1193
        %v1195 = vrot.slane %v1194, 1
        %v1196 = vadd.f32 %v1194, %v1195
        %v1197 = vrot.slane %v1190, 4
        %v1198 = vadd.f32 %v1190, %v1197
        %v1199 = vrot.slane %v1198, 2
        %v1200 = vadd.f32 %v1198, %v1199
        %v1201 = vrot.slane %v1200, 1
        %v1202 = vadd.f32 %v1200, %v1201
        %v1203 = vmax.f32 %v1196, 1e-24
        %v1204 = vmax.f32 %v1202, 1e-24
        %v1205 = vrsqrt.pop %v1203
        %v1206 = vrsqrt.pop %v1204
        %v1207 = vstv %s1188
        %v1208 = vmul.f32 %v1207, %v1205
        %v1209 = vmul.f32 %v1207, %v1206
        %v1210 = vmul.f32 %v1137, %v1137
        %v1211 = vmul.f32 %v1139, %v1139
        %v1212 = vrot.slane %v1210, 4
        %v1213 = vadd.f32 %v1210, %v1212
        %v1214 = vrot.slane %v1213, 2
        %v1215 = vadd.f32 %v1213, %v1214
        %v1216 = vrot.slane %v1215, 1
        %v1217 = vadd.f32 %v1215, %v1216
        %v1218 = vrot.slane %v1211, 4
        %v1219 = vadd.f32 %v1211, %v1218
        %v1220 = vrot.slane %v1219, 2
        %v1221 = vadd.f32 %v1219, %v1220
        %v1222 = vrot.slane %v1221, 1
        %v1223 = vadd.f32 %v1221, %v1222
        %v1224 = vmax.f32 %v1217, 1e-24
        %v1225 = vmax.f32 %v1223, 1e-24
        %v1226 = vrsqrt.pop %v1224
        %v1227 = vrsqrt.pop %v1225
        %v1228 = vmul.f32 %v1094, %v1208
        %v1229 = vmul.f32 %v1096, %v1209
        %v1230 = vpack.c.bf16 %v1228, %v1228
        %v1231 = vpack.c.bf16 %v1229, %v1229
        %v1232 = vmul.f32 %v1137, %v1226
        %v1233 = vmul.f32 %v1139, %v1227
        %v1234 = vpack.c.bf16 %v1232, %v1232
        %v1235 = vpack.c.bf16 %v1233, %v1233
        %v1236 = vpack.c.bf16 %v1180, %v1180
        %v1237 = vpack.c.bf16 %v1182, %v1182
        %1238 = vxpose.xlu0.c.b16.start [1/8] %v1230, 128
        %1239 = vxpose.xlu0.c.b16.cont [2/8] 0, 128
        %1240 = vxpose.xlu0.c.b16.cont [3/8] 0, 128
        %1241 = vxpose.xlu0.c.b16.cont [4/8] 0, 128
        %1242 = vxpose.xlu0.c.b16.cont [5/8] 0, 128
        %1243 = vxpose.xlu0.c.b16.cont [6/8] 0, 128
        %1244 = vxpose.xlu0.c.b16.cont [7/8] 0, 128
        %1245 = vxpose.xlu0.c.b16.end [8/8] 0, 128
        %v1246 = vpop.trf.xlu0
        %v1247 = vpop.trf.xlu0
        %v1248 = vpop.trf.xlu0
        %v1249 = vpop.trf.xlu0
        %v1250 = vpop.trf.xlu0
        %v1251 = vpop.trf.xlu0
        %v1252 = vpop.trf.xlu0
        %v1253 = vpop.trf.xlu0
        %1254 = vxpose.xlu0.c.b16.start [1/8] %v1231, 128
        %1255 = vxpose.xlu0.c.b16.cont [2/8] 0, 128
        %1256 = vxpose.xlu0.c.b16.cont [3/8] 0, 128
        %1257 = vxpose.xlu0.c.b16.cont [4/8] 0, 128
        %1258 = vxpose.xlu0.c.b16.cont [5/8] 0, 128
        %1259 = vxpose.xlu0.c.b16.cont [6/8] 0, 128
        %1260 = vxpose.xlu0.c.b16.cont [7/8] 0, 128
        %1261 = vxpose.xlu0.c.b16.end [8/8] 0, 128
        %v1262 = vpop.trf.xlu0
        %v1263 = vpop.trf.xlu0
        %v1264 = vpop.trf.xlu0
        %v1265 = vpop.trf.xlu0
        %v1266 = vpop.trf.xlu0
        %v1267 = vpop.trf.xlu0
        %v1268 = vpop.trf.xlu0
        %v1269 = vpop.trf.xlu0
        %vm1270 = vcmask 64512
        %v1272 = vsel %vm1270, %v1246, 0
        %v1275 = vsel %vm1270, %v1247, 0
        %v1278 = vsel %vm1270, %v1248, 0
        %v1281 = vsel %vm1270, %v1249, 0
        %v1284 = vsel %vm1270, %v1250, 0
        %v1287 = vsel %vm1270, %v1251, 0
        %v1290 = vsel %vm1270, %v1252, 0
        %v1293 = vsel %vm1270, %v1253, 0
        %v1296 = vsel %vm1270, %v1262, 0
        %v1299 = vsel %vm1270, %v1263, 0
        %v1302 = vsel %vm1270, %v1264, 0
        %v1305 = vsel %vm1270, %v1265, 0
        %v1308 = vsel %vm1270, %v1266, 0
        %v1311 = vsel %vm1270, %v1267, 0
        %v1314 = vsel %vm1270, %v1268, 0
        %v1317 = vsel %vm1270, %v1269, 0
        %vm1319 = vcmask 1043456
        %v1321 = vsel %vm1319, %v1234, 0
        %v1324 = vsel %vm1319, %v1235, 0
        %1326 = vmatprep.subr.bf16.mxu0 0
        %1327 = vmatpush1.bf16.msra.mxu0 0
        %1328 = vmatprep.subr.bf16.mxu0 0
        %1329 = vmatpush1.bf16.msra.mxu0 0
        %1330 = vmatprep.subr.bf16.mxu0 0
        %1331 = vmatpush1.bf16.msra.mxu0 0
        %1332 = vmatprep.subr.bf16.mxu0 0
        %1333 = vmatpush1.bf16.msra.mxu0 0
        %1334 = vmatprep.subr.bf16.mxu0 0
        %1335 = vmatpush1.bf16.msra.mxu0 0
        %1336 = vmatprep.subr.bf16.mxu0 0
        %1337 = vmatpush1.bf16.msra.mxu0 0
        %1338 = vmatprep.subr.bf16.mxu0 0
        %1339 = vmatpush1.bf16.msra.mxu0 0
        %1340 = vmatprep.subr.bf16.mxu0 %v1324
        %1341 = vmatpush1.bf16.msra.mxu0 %v1321
        %1342 = vmatprep.subr.bf16.mxu0 0
        %1343 = vmatpush2.bf16.msra.mxu0 0
        %1344 = vmatprep.subr.bf16.mxu0 0
        %1345 = vmatpush2.bf16.msra.mxu0 0
        %1346 = vmatprep.subr.bf16.mxu0 0
        %1347 = vmatpush2.bf16.msra.mxu0 0
        %1348 = vmatprep.subr.bf16.mxu0 0
        %1349 = vmatpush2.bf16.msra.mxu0 0
        %1350 = vmatprep.subr.bf16.mxu0 0
        %1351 = vmatpush2.bf16.msra.mxu0 0
        %1352 = vmatprep.subr.bf16.mxu0 0
        %1353 = vmatpush2.bf16.msra.mxu0 0
        %1354 = vmatprep.subr.bf16.mxu0 0
        %1355 = vmatpush2.bf16.msra.mxu0 0
        %1356 = vmatprep.subr.bf16.mxu0 0
        %1357 = vmatpush2.bf16.msra.mxu0 0
        %1358 = vmatprep.mubr.bf16.mxu0 0
        %1359 = vmatmul.mubr.bf16.gmra.mxu0 %v1272
        %v1360 = vpop.f32.mrf.mxu0
        %v1361 = vadd.f32 0.0, %v1360
        %v1362 = vpop.f32.mrf.mxu0
        %v1363 = vadd.f32 0.0, %v1362
        %v1364 = vpop.f32.mrf.mxu0
        %v1365 = vadd.f32 0.0, %v1364
        %v1366 = vpop.f32.mrf.mxu0
        %v1367 = vadd.f32 0.0, %v1366
        %1368 = vmatprep.mubr.bf16.mxu0 0
        %1369 = vmatmul.mubr.bf16.gmra.mxu0 %v1275
        %v1370 = vpop.f32.mrf.mxu0
        %v1371 = vadd.f32 0.0, %v1370
        %v1372 = vpop.f32.mrf.mxu0
        %v1373 = vadd.f32 0.0, %v1372
        %v1374 = vpop.f32.mrf.mxu0
        %v1375 = vadd.f32 0.0, %v1374
        %v1376 = vpop.f32.mrf.mxu0
        %v1377 = vadd.f32 0.0, %v1376
        %1378 = vmatprep.mubr.bf16.mxu0 0
        %1379 = vmatmul.mubr.bf16.gmra.mxu0 %v1278
        %v1380 = vpop.f32.mrf.mxu0
        %v1381 = vadd.f32 0.0, %v1380
        %v1382 = vpop.f32.mrf.mxu0
        %v1383 = vadd.f32 0.0, %v1382
        %v1384 = vpop.f32.mrf.mxu0
        %v1385 = vadd.f32 0.0, %v1384
        %v1386 = vpop.f32.mrf.mxu0
        %v1387 = vadd.f32 0.0, %v1386
        %1388 = vmatprep.mubr.bf16.mxu0 0
        %1389 = vmatmul.mubr.bf16.gmra.mxu0 %v1281
        %v1390 = vpop.f32.mrf.mxu0
        %v1391 = vadd.f32 0.0, %v1390
        %v1392 = vpop.f32.mrf.mxu0
        %v1393 = vadd.f32 0.0, %v1392
        %v1394 = vpop.f32.mrf.mxu0
        %v1395 = vadd.f32 0.0, %v1394
        %v1396 = vpop.f32.mrf.mxu0
        %v1397 = vadd.f32 0.0, %v1396
        %1398 = vmatprep.mubr.bf16.mxu0 0
        %1399 = vmatmul.mubr.bf16.gmra.mxu0 %v1284
        %v1400 = vpop.f32.mrf.mxu0
        %v1401 = vadd.f32 0.0, %v1400
        %v1402 = vpop.f32.mrf.mxu0
        %v1403 = vadd.f32 0.0, %v1402
        %v1404 = vpop.f32.mrf.mxu0
        %v1405 = vadd.f32 0.0, %v1404
        %v1406 = vpop.f32.mrf.mxu0
        %v1407 = vadd.f32 0.0, %v1406
        %1408 = vmatprep.mubr.bf16.mxu0 0
        %1409 = vmatmul.mubr.bf16.gmra.mxu0 %v1287
        %v1410 = vpop.f32.mrf.mxu0
        %v1411 = vadd.f32 0.0, %v1410
        %v1412 = vpop.f32.mrf.mxu0
        %v1413 = vadd.f32 0.0, %v1412
        %v1414 = vpop.f32.mrf.mxu0
        %v1415 = vadd.f32 0.0, %v1414
        %v1416 = vpop.f32.mrf.mxu0
        %v1417 = vadd.f32 0.0, %v1416
        %1418 = vmatprep.mubr.bf16.mxu0 0
        %1419 = vmatmul.mubr.bf16.gmra.mxu0 %v1290
        %v1420 = vpop.f32.mrf.mxu0
        %v1421 = vadd.f32 0.0, %v1420
        %v1422 = vpop.f32.mrf.mxu0
        %v1423 = vadd.f32 0.0, %v1422
        %v1424 = vpop.f32.mrf.mxu0
        %v1425 = vadd.f32 0.0, %v1424
        %v1426 = vpop.f32.mrf.mxu0
        %v1427 = vadd.f32 0.0, %v1426
        %1428 = vmatprep.mubr.bf16.mxu0 0
        %1429 = vmatmul.mubr.bf16.gmra.mxu0 %v1293
        %v1430 = vpop.f32.mrf.mxu0
        %v1431 = vadd.f32 0.0, %v1430
        %v1432 = vpop.f32.mrf.mxu0
        %v1433 = vadd.f32 0.0, %v1432
        %v1434 = vpop.f32.mrf.mxu0
        %v1435 = vadd.f32 0.0, %v1434
        %v1436 = vpop.f32.mrf.mxu0
        %v1437 = vadd.f32 0.0, %v1436
        %1438 = vmatprep.mubr.bf16.mxu0 0
        %1439 = vmatmul.mubr.bf16.gmra.mxu0 %v1296
        %v1440 = vpop.f32.mrf.mxu0
        %v1441 = vadd.f32 0.0, %v1440
        %v1442 = vpop.f32.mrf.mxu0
        %v1443 = vadd.f32 0.0, %v1442
        %v1444 = vpop.f32.mrf.mxu0
        %v1445 = vadd.f32 0.0, %v1444
        %v1446 = vpop.f32.mrf.mxu0
        %v1447 = vadd.f32 0.0, %v1446
        %1448 = vmatprep.mubr.bf16.mxu0 0
        %1449 = vmatmul.mubr.bf16.gmra.mxu0 %v1299
        %v1450 = vpop.f32.mrf.mxu0
        %v1451 = vadd.f32 0.0, %v1450
        %v1452 = vpop.f32.mrf.mxu0
        %v1453 = vadd.f32 0.0, %v1452
        %v1454 = vpop.f32.mrf.mxu0
        %v1455 = vadd.f32 0.0, %v1454
        %v1456 = vpop.f32.mrf.mxu0
        %v1457 = vadd.f32 0.0, %v1456
        %1458 = vmatprep.mubr.bf16.mxu0 0
        %1459 = vmatmul.mubr.bf16.gmra.mxu0 %v1302
        %v1460 = vpop.f32.mrf.mxu0
        %v1461 = vadd.f32 0.0, %v1460
        %v1462 = vpop.f32.mrf.mxu0
        %v1463 = vadd.f32 0.0, %v1462
        %v1464 = vpop.f32.mrf.mxu0
        %v1465 = vadd.f32 0.0, %v1464
        %v1466 = vpop.f32.mrf.mxu0
        %v1467 = vadd.f32 0.0, %v1466
        %1468 = vmatprep.mubr.bf16.mxu0 0
        %1469 = vmatmul.mubr.bf16.gmra.mxu0 %v1305
        %v1470 = vpop.f32.mrf.mxu0
        %v1471 = vadd.f32 0.0, %v1470
        %v1472 = vpop.f32.mrf.mxu0
        %v1473 = vadd.f32 0.0, %v1472
        %v1474 = vpop.f32.mrf.mxu0
        %v1475 = vadd.f32 0.0, %v1474
        %v1476 = vpop.f32.mrf.mxu0
        %v1477 = vadd.f32 0.0, %v1476
        %1478 = vmatprep.mubr.bf16.mxu0 0
        %1479 = vmatmul.mubr.bf16.gmra.mxu0 %v1308
        %v1480 = vpop.f32.mrf.mxu0
        %v1481 = vadd.f32 0.0, %v1480
        %v1482 = vpop.f32.mrf.mxu0
        %v1483 = vadd.f32 0.0, %v1482
        %v1484 = vpop.f32.mrf.mxu0
        %v1485 = vadd.f32 0.0, %v1484
        %v1486 = vpop.f32.mrf.mxu0
        %v1487 = vadd.f32 0.0, %v1486
        %1488 = vmatprep.mubr.bf16.mxu0 0
        %1489 = vmatmul.mubr.bf16.gmra.mxu0 %v1311
        %v1490 = vpop.f32.mrf.mxu0
        %v1491 = vadd.f32 0.0, %v1490
        %v1492 = vpop.f32.mrf.mxu0
        %v1493 = vadd.f32 0.0, %v1492
        %v1494 = vpop.f32.mrf.mxu0
        %v1495 = vadd.f32 0.0, %v1494
        %v1496 = vpop.f32.mrf.mxu0
        %v1497 = vadd.f32 0.0, %v1496
        %1498 = vmatprep.mubr.bf16.mxu0 0
        %1499 = vmatmul.mubr.bf16.gmra.mxu0 %v1314
        %v1500 = vpop.f32.mrf.mxu0
        %v1501 = vadd.f32 0.0, %v1500
        %v1502 = vpop.f32.mrf.mxu0
        %v1503 = vadd.f32 0.0, %v1502
        %v1504 = vpop.f32.mrf.mxu0
        %v1505 = vadd.f32 0.0, %v1504
        %v1506 = vpop.f32.mrf.mxu0
        %v1507 = vadd.f32 0.0, %v1506
        %1508 = vmatprep.mubr.bf16.mxu0 0
        %1509 = vmatmul.mubr.bf16.gmra.mxu0 %v1317
        %v1510 = vpop.f32.mrf.mxu0
        %v1511 = vadd.f32 0.0, %v1510
        %v1512 = vpop.f32.mrf.mxu0
        %v1513 = vadd.f32 0.0, %v1512
        %v1514 = vpop.f32.mrf.mxu0
        %v1515 = vadd.f32 0.0, %v1514
        %v1516 = vpop.f32.mrf.mxu0
        %v1517 = vadd.f32 0.0, %v1516
        %1518 = vdwg.mxu0
        %v1519 = vmax.f32 %v1361, %v1363
        %1520 = vmax.xlane.f32.xlu0 %v1519
        %v1521 = vpop.xlane.xlu0 %1520
        %v1522 = vmax.f32 %v1365, %v1367
        %1523 = vmax.xlane.f32.xlu0 %v1522
        %v1524 = vpop.xlane.xlu0 %1523
        %v1525 = vmax.f32 %v1371, %v1373
        %1526 = vmax.xlane.f32.xlu0 %v1525
        %v1527 = vpop.xlane.xlu0 %1526
        %v1528 = vmax.f32 %v1375, %v1377
        %1529 = vmax.xlane.f32.xlu0 %v1528
        %v1530 = vpop.xlane.xlu0 %1529
        %v1531 = vmax.f32 %v1381, %v1383
        %1532 = vmax.xlane.f32.xlu0 %v1531
        %v1533 = vpop.xlane.xlu0 %1532
        %v1534 = vmax.f32 %v1385, %v1387
        %1535 = vmax.xlane.f32.xlu0 %v1534
        %v1536 = vpop.xlane.xlu0 %1535
        %v1537 = vmax.f32 %v1391, %v1393
        %1538 = vmax.xlane.f32.xlu0 %v1537
        %v1539 = vpop.xlane.xlu0 %1538
        %v1540 = vmax.f32 %v1395, %v1397
        %1541 = vmax.xlane.f32.xlu0 %v1540
        %v1542 = vpop.xlane.xlu0 %1541
        %v1543 = vmax.f32 %v1401, %v1403
        %1544 = vmax.xlane.f32.xlu0 %v1543
        %v1545 = vpop.xlane.xlu0 %1544
        %v1546 = vmax.f32 %v1405, %v1407
        %1547 = vmax.xlane.f32.xlu0 %v1546
        %v1548 = vpop.xlane.xlu0 %1547
        %v1549 = vmax.f32 %v1411, %v1413
        %1550 = vmax.xlane.f32.xlu0 %v1549
        %v1551 = vpop.xlane.xlu0 %1550
        %v1552 = vmax.f32 %v1415, %v1417
        %1553 = vmax.xlane.f32.xlu0 %v1552
        %v1554 = vpop.xlane.xlu0 %1553
        %v1555 = vmax.f32 %v1421, %v1423
        %1556 = vmax.xlane.f32.xlu0 %v1555
        %v1557 = vpop.xlane.xlu0 %1556
        %v1558 = vmax.f32 %v1425, %v1427
        %1559 = vmax.xlane.f32.xlu0 %v1558
        %v1560 = vpop.xlane.xlu0 %1559
        %v1561 = vmax.f32 %v1431, %v1433
        %1562 = vmax.xlane.f32.xlu0 %v1561
        %v1563 = vpop.xlane.xlu0 %1562
        %v1564 = vmax.f32 %v1435, %v1437
        %1565 = vmax.xlane.f32.xlu0 %v1564
        %v1566 = vpop.xlane.xlu0 %1565
        %v1567 = vmax.f32 %v1441, %v1443
        %1568 = vmax.xlane.f32.xlu0 %v1567
        %v1569 = vpop.xlane.xlu0 %1568
        %v1570 = vmax.f32 %v1445, %v1447
        %1571 = vmax.xlane.f32.xlu0 %v1570
        %v1572 = vpop.xlane.xlu0 %1571
        %v1573 = vmax.f32 %v1451, %v1453
        %1574 = vmax.xlane.f32.xlu0 %v1573
        %v1575 = vpop.xlane.xlu0 %1574
        %v1576 = vmax.f32 %v1455, %v1457
        %1577 = vmax.xlane.f32.xlu0 %v1576
        %v1578 = vpop.xlane.xlu0 %1577
        %v1579 = vmax.f32 %v1461, %v1463
        %1580 = vmax.xlane.f32.xlu0 %v1579
        %v1581 = vpop.xlane.xlu0 %1580
        %v1582 = vmax.f32 %v1465, %v1467
        %1583 = vmax.xlane.f32.xlu0 %v1582
        %v1584 = vpop.xlane.xlu0 %1583
        %v1585 = vmax.f32 %v1471, %v1473
        %1586 = vmax.xlane.f32.xlu0 %v1585
        %v1587 = vpop.xlane.xlu0 %1586
        %v1588 = vmax.f32 %v1475, %v1477
        %1589 = vmax.xlane.f32.xlu0 %v1588
        %v1590 = vpop.xlane.xlu0 %1589
        %v1591 = vmax.f32 %v1481, %v1483
        %1592 = vmax.xlane.f32.xlu0 %v1591
        %v1593 = vpop.xlane.xlu0 %1592
        %v1594 = vmax.f32 %v1485, %v1487
        %1595 = vmax.xlane.f32.xlu0 %v1594
        %v1596 = vpop.xlane.xlu0 %1595
        %v1597 = vmax.f32 %v1491, %v1493
        %1598 = vmax.xlane.f32.xlu0 %v1597
        %v1599 = vpop.xlane.xlu0 %1598
        %v1600 = vmax.f32 %v1495, %v1497
        %1601 = vmax.xlane.f32.xlu0 %v1600
        %v1602 = vpop.xlane.xlu0 %1601
        %v1603 = vmax.f32 %v1501, %v1503
        %1604 = vmax.xlane.f32.xlu0 %v1603
        %v1605 = vpop.xlane.xlu0 %1604
        %v1606 = vmax.f32 %v1505, %v1507
        %1607 = vmax.xlane.f32.xlu0 %v1606
        %v1608 = vpop.xlane.xlu0 %1607
        %v1609 = vmax.f32 %v1511, %v1513
        %1610 = vmax.xlane.f32.xlu0 %v1609
        %v1611 = vpop.xlane.xlu0 %1610
        %v1612 = vmax.f32 %v1515, %v1517
        %1613 = vmax.xlane.f32.xlu0 %v1612
        %v1614 = vpop.xlane.xlu0 %1613
        %v1615 = vsub.f32 %v1361, %v1521
        %v1616 = vsub.f32 %v1363, %v1521
        %v1617 = vsub.f32 %v1365, %v1524
        %v1618 = vsub.f32 %v1367, %v1524
        %v1619 = vsub.f32 %v1371, %v1527
        %v1620 = vsub.f32 %v1373, %v1527
        %v1621 = vsub.f32 %v1375, %v1530
        %v1622 = vsub.f32 %v1377, %v1530
        %v1623 = vsub.f32 %v1381, %v1533
        %v1624 = vsub.f32 %v1383, %v1533
        %v1625 = vsub.f32 %v1385, %v1536
        %v1626 = vsub.f32 %v1387, %v1536
        %v1627 = vsub.f32 %v1391, %v1539
        %v1628 = vsub.f32 %v1393, %v1539
        %v1629 = vsub.f32 %v1395, %v1542
        %v1630 = vsub.f32 %v1397, %v1542
        %v1631 = vsub.f32 %v1401, %v1545
        %v1632 = vsub.f32 %v1403, %v1545
        %v1633 = vsub.f32 %v1405, %v1548
        %v1634 = vsub.f32 %v1407, %v1548
        %v1635 = vsub.f32 %v1411, %v1551
        %v1636 = vsub.f32 %v1413, %v1551
        %v1637 = vsub.f32 %v1415, %v1554
        %v1638 = vsub.f32 %v1417, %v1554
        %v1639 = vsub.f32 %v1421, %v1557
        %v1640 = vsub.f32 %v1423, %v1557
        %v1641 = vsub.f32 %v1425, %v1560
        %v1642 = vsub.f32 %v1427, %v1560
        %v1643 = vsub.f32 %v1431, %v1563
        %v1644 = vsub.f32 %v1433, %v1563
        %v1645 = vsub.f32 %v1435, %v1566
        %v1646 = vsub.f32 %v1437, %v1566
        %v1647 = vsub.f32 %v1441, %v1569
        %v1648 = vsub.f32 %v1443, %v1569
        %v1649 = vsub.f32 %v1445, %v1572
        %v1650 = vsub.f32 %v1447, %v1572
        %v1651 = vsub.f32 %v1451, %v1575
        %v1652 = vsub.f32 %v1453, %v1575
        %v1653 = vsub.f32 %v1455, %v1578
        %v1654 = vsub.f32 %v1457, %v1578
        %v1655 = vsub.f32 %v1461, %v1581
        %v1656 = vsub.f32 %v1463, %v1581
        %v1657 = vsub.f32 %v1465, %v1584
        %v1658 = vsub.f32 %v1467, %v1584
        %v1659 = vsub.f32 %v1471, %v1587
        %v1660 = vsub.f32 %v1473, %v1587
        %v1661 = vsub.f32 %v1475, %v1590
        %v1662 = vsub.f32 %v1477, %v1590
        %v1663 = vsub.f32 %v1481, %v1593
        %v1664 = vsub.f32 %v1483, %v1593
        %v1665 = vsub.f32 %v1485, %v1596
        %v1666 = vsub.f32 %v1487, %v1596
        %v1667 = vsub.f32 %v1491, %v1599
        %v1668 = vsub.f32 %v1493, %v1599
        %v1669 = vsub.f32 %v1495, %v1602
        %v1670 = vsub.f32 %v1497, %v1602
        %v1671 = vsub.f32 %v1501, %v1605
        %v1672 = vsub.f32 %v1503, %v1605
        %v1673 = vsub.f32 %v1505, %v1608
        %v1674 = vsub.f32 %v1507, %v1608
        %v1675 = vsub.f32 %v1511, %v1611
        %v1676 = vsub.f32 %v1513, %v1611
        %v1677 = vsub.f32 %v1515, %v1614
        %v1678 = vsub.f32 %v1517, %v1614
        %v1679 = vmul.f32 %v1615, 1.442695
        %v1680 = vpow.pop %v1679
        %v1681 = vmul.f32 %v1616, 1.442695
        %v1682 = vpow.pop %v1681
        %v1683 = vmul.f32 %v1617, 1.442695
        %v1684 = vpow.pop %v1683
        %v1685 = vmul.f32 %v1618, 1.442695
        %v1686 = vpow.pop %v1685
        %v1687 = vmul.f32 %v1619, 1.442695
        %v1688 = vpow.pop %v1687
        %v1689 = vmul.f32 %v1620, 1.442695
        %v1690 = vpow.pop %v1689
        %v1691 = vmul.f32 %v1621, 1.442695
        %v1692 = vpow.pop %v1691
        %v1693 = vmul.f32 %v1622, 1.442695
        %v1694 = vpow.pop %v1693
        %v1695 = vmul.f32 %v1623, 1.442695
        %v1696 = vpow.pop %v1695
        %v1697 = vmul.f32 %v1624, 1.442695
        %v1698 = vpow.pop %v1697
        %v1699 = vmul.f32 %v1625, 1.442695
        %v1700 = vpow.pop %v1699
        %v1701 = vmul.f32 %v1626, 1.442695
        %v1702 = vpow.pop %v1701
        %v1703 = vmul.f32 %v1627, 1.442695
        %v1704 = vpow.pop %v1703
        %v1705 = vmul.f32 %v1628, 1.442695
        %v1706 = vpow.pop %v1705
        %v1707 = vmul.f32 %v1629, 1.442695
        %v1708 = vpow.pop %v1707
        %v1709 = vmul.f32 %v1630, 1.442695
        %v1710 = vpow.pop %v1709
        %v1711 = vmul.f32 %v1631, 1.442695
        %v1712 = vpow.pop %v1711
        %v1713 = vmul.f32 %v1632, 1.442695
        %v1714 = vpow.pop %v1713
        %v1715 = vmul.f32 %v1633, 1.442695
        %v1716 = vpow.pop %v1715
        %v1717 = vmul.f32 %v1634, 1.442695
        %v1718 = vpow.pop %v1717
        %v1719 = vmul.f32 %v1635, 1.442695
        %v1720 = vpow.pop %v1719
        %v1721 = vmul.f32 %v1636, 1.442695
        %v1722 = vpow.pop %v1721
        %v1723 = vmul.f32 %v1637, 1.442695
        %v1724 = vpow.pop %v1723
        %v1725 = vmul.f32 %v1638, 1.442695
        %v1726 = vpow.pop %v1725
        %v1727 = vmul.f32 %v1639, 1.442695
        %v1728 = vpow.pop %v1727
        %v1729 = vmul.f32 %v1640, 1.442695
        %v1730 = vpow.pop %v1729
        %v1731 = vmul.f32 %v1641, 1.442695
        %v1732 = vpow.pop %v1731
        %v1733 = vmul.f32 %v1642, 1.442695
        %v1734 = vpow.pop %v1733
        %v1735 = vmul.f32 %v1643, 1.442695
        %v1736 = vpow.pop %v1735
        %v1737 = vmul.f32 %v1644, 1.442695
        %v1738 = vpow.pop %v1737
        %v1739 = vmul.f32 %v1645, 1.442695
        %v1740 = vpow.pop %v1739
        %v1741 = vmul.f32 %v1646, 1.442695
        %v1742 = vpow.pop %v1741
        %v1743 = vmul.f32 %v1647, 1.442695
        %v1744 = vpow.pop %v1743
        %v1745 = vmul.f32 %v1648, 1.442695
        %v1746 = vpow.pop %v1745
        %v1747 = vmul.f32 %v1649, 1.442695
        %v1748 = vpow.pop %v1747
        %v1749 = vmul.f32 %v1650, 1.442695
        %v1750 = vpow.pop %v1749
        %v1751 = vmul.f32 %v1651, 1.442695
        %v1752 = vpow.pop %v1751
        %v1753 = vmul.f32 %v1652, 1.442695
        %v1754 = vpow.pop %v1753
        %v1755 = vmul.f32 %v1653, 1.442695
        %v1756 = vpow.pop %v1755
        %v1757 = vmul.f32 %v1654, 1.442695
        %v1758 = vpow.pop %v1757
        %v1759 = vmul.f32 %v1655, 1.442695
        %v1760 = vpow.pop %v1759
        %v1761 = vmul.f32 %v1656, 1.442695
        %v1762 = vpow.pop %v1761
        %v1763 = vmul.f32 %v1657, 1.442695
        %v1764 = vpow.pop %v1763
        %v1765 = vmul.f32 %v1658, 1.442695
        %v1766 = vpow.pop %v1765
        %v1767 = vmul.f32 %v1659, 1.442695
        %v1768 = vpow.pop %v1767
        %v1769 = vmul.f32 %v1660, 1.442695
        %v1770 = vpow.pop %v1769
        %v1771 = vmul.f32 %v1661, 1.442695
        %v1772 = vpow.pop %v1771
        %v1773 = vmul.f32 %v1662, 1.442695
        %v1774 = vpow.pop %v1773
        %v1775 = vmul.f32 %v1663, 1.442695
        %v1776 = vpow.pop %v1775
        %v1777 = vmul.f32 %v1664, 1.442695
        %v1778 = vpow.pop %v1777
        %v1779 = vmul.f32 %v1665, 1.442695
        %v1780 = vpow.pop %v1779
        %v1781 = vmul.f32 %v1666, 1.442695
        %v1782 = vpow.pop %v1781
        %v1783 = vmul.f32 %v1667, 1.442695
        %v1784 = vpow.pop %v1783
        %v1785 = vmul.f32 %v1668, 1.442695
        %v1786 = vpow.pop %v1785
        %v1787 = vmul.f32 %v1669, 1.442695
        %v1788 = vpow.pop %v1787
        %v1789 = vmul.f32 %v1670, 1.442695
        %v1790 = vpow.pop %v1789
        %v1791 = vmul.f32 %v1671, 1.442695
        %v1792 = vpow.pop %v1791
        %v1793 = vmul.f32 %v1672, 1.442695
        %v1794 = vpow.pop %v1793
        %v1795 = vmul.f32 %v1673, 1.442695
        %v1796 = vpow.pop %v1795
        %v1797 = vmul.f32 %v1674, 1.442695
        %v1798 = vpow.pop %v1797
        %v1799 = vmul.f32 %v1675, 1.442695
        %v1800 = vpow.pop %v1799
        %v1801 = vmul.f32 %v1676, 1.442695
        %v1802 = vpow.pop %v1801
        %v1803 = vmul.f32 %v1677, 1.442695
        %v1804 = vpow.pop %v1803
        %v1805 = vmul.f32 %v1678, 1.442695
        %v1806 = vpow.pop %v1805
        %v1807 = vadd.f32 %v1680, %v1682
        %1808 = vadd.xlane.f32.xlu0 %v1807
        %v1809 = vpop.xlane.xlu0 %1808
        %v1810 = vadd.f32 %v1684, %v1686
        %1811 = vadd.xlane.f32.xlu0 %v1810
        %v1812 = vpop.xlane.xlu0 %1811
        %v1813 = vadd.f32 %v1688, %v1690
        %1814 = vadd.xlane.f32.xlu0 %v1813
        %v1815 = vpop.xlane.xlu0 %1814
        %v1816 = vadd.f32 %v1692, %v1694
        %1817 = vadd.xlane.f32.xlu0 %v1816
        %v1818 = vpop.xlane.xlu0 %1817
        %v1819 = vadd.f32 %v1696, %v1698
        %1820 = vadd.xlane.f32.xlu0 %v1819
        %v1821 = vpop.xlane.xlu0 %1820
        %v1822 = vadd.f32 %v1700, %v1702
        %1823 = vadd.xlane.f32.xlu0 %v1822
        %v1824 = vpop.xlane.xlu0 %1823
        %v1825 = vadd.f32 %v1704, %v1706
        %1826 = vadd.xlane.f32.xlu0 %v1825
        %v1827 = vpop.xlane.xlu0 %1826
        %v1828 = vadd.f32 %v1708, %v1710
        %1829 = vadd.xlane.f32.xlu0 %v1828
        %v1830 = vpop.xlane.xlu0 %1829
        %v1831 = vadd.f32 %v1712, %v1714
        %1832 = vadd.xlane.f32.xlu0 %v1831
        %v1833 = vpop.xlane.xlu0 %1832
        %v1834 = vadd.f32 %v1716, %v1718
        %1835 = vadd.xlane.f32.xlu0 %v1834
        %v1836 = vpop.xlane.xlu0 %1835
        %v1837 = vadd.f32 %v1720, %v1722
        %1838 = vadd.xlane.f32.xlu0 %v1837
        %v1839 = vpop.xlane.xlu0 %1838
        %v1840 = vadd.f32 %v1724, %v1726
        %1841 = vadd.xlane.f32.xlu0 %v1840
        %v1842 = vpop.xlane.xlu0 %1841
        %v1843 = vadd.f32 %v1728, %v1730
        %1844 = vadd.xlane.f32.xlu0 %v1843
        %v1845 = vpop.xlane.xlu0 %1844
        %v1846 = vadd.f32 %v1732, %v1734
        %1847 = vadd.xlane.f32.xlu0 %v1846
        %v1848 = vpop.xlane.xlu0 %1847
        %v1849 = vadd.f32 %v1736, %v1738
        %1850 = vadd.xlane.f32.xlu0 %v1849
        %v1851 = vpop.xlane.xlu0 %1850
        %v1852 = vadd.f32 %v1740, %v1742
        %1853 = vadd.xlane.f32.xlu0 %v1852
        %v1854 = vpop.xlane.xlu0 %1853
        %v1855 = vadd.f32 %v1744, %v1746
        %1856 = vadd.xlane.f32.xlu0 %v1855
        %v1857 = vpop.xlane.xlu0 %1856
        %v1858 = vadd.f32 %v1748, %v1750
        %1859 = vadd.xlane.f32.xlu0 %v1858
        %v1860 = vpop.xlane.xlu0 %1859
        %v1861 = vadd.f32 %v1752, %v1754
        %1862 = vadd.xlane.f32.xlu0 %v1861
        %v1863 = vpop.xlane.xlu0 %1862
        %v1864 = vadd.f32 %v1756, %v1758
        %1865 = vadd.xlane.f32.xlu0 %v1864
        %v1866 = vpop.xlane.xlu0 %1865
        %v1867 = vadd.f32 %v1760, %v1762
        %1868 = vadd.xlane.f32.xlu0 %v1867
        %v1869 = vpop.xlane.xlu0 %1868
        %v1870 = vadd.f32 %v1764, %v1766
        %1871 = vadd.xlane.f32.xlu0 %v1870
        %v1872 = vpop.xlane.xlu0 %1871
        %v1873 = vadd.f32 %v1768, %v1770
        %1874 = vadd.xlane.f32.xlu0 %v1873
        %v1875 = vpop.xlane.xlu0 %1874
        %v1876 = vadd.f32 %v1772, %v1774
        %1877 = vadd.xlane.f32.xlu0 %v1876
        %v1878 = vpop.xlane.xlu0 %1877
        %v1879 = vadd.f32 %v1776, %v1778
        %1880 = vadd.xlane.f32.xlu0 %v1879
        %v1881 = vpop.xlane.xlu0 %1880
        %v1882 = vadd.f32 %v1780, %v1782
        %1883 = vadd.xlane.f32.xlu0 %v1882
        %v1884 = vpop.xlane.xlu0 %1883
        %v1885 = vadd.f32 %v1784, %v1786
        %1886 = vadd.xlane.f32.xlu0 %v1885
        %v1887 = vpop.xlane.xlu0 %1886
        %v1888 = vadd.f32 %v1788, %v1790
        %1889 = vadd.xlane.f32.xlu0 %v1888
        %v1890 = vpop.xlane.xlu0 %1889
        %v1891 = vadd.f32 %v1792, %v1794
        %1892 = vadd.xlane.f32.xlu0 %v1891
        %v1893 = vpop.xlane.xlu0 %1892
        %v1894 = vadd.f32 %v1796, %v1798
        %1895 = vadd.xlane.f32.xlu0 %v1894
        %v1896 = vpop.xlane.xlu0 %1895
        %v1897 = vadd.f32 %v1800, %v1802
        %1898 = vadd.xlane.f32.xlu0 %v1897
        %v1899 = vpop.xlane.xlu0 %1898
        %v1900 = vadd.f32 %v1804, %v1806
        %1901 = vadd.xlane.f32.xlu0 %v1900
        %v1902 = vpop.xlane.xlu0 %1901
        %v1903 = vrcp.pop %v1809
        %v1904 = vrcp.pop %v1812
        %v1905 = vrcp.pop %v1815
        %v1906 = vrcp.pop %v1818
        %v1907 = vrcp.pop %v1821
        %v1908 = vrcp.pop %v1824
        %v1909 = vrcp.pop %v1827
        %v1910 = vrcp.pop %v1830
        %v1911 = vrcp.pop %v1833
        %v1912 = vrcp.pop %v1836
        %v1913 = vrcp.pop %v1839
        %v1914 = vrcp.pop %v1842
        %v1915 = vrcp.pop %v1845
        %v1916 = vrcp.pop %v1848
        %v1917 = vrcp.pop %v1851
        %v1918 = vrcp.pop %v1854
        %v1919 = vrcp.pop %v1857
        %v1920 = vrcp.pop %v1860
        %v1921 = vrcp.pop %v1863
        %v1922 = vrcp.pop %v1866
        %v1923 = vrcp.pop %v1869
        %v1924 = vrcp.pop %v1872
        %v1925 = vrcp.pop %v1875
        %v1926 = vrcp.pop %v1878
        %v1927 = vrcp.pop %v1881
        %v1928 = vrcp.pop %v1884
        %v1929 = vrcp.pop %v1887
        %v1930 = vrcp.pop %v1890
        %v1931 = vrcp.pop %v1893
        %v1932 = vrcp.pop %v1896
        %v1933 = vrcp.pop %v1899
        %v1934 = vrcp.pop %v1902
        %v1935 = vmul.f32 %v1680, %v1903
        %v1936 = vmul.f32 %v1682, %v1903
        %v1937 = vmul.f32 %v1684, %v1904
        %v1938 = vmul.f32 %v1686, %v1904
        %v1939 = vmul.f32 %v1688, %v1905
        %v1940 = vmul.f32 %v1690, %v1905
        %v1941 = vmul.f32 %v1692, %v1906
        %v1942 = vmul.f32 %v1694, %v1906
        %v1943 = vmul.f32 %v1696, %v1907
        %v1944 = vmul.f32 %v1698, %v1907
        %v1945 = vmul.f32 %v1700, %v1908
        %v1946 = vmul.f32 %v1702, %v1908
        %v1947 = vmul.f32 %v1704, %v1909
        %v1948 = vmul.f32 %v1706, %v1909
        %v1949 = vmul.f32 %v1708, %v1910
        %v1950 = vmul.f32 %v1710, %v1910
        %v1951 = vmul.f32 %v1712, %v1911
        %v1952 = vmul.f32 %v1714, %v1911
        %v1953 = vmul.f32 %v1716, %v1912
        %v1954 = vmul.f32 %v1718, %v1912
        %v1955 = vmul.f32 %v1720, %v1913
        %v1956 = vmul.f32 %v1722, %v1913
        %v1957 = vmul.f32 %v1724, %v1914
        %v1958 = vmul.f32 %v1726, %v1914
        %v1959 = vmul.f32 %v1728, %v1915
        %v1960 = vmul.f32 %v1730, %v1915
        %v1961 = vmul.f32 %v1732, %v1916
        %v1962 = vmul.f32 %v1734, %v1916
        %v1963 = vmul.f32 %v1736, %v1917
        %v1964 = vmul.f32 %v1738, %v1917
        %v1965 = vmul.f32 %v1740, %v1918
        %v1966 = vmul.f32 %v1742, %v1918
        %v1967 = vmul.f32 %v1744, %v1919
        %v1968 = vmul.f32 %v1746, %v1919
        %v1969 = vmul.f32 %v1748, %v1920
        %v1970 = vmul.f32 %v1750, %v1920
        %v1971 = vmul.f32 %v1752, %v1921
        %v1972 = vmul.f32 %v1754, %v1921
        %v1973 = vmul.f32 %v1756, %v1922
        %v1974 = vmul.f32 %v1758, %v1922
        %v1975 = vmul.f32 %v1760, %v1923
        %v1976 = vmul.f32 %v1762, %v1923
        %v1977 = vmul.f32 %v1764, %v1924
        %v1978 = vmul.f32 %v1766, %v1924
        %v1979 = vmul.f32 %v1768, %v1925
        %v1980 = vmul.f32 %v1770, %v1925
        %v1981 = vmul.f32 %v1772, %v1926
        %v1982 = vmul.f32 %v1774, %v1926
        %v1983 = vmul.f32 %v1776, %v1927
        %v1984 = vmul.f32 %v1778, %v1927
        %v1985 = vmul.f32 %v1780, %v1928
        %v1986 = vmul.f32 %v1782, %v1928
        %v1987 = vmul.f32 %v1784, %v1929
        %v1988 = vmul.f32 %v1786, %v1929
        %v1989 = vmul.f32 %v1788, %v1930
        %v1990 = vmul.f32 %v1790, %v1930
        %v1991 = vmul.f32 %v1792, %v1931
        %v1992 = vmul.f32 %v1794, %v1931
        %v1993 = vmul.f32 %v1796, %v1932
        %v1994 = vmul.f32 %v1798, %v1932
        %v1995 = vmul.f32 %v1800, %v1933
        %v1996 = vmul.f32 %v1802, %v1933
        %v1997 = vmul.f32 %v1804, %v1934
        %v1998 = vmul.f32 %v1806, %v1934
        %v1999 = vpack.c.bf16 %v1937, %v1935
        %v2000 = vpack.c.bf16 %v1938, %v1936
        %v2001 = vpack.c.bf16 %v1941, %v1939
        %v2002 = vpack.c.bf16 %v1942, %v1940
        %v2003 = vpack.c.bf16 %v1945, %v1943
        %v2004 = vpack.c.bf16 %v1946, %v1944
        %v2005 = vpack.c.bf16 %v1949, %v1947
        %v2006 = vpack.c.bf16 %v1950, %v1948
        %v2007 = vpack.c.bf16 %v1953, %v1951
        %v2008 = vpack.c.bf16 %v1954, %v1952
        %v2009 = vpack.c.bf16 %v1957, %v1955
        %v2010 = vpack.c.bf16 %v1958, %v1956
        %v2011 = vpack.c.bf16 %v1961, %v1959
        %v2012 = vpack.c.bf16 %v1962, %v1960
        %v2013 = vpack.c.bf16 %v1965, %v1963
        %v2014 = vpack.c.bf16 %v1966, %v1964
        %v2015 = vpack.c.bf16 %v1969, %v1967
        %v2016 = vpack.c.bf16 %v1970, %v1968
        %v2017 = vpack.c.bf16 %v1973, %v1971
        %v2018 = vpack.c.bf16 %v1974, %v1972
        %v2019 = vpack.c.bf16 %v1977, %v1975
        %v2020 = vpack.c.bf16 %v1978, %v1976
        %v2021 = vpack.c.bf16 %v1981, %v1979
        %v2022 = vpack.c.bf16 %v1982, %v1980
        %v2023 = vpack.c.bf16 %v1985, %v1983
        %v2024 = vpack.c.bf16 %v1986, %v1984
        %v2025 = vpack.c.bf16 %v1989, %v1987
        %v2026 = vpack.c.bf16 %v1990, %v1988
        %v2027 = vpack.c.bf16 %v1993, %v1991
        %v2028 = vpack.c.bf16 %v1994, %v1992
        %v2029 = vpack.c.bf16 %v1997, %v1995
        %v2030 = vpack.c.bf16 %v1998, %v1996
        %2031 = vmatprep.subr.bf16.mxu0 %v2014
        %2032 = vmatpush1.bf16.xpose.msra.mxu0 %v2013
        %2033 = vmatprep.subr.bf16.mxu0 %v2012
        %2034 = vmatpush1.bf16.xpose.msra.mxu0 %v2011
        %2035 = vmatprep.subr.bf16.mxu0 %v2010
        %2036 = vmatpush1.bf16.xpose.msra.mxu0 %v2009
        %2037 = vmatprep.subr.bf16.mxu0 %v2008
        %2038 = vmatpush1.bf16.xpose.msra.mxu0 %v2007
        %2039 = vmatprep.subr.bf16.mxu0 %v2006
        %2040 = vmatpush1.bf16.xpose.msra.mxu0 %v2005
        %2041 = vmatprep.subr.bf16.mxu0 %v2004
        %2042 = vmatpush1.bf16.xpose.msra.mxu0 %v2003
        %2043 = vmatprep.subr.bf16.mxu0 %v2002
        %2044 = vmatpush1.bf16.xpose.msra.mxu0 %v2001
        %2045 = vmatprep.subr.bf16.mxu0 %v2000
        %2046 = vmatpush1.bf16.xpose.msra.mxu0 %v1999
        %2047 = vmatprep.subr.bf16.mxu0 %v2030
        %2048 = vmatpush2.bf16.xpose.msra.mxu0 %v2029
        %2049 = vmatprep.subr.bf16.mxu0 %v2028
        %2050 = vmatpush2.bf16.xpose.msra.mxu0 %v2027
        %2051 = vmatprep.subr.bf16.mxu0 %v2026
        %2052 = vmatpush2.bf16.xpose.msra.mxu0 %v2025
        %2053 = vmatprep.subr.bf16.mxu0 %v2024
        %2054 = vmatpush2.bf16.xpose.msra.mxu0 %v2023
        %2055 = vmatprep.subr.bf16.mxu0 %v2022
        %2056 = vmatpush2.bf16.xpose.msra.mxu0 %v2021
        %2057 = vmatprep.subr.bf16.mxu0 %v2020
        %2058 = vmatpush2.bf16.xpose.msra.mxu0 %v2019
        %2059 = vmatprep.subr.bf16.mxu0 %v2018
        %2060 = vmatpush2.bf16.xpose.msra.mxu0 %v2017
        %2061 = vmatprep.subr.bf16.mxu0 %v2016
        %2062 = vmatpush2.bf16.xpose.msra.mxu0 %v2015
        %2063 = vmatprep.mubr.bf16.mxu0 %v1237
        %2064 = vmatmul.mubr.bf16.gmra.mxu0 %v1236
        %v2065 = vpop.f32.mrf.mxu0
        %v2066 = vadd.f32 0.0, %v2065
        %v2067 = vpop.f32.mrf.mxu0
        %v2068 = vadd.f32 0.0, %v2067
        %v2069 = vpop.f32.mrf.mxu0
        %v2070 = vpop.f32.mrf.mxu0
        %2071 = vdwg.mxu0
        %2072 = vst [vmem:[#allocation2] sm:$0xff] %v2066
        %2073 = vst [vmem:[#allocation2 + $0x8] sm:$0xff] %v2068
        %v2074 = vmul.f32 %v1098, %v1098
        %v2075 = vmul.f32 %v1100, %v1100
        %v2076 = vrot.slane %v2074, 4
        %v2077 = vadd.f32 %v2074, %v2076
        %v2078 = vrot.slane %v2077, 2
        %v2079 = vadd.f32 %v2077, %v2078
        %v2080 = vrot.slane %v2079, 1
        %v2081 = vadd.f32 %v2079, %v2080
        %v2082 = vrot.slane %v2075, 4
        %v2083 = vadd.f32 %v2075, %v2082
        %v2084 = vrot.slane %v2083, 2
        %v2085 = vadd.f32 %v2083, %v2084
        %v2086 = vrot.slane %v2085, 1
        %v2087 = vadd.f32 %v2085, %v2086
        %v2088 = vmax.f32 %v2081, 1e-24
        %v2089 = vmax.f32 %v2087, 1e-24
        %v2090 = vrsqrt.pop %v2088
        %v2091 = vrsqrt.pop %v2089
        %v2092 = vmul.f32 %v1207, %v2090
        %v2093 = vmul.f32 %v1207, %v2091
        %v2094 = vmul.f32 %v1141, %v1141
        %v2095 = vmul.f32 %v1143, %v1143
        %v2096 = vrot.slane %v2094, 4
        %v2097 = vadd.f32 %v2094, %v2096
        %v2098 = vrot.slane %v2097, 2
        %v2099 = vadd.f32 %v2097, %v2098
        %v2100 = vrot.slane %v2099, 1
        %v2101 = vadd.f32 %v2099, %v2100
        %v2102 = vrot.slane %v2095, 4
        %v2103 = vadd.f32 %v2095, %v2102
        %v2104 = vrot.slane %v2103, 2
        %v2105 = vadd.f32 %v2103, %v2104
        %v2106 = vrot.slane %v2105, 1
        %v2107 = vadd.f32 %v2105, %v2106
        %v2108 = vmax.f32 %v2101, 1e-24
        %v2109 = vmax.f32 %v2107, 1e-24
        %v2110 = vrsqrt.pop %v2108
        %v2111 = vrsqrt.pop %v2109
        %v2112 = vmul.f32 %v1098, %v2092
        %v2113 = vmul.f32 %v1100, %v2093
        %v2114 = vpack.c.bf16 %v2112, %v2112
        %v2115 = vpack.c.bf16 %v2113, %v2113
        %v2116 = vmul.f32 %v1141, %v2110
        %v2117 = vmul.f32 %v1143, %v2111
        %v2118 = vpack.c.bf16 %v2116, %v2116
        %v2119 = vpack.c.bf16 %v2117, %v2117
        %v2120 = vpack.c.bf16 %v1184, %v1184
        %v2121 = vpack.c.bf16 %v1186, %v1186
        %2122 = vxpose.xlu0.c.b16.start [1/8] %v2114, 128
        %2123 = vxpose.xlu0.c.b16.cont [2/8] 0, 128
        %2124 = vxpose.xlu0.c.b16.cont [3/8] 0, 128
        %2125 = vxpose.xlu0.c.b16.cont [4/8] 0, 128
        %2126 = vxpose.xlu0.c.b16.cont [5/8] 0, 128
        %2127 = vxpose.xlu0.c.b16.cont [6/8] 0, 128
        %2128 = vxpose.xlu0.c.b16.cont [7/8] 0, 128
        %2129 = vxpose.xlu0.c.b16.end [8/8] 0, 128
        %v2130 = vpop.trf.xlu0
        %v2131 = vpop.trf.xlu0
        %v2132 = vpop.trf.xlu0
        %v2133 = vpop.trf.xlu0
        %v2134 = vpop.trf.xlu0
        %v2135 = vpop.trf.xlu0
        %v2136 = vpop.trf.xlu0
        %v2137 = vpop.trf.xlu0
        %2138 = vxpose.xlu0.c.b16.start [1/8] %v2115, 128
        %2139 = vxpose.xlu0.c.b16.cont [2/8] 0, 128
        %2140 = vxpose.xlu0.c.b16.cont [3/8] 0, 128
        %2141 = vxpose.xlu0.c.b16.cont [4/8] 0, 128
        %2142 = vxpose.xlu0.c.b16.cont [5/8] 0, 128
        %2143 = vxpose.xlu0.c.b16.cont [6/8] 0, 128
        %2144 = vxpose.xlu0.c.b16.cont [7/8] 0, 128
        %2145 = vxpose.xlu0.c.b16.end [8/8] 0, 128
        %v2146 = vpop.trf.xlu0
        %v2147 = vpop.trf.xlu0
        %v2148 = vpop.trf.xlu0
        %v2149 = vpop.trf.xlu0
        %v2150 = vpop.trf.xlu0
        %v2151 = vpop.trf.xlu0
        %v2152 = vpop.trf.xlu0
        %v2153 = vpop.trf.xlu0
        %v2155 = vsel %vm1270, %v2130, 0
        %v2158 = vsel %vm1270, %v2131, 0
        %v2161 = vsel %vm1270, %v2132, 0
        %v2164 = vsel %vm1270, %v2133, 0
        %v2167 = vsel %vm1270, %v2134, 0
        %v2170 = vsel %vm1270, %v2135, 0
        %v2173 = vsel %vm1270, %v2136, 0
        %v2176 = vsel %vm1270, %v2137, 0
        %v2179 = vsel %vm1270, %v2146, 0
        %v2182 = vsel %vm1270, %v2147, 0
        %v2185 = vsel %vm1270, %v2148, 0
        %v2188 = vsel %vm1270, %v2149, 0
        %v2191 = vsel %vm1270, %v2150, 0
        %v2194 = vsel %vm1270, %v2151, 0
        %v2197 = vsel %vm1270, %v2152, 0
        %v2200 = vsel %vm1270, %v2153, 0
        %v2203 = vsel %vm1319, %v2118, 0
        %v2206 = vsel %vm1319, %v2119, 0
        %2208 = vmatprep.subr.bf16.mxu0 0
        %2209 = vmatpush1.bf16.msra.mxu0 0
        %2210 = vmatprep.subr.bf16.mxu0 0
        %2211 = vmatpush1.bf16.msra.mxu0 0
        %2212 = vmatprep.subr.bf16.mxu0 0
        %2213 = vmatpush1.bf16.msra.mxu0 0
        %2214 = vmatprep.subr.bf16.mxu0 0
        %2215 = vmatpush1.bf16.msra.mxu0 0
        %2216 = vmatprep.subr.bf16.mxu0 0
        %2217 = vmatpush1.bf16.msra.mxu0 0
        %2218 = vmatprep.subr.bf16.mxu0 0
        %2219 = vmatpush1.bf16.msra.mxu0 0
        %2220 = vmatprep.subr.bf16.mxu0 0
        %2221 = vmatpush1.bf16.msra.mxu0 0
        %2222 = vmatprep.subr.bf16.mxu0 %v2206
        %2223 = vmatpush1.bf16.msra.mxu0 %v2203
        %2224 = vmatprep.subr.bf16.mxu0 0
        %2225 = vmatpush2.bf16.msra.mxu0 0
        %2226 = vmatprep.subr.bf16.mxu0 0
        %2227 = vmatpush2.bf16.msra.mxu0 0
        %2228 = vmatprep.subr.bf16.mxu0 0
        %2229 = vmatpush2.bf16.msra.mxu0 0
        %2230 = vmatprep.subr.bf16.mxu0 0
        %2231 = vmatpush2.bf16.msra.mxu0 0
        %2232 = vmatprep.subr.bf16.mxu0 0
        %2233 = vmatpush2.bf16.msra.mxu0 0
        %2234 = vmatprep.subr.bf16.mxu0 0
        %2235 = vmatpush2.bf16.msra.mxu0 0
        %2236 = vmatprep.subr.bf16.mxu0 0
        %2237 = vmatpush2.bf16.msra.mxu0 0
        %2238 = vmatprep.subr.bf16.mxu0 0
        %2239 = vmatpush2.bf16.msra.mxu0 0
        %2240 = vmatprep.mubr.bf16.mxu0 0
        %2241 = vmatmul.mubr.bf16.gmra.mxu0 %v2155
        %v2242 = vpop.f32.mrf.mxu0
        %v2243 = vadd.f32 0.0, %v2242
        %v2244 = vpop.f32.mrf.mxu0
        %v2245 = vadd.f32 0.0, %v2244
        %v2246 = vpop.f32.mrf.mxu0
        %v2247 = vadd.f32 0.0, %v2246
        %v2248 = vpop.f32.mrf.mxu0
        %v2249 = vadd.f32 0.0, %v2248
        %2250 = vmatprep.mubr.bf16.mxu0 0
        %2251 = vmatmul.mubr.bf16.gmra.mxu0 %v2158
        %v2252 = vpop.f32.mrf.mxu0
        %v2253 = vadd.f32 0.0, %v2252
        %v2254 = vpop.f32.mrf.mxu0
        %v2255 = vadd.f32 0.0, %v2254
        %v2256 = vpop.f32.mrf.mxu0
        %v2257 = vadd.f32 0.0, %v2256
        %v2258 = vpop.f32.mrf.mxu0
        %v2259 = vadd.f32 0.0, %v2258
        %2260 = vmatprep.mubr.bf16.mxu0 0
        %2261 = vmatmul.mubr.bf16.gmra.mxu0 %v2161
        %v2262 = vpop.f32.mrf.mxu0
        %v2263 = vadd.f32 0.0, %v2262
        %v2264 = vpop.f32.mrf.mxu0
        %v2265 = vadd.f32 0.0, %v2264
        %v2266 = vpop.f32.mrf.mxu0
        %v2267 = vadd.f32 0.0, %v2266
        %v2268 = vpop.f32.mrf.mxu0
        %v2269 = vadd.f32 0.0, %v2268
        %2270 = vmatprep.mubr.bf16.mxu0 0
        %2271 = vmatmul.mubr.bf16.gmra.mxu0 %v2164
        %v2272 = vpop.f32.mrf.mxu0
        %v2273 = vadd.f32 0.0, %v2272
        %v2274 = vpop.f32.mrf.mxu0
        %v2275 = vadd.f32 0.0, %v2274
        %v2276 = vpop.f32.mrf.mxu0
        %v2277 = vadd.f32 0.0, %v2276
        %v2278 = vpop.f32.mrf.mxu0
        %v2279 = vadd.f32 0.0, %v2278
        %2280 = vmatprep.mubr.bf16.mxu0 0
        %2281 = vmatmul.mubr.bf16.gmra.mxu0 %v2167
        %v2282 = vpop.f32.mrf.mxu0
        %v2283 = vadd.f32 0.0, %v2282
        %v2284 = vpop.f32.mrf.mxu0
        %v2285 = vadd.f32 0.0, %v2284
        %v2286 = vpop.f32.mrf.mxu0
        %v2287 = vadd.f32 0.0, %v2286
        %v2288 = vpop.f32.mrf.mxu0
        %v2289 = vadd.f32 0.0, %v2288
        %2290 = vmatprep.mubr.bf16.mxu0 0
        %2291 = vmatmul.mubr.bf16.gmra.mxu0 %v2170
        %v2292 = vpop.f32.mrf.mxu0
        %v2293 = vadd.f32 0.0, %v2292
        %v2294 = vpop.f32.mrf.mxu0
        %v2295 = vadd.f32 0.0, %v2294
        %v2296 = vpop.f32.mrf.mxu0
        %v2297 = vadd.f32 0.0, %v2296
        %v2298 = vpop.f32.mrf.mxu0
        %v2299 = vadd.f32 0.0, %v2298
        %2300 = vmatprep.mubr.bf16.mxu0 0
        %2301 = vmatmul.mubr.bf16.gmra.mxu0 %v2173
        %v2302 = vpop.f32.mrf.mxu0
        %v2303 = vadd.f32 0.0, %v2302
        %v2304 = vpop.f32.mrf.mxu0
        %v2305 = vadd.f32 0.0, %v2304
        %v2306 = vpop.f32.mrf.mxu0
        %v2307 = vadd.f32 0.0, %v2306
        %v2308 = vpop.f32.mrf.mxu0
        %v2309 = vadd.f32 0.0, %v2308
        %2310 = vmatprep.mubr.bf16.mxu0 0
        %2311 = vmatmul.mubr.bf16.gmra.mxu0 %v2176
        %v2312 = vpop.f32.mrf.mxu0
        %v2313 = vadd.f32 0.0, %v2312
        %v2314 = vpop.f32.mrf.mxu0
        %v2315 = vadd.f32 0.0, %v2314
        %v2316 = vpop.f32.mrf.mxu0
        %v2317 = vadd.f32 0.0, %v2316
        %v2318 = vpop.f32.mrf.mxu0
        %v2319 = vadd.f32 0.0, %v2318
        %2320 = vmatprep.mubr.bf16.mxu0 0
        %2321 = vmatmul.mubr.bf16.gmra.mxu0 %v2179
        %v2322 = vpop.f32.mrf.mxu0
        %v2323 = vadd.f32 0.0, %v2322
        %v2324 = vpop.f32.mrf.mxu0
        %v2325 = vadd.f32 0.0, %v2324
        %v2326 = vpop.f32.mrf.mxu0
        %v2327 = vadd.f32 0.0, %v2326
        %v2328 = vpop.f32.mrf.mxu0
        %v2329 = vadd.f32 0.0, %v2328
        %2330 = vmatprep.mubr.bf16.mxu0 0
        %2331 = vmatmul.mubr.bf16.gmra.mxu0 %v2182
        %v2332 = vpop.f32.mrf.mxu0
        %v2333 = vadd.f32 0.0, %v2332
        %v2334 = vpop.f32.mrf.mxu0
        %v2335 = vadd.f32 0.0, %v2334
        %v2336 = vpop.f32.mrf.mxu0
        %v2337 = vadd.f32 0.0, %v2336
        %v2338 = vpop.f32.mrf.mxu0
        %v2339 = vadd.f32 0.0, %v2338
        %2340 = vmatprep.mubr.bf16.mxu0 0
        %2341 = vmatmul.mubr.bf16.gmra.mxu0 %v2185
        %v2342 = vpop.f32.mrf.mxu0
        %v2343 = vadd.f32 0.0, %v2342
        %v2344 = vpop.f32.mrf.mxu0
        %v2345 = vadd.f32 0.0, %v2344
        %v2346 = vpop.f32.mrf.mxu0
        %v2347 = vadd.f32 0.0, %v2346
        %v2348 = vpop.f32.mrf.mxu0
        %v2349 = vadd.f32 0.0, %v2348
        %2350 = vmatprep.mubr.bf16.mxu0 0
        %2351 = vmatmul.mubr.bf16.gmra.mxu0 %v2188
        %v2352 = vpop.f32.mrf.mxu0
        %v2353 = vadd.f32 0.0, %v2352
        %v2354 = vpop.f32.mrf.mxu0
        %v2355 = vadd.f32 0.0, %v2354
        %v2356 = vpop.f32.mrf.mxu0
        %v2357 = vadd.f32 0.0, %v2356
        %v2358 = vpop.f32.mrf.mxu0
        %v2359 = vadd.f32 0.0, %v2358
        %2360 = vmatprep.mubr.bf16.mxu0 0
        %2361 = vmatmul.mubr.bf16.gmra.mxu0 %v2191
        %v2362 = vpop.f32.mrf.mxu0
        %v2363 = vadd.f32 0.0, %v2362
        %v2364 = vpop.f32.mrf.mxu0
        %v2365 = vadd.f32 0.0, %v2364
        %v2366 = vpop.f32.mrf.mxu0
        %v2367 = vadd.f32 0.0, %v2366
        %v2368 = vpop.f32.mrf.mxu0
        %v2369 = vadd.f32 0.0, %v2368
        %2370 = vmatprep.mubr.bf16.mxu0 0
        %2371 = vmatmul.mubr.bf16.gmra.mxu0 %v2194
        %v2372 = vpop.f32.mrf.mxu0
        %v2373 = vadd.f32 0.0, %v2372
        %v2374 = vpop.f32.mrf.mxu0
        %v2375 = vadd.f32 0.0, %v2374
        %v2376 = vpop.f32.mrf.mxu0
        %v2377 = vadd.f32 0.0, %v2376
        %v2378 = vpop.f32.mrf.mxu0
        %v2379 = vadd.f32 0.0, %v2378
        %2380 = vmatprep.mubr.bf16.mxu0 0
        %2381 = vmatmul.mubr.bf16.gmra.mxu0 %v2197
        %v2382 = vpop.f32.mrf.mxu0
        %v2383 = vadd.f32 0.0, %v2382
        %v2384 = vpop.f32.mrf.mxu0
        %v2385 = vadd.f32 0.0, %v2384
        %v2386 = vpop.f32.mrf.mxu0
        %v2387 = vadd.f32 0.0, %v2386
        %v2388 = vpop.f32.mrf.mxu0
        %v2389 = vadd.f32 0.0, %v2388
        %2390 = vmatprep.mubr.bf16.mxu0 0
        %2391 = vmatmul.mubr.bf16.gmra.mxu0 %v2200
        %v2392 = vpop.f32.mrf.mxu0
        %v2393 = vadd.f32 0.0, %v2392
        %v2394 = vpop.f32.mrf.mxu0
        %v2395 = vadd.f32 0.0, %v2394
        %v2396 = vpop.f32.mrf.mxu0
        %v2397 = vadd.f32 0.0, %v2396
        %v2398 = vpop.f32.mrf.mxu0
        %v2399 = vadd.f32 0.0, %v2398
        %2400 = vdwg.mxu0
        %v2401 = vmax.f32 %v2243, %v2245
        %2402 = vmax.xlane.f32.xlu0 %v2401
        %v2403 = vpop.xlane.xlu0 %2402
        %v2404 = vmax.f32 %v2247, %v2249
        %2405 = vmax.xlane.f32.xlu0 %v2404
        %v2406 = vpop.xlane.xlu0 %2405
        %v2407 = vmax.f32 %v2253, %v2255
        %2408 = vmax.xlane.f32.xlu0 %v2407
        %v2409 = vpop.xlane.xlu0 %2408
        %v2410 = vmax.f32 %v2257, %v2259
        %2411 = vmax.xlane.f32.xlu0 %v2410
        %v2412 = vpop.xlane.xlu0 %2411
        %v2413 = vmax.f32 %v2263, %v2265
        %2414 = vmax.xlane.f32.xlu0 %v2413
        %v2415 = vpop.xlane.xlu0 %2414
        %v2416 = vmax.f32 %v2267, %v2269
        %2417 = vmax.xlane.f32.xlu0 %v2416
        %v2418 = vpop.xlane.xlu0 %2417
        %v2419 = vmax.f32 %v2273, %v2275
        %2420 = vmax.xlane.f32.xlu0 %v2419
        %v2421 = vpop.xlane.xlu0 %2420
        %v2422 = vmax.f32 %v2277, %v2279
        %2423 = vmax.xlane.f32.xlu0 %v2422
        %v2424 = vpop.xlane.xlu0 %2423
        %v2425 = vmax.f32 %v2283, %v2285
        %2426 = vmax.xlane.f32.xlu0 %v2425
        %v2427 = vpop.xlane.xlu0 %2426
        %v2428 = vmax.f32 %v2287, %v2289
        %2429 = vmax.xlane.f32.xlu0 %v2428
        %v2430 = vpop.xlane.xlu0 %2429
        %v2431 = vmax.f32 %v2293, %v2295
        %2432 = vmax.xlane.f32.xlu0 %v2431
        %v2433 = vpop.xlane.xlu0 %2432
        %v2434 = vmax.f32 %v2297, %v2299
        %2435 = vmax.xlane.f32.xlu0 %v2434
        %v2436 = vpop.xlane.xlu0 %2435
        %v2437 = vmax.f32 %v2303, %v2305
        %2438 = vmax.xlane.f32.xlu0 %v2437
        %v2439 = vpop.xlane.xlu0 %2438
        %v2440 = vmax.f32 %v2307, %v2309
        %2441 = vmax.xlane.f32.xlu0 %v2440
        %v2442 = vpop.xlane.xlu0 %2441
        %v2443 = vmax.f32 %v2313, %v2315
        %2444 = vmax.xlane.f32.xlu0 %v2443
        %v2445 = vpop.xlane.xlu0 %2444
        %v2446 = vmax.f32 %v2317, %v2319
        %2447 = vmax.xlane.f32.xlu0 %v2446
        %v2448 = vpop.xlane.xlu0 %2447
        %v2449 = vmax.f32 %v2323, %v2325
        %2450 = vmax.xlane.f32.xlu0 %v2449
        %v2451 = vpop.xlane.xlu0 %2450
        %v2452 = vmax.f32 %v2327, %v2329
        %2453 = vmax.xlane.f32.xlu0 %v2452
        %v2454 = vpop.xlane.xlu0 %2453
        %v2455 = vmax.f32 %v2333, %v2335
        %2456 = vmax.xlane.f32.xlu0 %v2455
        %v2457 = vpop.xlane.xlu0 %2456
        %v2458 = vmax.f32 %v2337, %v2339
        %2459 = vmax.xlane.f32.xlu0 %v2458
        %v2460 = vpop.xlane.xlu0 %2459
        %v2461 = vmax.f32 %v2343, %v2345
        %2462 = vmax.xlane.f32.xlu0 %v2461
        %v2463 = vpop.xlane.xlu0 %2462
        %v2464 = vmax.f32 %v2347, %v2349
        %2465 = vmax.xlane.f32.xlu0 %v2464
        %v2466 = vpop.xlane.xlu0 %2465
        %v2467 = vmax.f32 %v2353, %v2355
        %2468 = vmax.xlane.f32.xlu0 %v2467
        %v2469 = vpop.xlane.xlu0 %2468
        %v2470 = vmax.f32 %v2357, %v2359
        %2471 = vmax.xlane.f32.xlu0 %v2470
        %v2472 = vpop.xlane.xlu0 %2471
        %v2473 = vmax.f32 %v2363, %v2365
        %2474 = vmax.xlane.f32.xlu0 %v2473
        %v2475 = vpop.xlane.xlu0 %2474
        %v2476 = vmax.f32 %v2367, %v2369
        %2477 = vmax.xlane.f32.xlu0 %v2476
        %v2478 = vpop.xlane.xlu0 %2477
        %v2479 = vmax.f32 %v2373, %v2375
        %2480 = vmax.xlane.f32.xlu0 %v2479
        %v2481 = vpop.xlane.xlu0 %2480
        %v2482 = vmax.f32 %v2377, %v2379
        %2483 = vmax.xlane.f32.xlu0 %v2482
        %v2484 = vpop.xlane.xlu0 %2483
        %v2485 = vmax.f32 %v2383, %v2385
        %2486 = vmax.xlane.f32.xlu0 %v2485
        %v2487 = vpop.xlane.xlu0 %2486
        %v2488 = vmax.f32 %v2387, %v2389
        %2489 = vmax.xlane.f32.xlu0 %v2488
        %v2490 = vpop.xlane.xlu0 %2489
        %v2491 = vmax.f32 %v2393, %v2395
        %2492 = vmax.xlane.f32.xlu0 %v2491
        %v2493 = vpop.xlane.xlu0 %2492
        %v2494 = vmax.f32 %v2397, %v2399
        %2495 = vmax.xlane.f32.xlu0 %v2494
        %v2496 = vpop.xlane.xlu0 %2495
        %v2497 = vsub.f32 %v2243, %v2403
        %v2498 = vsub.f32 %v2245, %v2403
        %v2499 = vsub.f32 %v2247, %v2406
        %v2500 = vsub.f32 %v2249, %v2406
        %v2501 = vsub.f32 %v2253, %v2409
        %v2502 = vsub.f32 %v2255, %v2409
        %v2503 = vsub.f32 %v2257, %v2412
        %v2504 = vsub.f32 %v2259, %v2412
        %v2505 = vsub.f32 %v2263, %v2415
        %v2506 = vsub.f32 %v2265, %v2415
        %v2507 = vsub.f32 %v2267, %v2418
        %v2508 = vsub.f32 %v2269, %v2418
        %v2509 = vsub.f32 %v2273, %v2421
        %v2510 = vsub.f32 %v2275, %v2421
        %v2511 = vsub.f32 %v2277, %v2424
        %v2512 = vsub.f32 %v2279, %v2424
        %v2513 = vsub.f32 %v2283, %v2427
        %v2514 = vsub.f32 %v2285, %v2427
        %v2515 = vsub.f32 %v2287, %v2430
        %v2516 = vsub.f32 %v2289, %v2430
        %v2517 = vsub.f32 %v2293, %v2433
        %v2518 = vsub.f32 %v2295, %v2433
        %v2519 = vsub.f32 %v2297, %v2436
        %v2520 = vsub.f32 %v2299, %v2436
        %v2521 = vsub.f32 %v2303, %v2439
        %v2522 = vsub.f32 %v2305, %v2439
        %v2523 = vsub.f32 %v2307, %v2442
        %v2524 = vsub.f32 %v2309, %v2442
        %v2525 = vsub.f32 %v2313, %v2445
        %v2526 = vsub.f32 %v2315, %v2445
        %v2527 = vsub.f32 %v2317, %v2448
        %v2528 = vsub.f32 %v2319, %v2448
        %v2529 = vsub.f32 %v2323, %v2451
        %v2530 = vsub.f32 %v2325, %v2451
        %v2531 = vsub.f32 %v2327, %v2454
        %v2532 = vsub.f32 %v2329, %v2454
        %v2533 = vsub.f32 %v2333, %v2457
        %v2534 = vsub.f32 %v2335, %v2457
        %v2535 = vsub.f32 %v2337, %v2460
        %v2536 = vsub.f32 %v2339, %v2460
        %v2537 = vsub.f32 %v2343, %v2463
        %v2538 = vsub.f32 %v2345, %v2463
        %v2539 = vsub.f32 %v2347, %v2466
        %v2540 = vsub.f32 %v2349, %v2466
        %v2541 = vsub.f32 %v2353, %v2469
        %v2542 = vsub.f32 %v2355, %v2469
        %v2543 = vsub.f32 %v2357, %v2472
        %v2544 = vsub.f32 %v2359, %v2472
        %v2545 = vsub.f32 %v2363, %v2475
        %v2546 = vsub.f32 %v2365, %v2475
        %v2547 = vsub.f32 %v2367, %v2478
        %v2548 = vsub.f32 %v2369, %v2478
        %v2549 = vsub.f32 %v2373, %v2481
        %v2550 = vsub.f32 %v2375, %v2481
        %v2551 = vsub.f32 %v2377, %v2484
        %v2552 = vsub.f32 %v2379, %v2484
        %v2553 = vsub.f32 %v2383, %v2487
        %v2554 = vsub.f32 %v2385, %v2487
        %v2555 = vsub.f32 %v2387, %v2490
        %v2556 = vsub.f32 %v2389, %v2490
        %v2557 = vsub.f32 %v2393, %v2493
        %v2558 = vsub.f32 %v2395, %v2493
        %v2559 = vsub.f32 %v2397, %v2496
        %v2560 = vsub.f32 %v2399, %v2496
        %v2561 = vmul.f32 %v2497, 1.442695
        %v2562 = vpow.pop %v2561
        %v2563 = vmul.f32 %v2498, 1.442695
        %v2564 = vpow.pop %v2563
        %v2565 = vmul.f32 %v2499, 1.442695
        %v2566 = vpow.pop %v2565
        %v2567 = vmul.f32 %v2500, 1.442695
        %v2568 = vpow.pop %v2567
        %v2569 = vmul.f32 %v2501, 1.442695
        %v2570 = vpow.pop %v2569
        %v2571 = vmul.f32 %v2502, 1.442695
        %v2572 = vpow.pop %v2571
        %v2573 = vmul.f32 %v2503, 1.442695
        %v2574 = vpow.pop %v2573
        %v2575 = vmul.f32 %v2504, 1.442695
        %v2576 = vpow.pop %v2575
        %v2577 = vmul.f32 %v2505, 1.442695
        %v2578 = vpow.pop %v2577
        %v2579 = vmul.f32 %v2506, 1.442695
        %v2580 = vpow.pop %v2579
        %v2581 = vmul.f32 %v2507, 1.442695
        %v2582 = vpow.pop %v2581
        %v2583 = vmul.f32 %v2508, 1.442695
        %v2584 = vpow.pop %v2583
        %v2585 = vmul.f32 %v2509, 1.442695
        %v2586 = vpow.pop %v2585
        %v2587 = vmul.f32 %v2510, 1.442695
        %v2588 = vpow.pop %v2587
        %v2589 = vmul.f32 %v2511, 1.442695
        %v2590 = vpow.pop %v2589
        %v2591 = vmul.f32 %v2512, 1.442695
        %v2592 = vpow.pop %v2591
        %v2593 = vmul.f32 %v2513, 1.442695
        %v2594 = vpow.pop %v2593
        %v2595 = vmul.f32 %v2514, 1.442695
        %v2596 = vpow.pop %v2595
        %v2597 = vmul.f32 %v2515, 1.442695
        %v2598 = vpow.pop %v2597
        %v2599 = vmul.f32 %v2516, 1.442695
        %v2600 = vpow.pop %v2599
        %v2601 = vmul.f32 %v2517, 1.442695
        %v2602 = vpow.pop %v2601
        %v2603 = vmul.f32 %v2518, 1.442695
        %v2604 = vpow.pop %v2603
        %v2605 = vmul.f32 %v2519, 1.442695
        %v2606 = vpow.pop %v2605
        %v2607 = vmul.f32 %v2520, 1.442695
        %v2608 = vpow.pop %v2607
        %v2609 = vmul.f32 %v2521, 1.442695
        %v2610 = vpow.pop %v2609
        %v2611 = vmul.f32 %v2522, 1.442695
        %v2612 = vpow.pop %v2611
        %v2613 = vmul.f32 %v2523, 1.442695
        %v2614 = vpow.pop %v2613
        %v2615 = vmul.f32 %v2524, 1.442695
        %v2616 = vpow.pop %v2615
        %v2617 = vmul.f32 %v2525, 1.442695
        %v2618 = vpow.pop %v2617
        %v2619 = vmul.f32 %v2526, 1.442695
        %v2620 = vpow.pop %v2619
        %v2621 = vmul.f32 %v2527, 1.442695
        %v2622 = vpow.pop %v2621
        %v2623 = vmul.f32 %v2528, 1.442695
        %v2624 = vpow.pop %v2623
        %v2625 = vmul.f32 %v2529, 1.442695
        %v2626 = vpow.pop %v2625
        %v2627 = vmul.f32 %v2530, 1.442695
        %v2628 = vpow.pop %v2627
        %v2629 = vmul.f32 %v2531, 1.442695
        %v2630 = vpow.pop %v2629
        %v2631 = vmul.f32 %v2532, 1.442695
        %v2632 = vpow.pop %v2631
        %v2633 = vmul.f32 %v2533, 1.442695
        %v2634 = vpow.pop %v2633
        %v2635 = vmul.f32 %v2534, 1.442695
        %v2636 = vpow.pop %v2635
        %v2637 = vmul.f32 %v2535, 1.442695
        %v2638 = vpow.pop %v2637
        %v2639 = vmul.f32 %v2536, 1.442695
        %v2640 = vpow.pop %v2639
        %v2641 = vmul.f32 %v2537, 1.442695
        %v2642 = vpow.pop %v2641
        %v2643 = vmul.f32 %v2538, 1.442695
        %v2644 = vpow.pop %v2643
        %v2645 = vmul.f32 %v2539, 1.442695
        %v2646 = vpow.pop %v2645
        %v2647 = vmul.f32 %v2540, 1.442695
        %v2648 = vpow.pop %v2647
        %v2649 = vmul.f32 %v2541, 1.442695
        %v2650 = vpow.pop %v2649
        %v2651 = vmul.f32 %v2542, 1.442695
        %v2652 = vpow.pop %v2651
        %v2653 = vmul.f32 %v2543, 1.442695
        %v2654 = vpow.pop %v2653
        %v2655 = vmul.f32 %v2544, 1.442695
        %v2656 = vpow.pop %v2655
        %v2657 = vmul.f32 %v2545, 1.442695
        %v2658 = vpow.pop %v2657
        %v2659 = vmul.f32 %v2546, 1.442695
        %v2660 = vpow.pop %v2659
        %v2661 = vmul.f32 %v2547, 1.442695
        %v2662 = vpow.pop %v2661
        %v2663 = vmul.f32 %v2548, 1.442695
        %v2664 = vpow.pop %v2663
        %v2665 = vmul.f32 %v2549, 1.442695
        %v2666 = vpow.pop %v2665
        %v2667 = vmul.f32 %v2550, 1.442695
        %v2668 = vpow.pop %v2667
        %v2669 = vmul.f32 %v2551, 1.442695
        %v2670 = vpow.pop %v2669
        %v2671 = vmul.f32 %v2552, 1.442695
        %v2672 = vpow.pop %v2671
        %v2673 = vmul.f32 %v2553, 1.442695
        %v2674 = vpow.pop %v2673
        %v2675 = vmul.f32 %v2554, 1.442695
        %v2676 = vpow.pop %v2675
        %v2677 = vmul.f32 %v2555, 1.442695
        %v2678 = vpow.pop %v2677
        %v2679 = vmul.f32 %v2556, 1.442695
        %v2680 = vpow.pop %v2679
        %v2681 = vmul.f32 %v2557, 1.442695
        %v2682 = vpow.pop %v2681
        %v2683 = vmul.f32 %v2558, 1.442695
        %v2684 = vpow.pop %v2683
        %v2685 = vmul.f32 %v2559, 1.442695
        %v2686 = vpow.pop %v2685
        %v2687 = vmul.f32 %v2560, 1.442695
        %v2688 = vpow.pop %v2687
        %v2689 = vadd.f32 %v2562, %v2564
        %2690 = vadd.xlane.f32.xlu0 %v2689
        %v2691 = vpop.xlane.xlu0 %2690
        %v2692 = vadd.f32 %v2566, %v2568
        %2693 = vadd.xlane.f32.xlu0 %v2692
        %v2694 = vpop.xlane.xlu0 %2693
        %v2695 = vadd.f32 %v2570, %v2572
        %2696 = vadd.xlane.f32.xlu0 %v2695
        %v2697 = vpop.xlane.xlu0 %2696
        %v2698 = vadd.f32 %v2574, %v2576
        %2699 = vadd.xlane.f32.xlu0 %v2698
        %v2700 = vpop.xlane.xlu0 %2699
        %v2701 = vadd.f32 %v2578, %v2580
        %2702 = vadd.xlane.f32.xlu0 %v2701
        %v2703 = vpop.xlane.xlu0 %2702
        %v2704 = vadd.f32 %v2582, %v2584
        %2705 = vadd.xlane.f32.xlu0 %v2704
        %v2706 = vpop.xlane.xlu0 %2705
        %v2707 = vadd.f32 %v2586, %v2588
        %2708 = vadd.xlane.f32.xlu0 %v2707
        %v2709 = vpop.xlane.xlu0 %2708
        %v2710 = vadd.f32 %v2590, %v2592
        %2711 = vadd.xlane.f32.xlu0 %v2710
        %v2712 = vpop.xlane.xlu0 %2711
        %v2713 = vadd.f32 %v2594, %v2596
        %2714 = vadd.xlane.f32.xlu0 %v2713
        %v2715 = vpop.xlane.xlu0 %2714
        %v2716 = vadd.f32 %v2598, %v2600
        %2717 = vadd.xlane.f32.xlu0 %v2716
        %v2718 = vpop.xlane.xlu0 %2717
        %v2719 = vadd.f32 %v2602, %v2604
        %2720 = vadd.xlane.f32.xlu0 %v2719
        %v2721 = vpop.xlane.xlu0 %2720
        %v2722 = vadd.f32 %v2606, %v2608
        %2723 = vadd.xlane.f32.xlu0 %v2722
        %v2724 = vpop.xlane.xlu0 %2723
        %v2725 = vadd.f32 %v2610, %v2612
        %2726 = vadd.xlane.f32.xlu0 %v2725
        %v2727 = vpop.xlane.xlu0 %2726
        %v2728 = vadd.f32 %v2614, %v2616
        %2729 = vadd.xlane.f32.xlu0 %v2728
        %v2730 = vpop.xlane.xlu0 %2729
        %v2731 = vadd.f32 %v2618, %v2620
        %2732 = vadd.xlane.f32.xlu0 %v2731
        %v2733 = vpop.xlane.xlu0 %2732
        %v2734 = vadd.f32 %v2622, %v2624
        %2735 = vadd.xlane.f32.xlu0 %v2734
        %v2736 = vpop.xlane.xlu0 %2735
        %v2737 = vadd.f32 %v2626, %v2628
        %2738 = vadd.xlane.f32.xlu0 %v2737
        %v2739 = vpop.xlane.xlu0 %2738
        %v2740 = vadd.f32 %v2630, %v2632
        %2741 = vadd.xlane.f32.xlu0 %v2740
        %v2742 = vpop.xlane.xlu0 %2741
        %v2743 = vadd.f32 %v2634, %v2636
        %2744 = vadd.xlane.f32.xlu0 %v2743
        %v2745 = vpop.xlane.xlu0 %2744
        %v2746 = vadd.f32 %v2638, %v2640
        %2747 = vadd.xlane.f32.xlu0 %v2746
        %v2748 = vpop.xlane.xlu0 %2747
        %v2749 = vadd.f32 %v2642, %v2644
        %2750 = vadd.xlane.f32.xlu0 %v2749
        %v2751 = vpop.xlane.xlu0 %2750
        %v2752 = vadd.f32 %v2646, %v2648
        %2753 = vadd.xlane.f32.xlu0 %v2752
        %v2754 = vpop.xlane.xlu0 %2753
        %v2755 = vadd.f32 %v2650, %v2652
        %2756 = vadd.xlane.f32.xlu0 %v2755
        %v2757 = vpop.xlane.xlu0 %2756
        %v2758 = vadd.f32 %v2654, %v2656
        %2759 = vadd.xlane.f32.xlu0 %v2758
        %v2760 = vpop.xlane.xlu0 %2759
        %v2761 = vadd.f32 %v2658, %v2660
        %2762 = vadd.xlane.f32.xlu0 %v2761
        %v2763 = vpop.xlane.xlu0 %2762
        %v2764 = vadd.f32 %v2662, %v2664
        %2765 = vadd.xlane.f32.xlu0 %v2764
        %v2766 = vpop.xlane.xlu0 %2765
        %v2767 = vadd.f32 %v2666, %v2668
        %2768 = vadd.xlane.f32.xlu0 %v2767
        %v2769 = vpop.xlane.xlu0 %2768
        %v2770 = vadd.f32 %v2670, %v2672
        %2771 = vadd.xlane.f32.xlu0 %v2770
        %v2772 = vpop.xlane.xlu0 %2771
        %v2773 = vadd.f32 %v2674, %v2676
        %2774 = vadd.xlane.f32.xlu0 %v2773
        %v2775 = vpop.xlane.xlu0 %2774
        %v2776 = vadd.f32 %v2678, %v2680
        %2777 = vadd.xlane.f32.xlu0 %v2776
        %v2778 = vpop.xlane.xlu0 %2777
        %v2779 = vadd.f32 %v2682, %v2684
        %2780 = vadd.xlane.f32.xlu0 %v2779
        %v2781 = vpop.xlane.xlu0 %2780
        %v2782 = vadd.f32 %v2686, %v2688
        %2783 = vadd.xlane.f32.xlu0 %v2782
        %v2784 = vpop.xlane.xlu0 %2783
        %v2785 = vrcp.pop %v2691
        %v2786 = vrcp.pop %v2694
        %v2787 = vrcp.pop %v2697
        %v2788 = vrcp.pop %v2700
        %v2789 = vrcp.pop %v2703
        %v2790 = vrcp.pop %v2706
        %v2791 = vrcp.pop %v2709
        %v2792 = vrcp.pop %v2712
        %v2793 = vrcp.pop %v2715
        %v2794 = vrcp.pop %v2718
        %v2795 = vrcp.pop %v2721
        %v2796 = vrcp.pop %v2724
        %v2797 = vrcp.pop %v2727
        %v2798 = vrcp.pop %v2730
        %v2799 = vrcp.pop %v2733
        %v2800 = vrcp.pop %v2736
        %v2801 = vrcp.pop %v2739
        %v2802 = vrcp.pop %v2742
        %v2803 = vrcp.pop %v2745
        %v2804 = vrcp.pop %v2748
        %v2805 = vrcp.pop %v2751
        %v2806 = vrcp.pop %v2754
        %v2807 = vrcp.pop %v2757
        %v2808 = vrcp.pop %v2760
        %v2809 = vrcp.pop %v2763
        %v2810 = vrcp.pop %v2766
        %v2811 = vrcp.pop %v2769
        %v2812 = vrcp.pop %v2772
        %v2813 = vrcp.pop %v2775
        %v2814 = vrcp.pop %v2778
        %v2815 = vrcp.pop %v2781
        %v2816 = vrcp.pop %v2784
        %v2817 = vmul.f32 %v2562, %v2785
        %v2818 = vmul.f32 %v2564, %v2785
        %v2819 = vmul.f32 %v2566, %v2786
        %v2820 = vmul.f32 %v2568, %v2786
        %v2821 = vmul.f32 %v2570, %v2787
        %v2822 = vmul.f32 %v2572, %v2787
        %v2823 = vmul.f32 %v2574, %v2788
        %v2824 = vmul.f32 %v2576, %v2788
        %v2825 = vmul.f32 %v2578, %v2789
        %v2826 = vmul.f32 %v2580, %v2789
        %v2827 = vmul.f32 %v2582, %v2790
        %v2828 = vmul.f32 %v2584, %v2790
        %v2829 = vmul.f32 %v2586, %v2791
        %v2830 = vmul.f32 %v2588, %v2791
        %v2831 = vmul.f32 %v2590, %v2792
        %v2832 = vmul.f32 %v2592, %v2792
        %v2833 = vmul.f32 %v2594, %v2793
        %v2834 = vmul.f32 %v2596, %v2793
        %v2835 = vmul.f32 %v2598, %v2794
        %v2836 = vmul.f32 %v2600, %v2794
        %v2837 = vmul.f32 %v2602, %v2795
        %v2838 = vmul.f32 %v2604, %v2795
        %v2839 = vmul.f32 %v2606, %v2796
        %v2840 = vmul.f32 %v2608, %v2796
        %v2841 = vmul.f32 %v2610, %v2797
        %v2842 = vmul.f32 %v2612, %v2797
        %v2843 = vmul.f32 %v2614, %v2798
        %v2844 = vmul.f32 %v2616, %v2798
        %v2845 = vmul.f32 %v2618, %v2799
        %v2846 = vmul.f32 %v2620, %v2799
        %v2847 = vmul.f32 %v2622, %v2800
        %v2848 = vmul.f32 %v2624, %v2800
        %v2849 = vmul.f32 %v2626, %v2801
        %v2850 = vmul.f32 %v2628, %v2801
        %v2851 = vmul.f32 %v2630, %v2802
        %v2852 = vmul.f32 %v2632, %v2802
        %v2853 = vmul.f32 %v2634, %v2803
        %v2854 = vmul.f32 %v2636, %v2803
        %v2855 = vmul.f32 %v2638, %v2804
        %v2856 = vmul.f32 %v2640, %v2804
        %v2857 = vmul.f32 %v2642, %v2805
        %v2858 = vmul.f32 %v2644, %v2805
        %v2859 = vmul.f32 %v2646, %v2806
        %v2860 = vmul.f32 %v2648, %v2806
        %v2861 = vmul.f32 %v2650, %v2807
        %v2862 = vmul.f32 %v2652, %v2807
        %v2863 = vmul.f32 %v2654, %v2808
        %v2864 = vmul.f32 %v2656, %v2808
        %v2865 = vmul.f32 %v2658, %v2809
        %v2866 = vmul.f32 %v2660, %v2809
        %v2867 = vmul.f32 %v2662, %v2810
        %v2868 = vmul.f32 %v2664, %v2810
        %v2869 = vmul.f32 %v2666, %v2811
        %v2870 = vmul.f32 %v2668, %v2811
        %v2871 = vmul.f32 %v2670, %v2812
        %v2872 = vmul.f32 %v2672, %v2812
        %v2873 = vmul.f32 %v2674, %v2813
        %v2874 = vmul.f32 %v2676, %v2813
        %v2875 = vmul.f32 %v2678, %v2814
        %v2876 = vmul.f32 %v2680, %v2814
        %v2877 = vmul.f32 %v2682, %v2815
        %v2878 = vmul.f32 %v2684, %v2815
        %v2879 = vmul.f32 %v2686, %v2816
        %v2880 = vmul.f32 %v2688, %v2816
        %v2881 = vpack.c.bf16 %v2819, %v2817
        %v2882 = vpack.c.bf16 %v2820, %v2818
        %v2883 = vpack.c.bf16 %v2823, %v2821
        %v2884 = vpack.c.bf16 %v2824, %v2822
        %v2885 = vpack.c.bf16 %v2827, %v2825
        %v2886 = vpack.c.bf16 %v2828, %v2826
        %v2887 = vpack.c.bf16 %v2831, %v2829
        %v2888 = vpack.c.bf16 %v2832, %v2830
        %v2889 = vpack.c.bf16 %v2835, %v2833
        %v2890 = vpack.c.bf16 %v2836, %v2834
        %v2891 = vpack.c.bf16 %v2839, %v2837
        %v2892 = vpack.c.bf16 %v2840, %v2838
        %v2893 = vpack.c.bf16 %v2843, %v2841
        %v2894 = vpack.c.bf16 %v2844, %v2842
        %v2895 = vpack.c.bf16 %v2847, %v2845
        %v2896 = vpack.c.bf16 %v2848, %v2846
        %v2897 = vpack.c.bf16 %v2851, %v2849
        %v2898 = vpack.c.bf16 %v2852, %v2850
        %v2899 = vpack.c.bf16 %v2855, %v2853
        %v2900 = vpack.c.bf16 %v2856, %v2854
        %v2901 = vpack.c.bf16 %v2859, %v2857
        %v2902 = vpack.c.bf16 %v2860, %v2858
        %v2903 = vpack.c.bf16 %v2863, %v2861
        %v2904 = vpack.c.bf16 %v2864, %v2862
        %v2905 = vpack.c.bf16 %v2867, %v2865
        %v2906 = vpack.c.bf16 %v2868, %v2866
        %v2907 = vpack.c.bf16 %v2871, %v2869
        %v2908 = vpack.c.bf16 %v2872, %v2870
        %v2909 = vpack.c.bf16 %v2875, %v2873
        %v2910 = vpack.c.bf16 %v2876, %v2874
        %v2911 = vpack.c.bf16 %v2879, %v2877
        %v2912 = vpack.c.bf16 %v2880, %v2878
        %2913 = vmatprep.subr.bf16.mxu0 %v2896
        %2914 = vmatpush1.bf16.xpose.msra.mxu0 %v2895
        %2915 = vmatprep.subr.bf16.mxu0 %v2894
        %2916 = vmatpush1.bf16.xpose.msra.mxu0 %v2893
        %2917 = vmatprep.subr.bf16.mxu0 %v2892
        %2918 = vmatpush1.bf16.xpose.msra.mxu0 %v2891
        %2919 = vmatprep.subr.bf16.mxu0 %v2890
        %2920 = vmatpush1.bf16.xpose.msra.mxu0 %v2889
        %2921 = vmatprep.subr.bf16.mxu0 %v2888
        %2922 = vmatpush1.bf16.xpose.msra.mxu0 %v2887
        %2923 = vmatprep.subr.bf16.mxu0 %v2886
        %2924 = vmatpush1.bf16.xpose.msra.mxu0 %v2885
        %2925 = vmatprep.subr.bf16.mxu0 %v2884
        %2926 = vmatpush1.bf16.xpose.msra.mxu0 %v2883
        %2927 = vmatprep.subr.bf16.mxu0 %v2882
        %2928 = vmatpush1.bf16.xpose.msra.mxu0 %v2881
        %2929 = vmatprep.subr.bf16.mxu0 %v2912
        %2930 = vmatpush2.bf16.xpose.msra.mxu0 %v2911
        %2931 = vmatprep.subr.bf16.mxu0 %v2910
        %2932 = vmatpush2.bf16.xpose.msra.mxu0 %v2909
        %2933 = vmatprep.subr.bf16.mxu0 %v2908
        %2934 = vmatpush2.bf16.xpose.msra.mxu0 %v2907
        %2935 = vmatprep.subr.bf16.mxu0 %v2906
        %2936 = vmatpush2.bf16.xpose.msra.mxu0 %v2905
        %2937 = vmatprep.subr.bf16.mxu0 %v2904
        %2938 = vmatpush2.bf16.xpose.msra.mxu0 %v2903
        %2939 = vmatprep.subr.bf16.mxu0 %v2902
        %2940 = vmatpush2.bf16.xpose.msra.mxu0 %v2901
        %2941 = vmatprep.subr.bf16.mxu0 %v2900
        %2942 = vmatpush2.bf16.xpose.msra.mxu0 %v2899
        %2943 = vmatprep.subr.bf16.mxu0 %v2898
        %2944 = vmatpush2.bf16.xpose.msra.mxu0 %v2897
        %2945 = vmatprep.mubr.bf16.mxu0 %v2121
        %2946 = vmatmul.mubr.bf16.gmra.mxu0 %v2120
        %v2947 = vpop.f32.mrf.mxu0
        %v2948 = vadd.f32 0.0, %v2947
        %v2949 = vpop.f32.mrf.mxu0
        %v2950 = vadd.f32 0.0, %v2949
        %v2951 = vpop.f32.mrf.mxu0
        %v2952 = vpop.f32.mrf.mxu0
        %2953 = vdwg.mxu0
        %2954 = vst [vmem:[#allocation2 + $0x10] sm:$0xff] %v2948
        %2955 = vst [vmem:[#allocation2 + $0x18] sm:$0xff] %v2950
        %v2956 = vld [vmem:[#allocation2] sm:$0xff]
        %v2957 = vld [vmem:[#allocation2 + $0x8] sm:$0xff]
        %v2958 = vld [vmem:[#allocation2 + $0x10] sm:$0xff]
        %v2959 = vld [vmem:[#allocation2 + $0x18] sm:$0xff]
        %v2960 = vpack.c.bf16 %v2958, %v2956
        %v2961 = vpack.c.bf16 %v2959, %v2957
        %v2962 = vld [vmem:[#allocation9] sm:$0xff]
        %v2963 = vld [vmem:[#allocation9 + $0x8] sm:$0xff]
        %v2964 = vld [vmem:[#allocation9 + $0x10] sm:$0xff]
        %v2965 = vld [vmem:[#allocation9 + $0x18] sm:$0xff]
        %v2966 = vld [vmem:[#allocation9 + $0x20] sm:$0xff]
        %v2967 = vld [vmem:[#allocation9 + $0x28] sm:$0xff]
        %v2968 = vld [vmem:[#allocation9 + $0x30] sm:$0xff]
        %v2969 = vld [vmem:[#allocation9 + $0x38] sm:$0xff]
        %v2970 = vld [vmem:[#allocation9 + $0x40] sm:$0xff]
        %v2971 = vld [vmem:[#allocation9 + $0x48] sm:$0xff]
        %v2972 = vld [vmem:[#allocation9 + $0x50] sm:$0xff]
        %v2973 = vld [vmem:[#allocation9 + $0x58] sm:$0xff]
        %v2974 = vld [vmem:[#allocation9 + $0x60] sm:$0xff]
        %v2975 = vld [vmem:[#allocation9 + $0x68] sm:$0xff]
        %v2976 = vld [vmem:[#allocation9 + $0x70] sm:$0xff]
        %v2977 = vld [vmem:[#allocation9 + $0x78] sm:$0xff]
        %v2978 = vld [vmem:[#allocation9 + $0x80] sm:$0xff]
        %v2979 = vld [vmem:[#allocation9 + $0x88] sm:$0xff]
        %v2980 = vld [vmem:[#allocation9 + $0x90] sm:$0xff]
        %v2981 = vld [vmem:[#allocation9 + $0x98] sm:$0xff]
        %v2982 = vld [vmem:[#allocation9 + $0xa0] sm:$0xff]
        %v2983 = vld [vmem:[#allocation9 + $0xa8] sm:$0xff]
        %v2984 = vld [vmem:[#allocation9 + $0xb0] sm:$0xff]
        %v2985 = vld [vmem:[#allocation9 + $0xb8] sm:$0xff]
        %v2986 = vld [vmem:[#allocation9 + $0xc0] sm:$0xff]
        %v2987 = vld [vmem:[#allocation9 + $0xc8] sm:$0xff]
        %v2988 = vld [vmem:[#allocation9 + $0xd0] sm:$0xff]
        %v2989 = vld [vmem:[#allocation9 + $0xd8] sm:$0xff]
        %v2990 = vld [vmem:[#allocation9 + $0xe0] sm:$0xff]
        %v2991 = vld [vmem:[#allocation9 + $0xe8] sm:$0xff]
        %v2992 = vld [vmem:[#allocation9 + $0xf0] sm:$0xff]
        %v2993 = vld [vmem:[#allocation9 + $0xf8] sm:$0xff]
        %v3026 = vunpack.c.l.b16 %v2962
        %v3027 = vunpack.c.h.b16 %v2962
        %v3028 = vunpack.c.l.b16 %v2963
        %v3029 = vunpack.c.h.b16 %v2963
        %v3030 = vunpack.c.l.b16 %v2964
        %v3031 = vunpack.c.h.b16 %v2964
        %v3032 = vunpack.c.l.b16 %v2965
        %v3033 = vunpack.c.h.b16 %v2965
        %v3034 = vunpack.c.l.b16 %v2966
        %v3035 = vunpack.c.h.b16 %v2966
        %v3036 = vunpack.c.l.b16 %v2967
        %v3037 = vunpack.c.h.b16 %v2967
        %v3038 = vunpack.c.l.b16 %v2968
        %v3039 = vunpack.c.h.b16 %v2968
        %v3040 = vunpack.c.l.b16 %v2969
        %v3041 = vunpack.c.h.b16 %v2969
        %v3042 = vunpack.c.l.b16 %v2970
        %v3043 = vunpack.c.h.b16 %v2970
        %v3044 = vunpack.c.l.b16 %v2971
        %v3045 = vunpack.c.h.b16 %v2971
        %v3046 = vunpack.c.l.b16 %v2972
        %v3047 = vunpack.c.h.b16 %v2972
        %v3048 = vunpack.c.l.b16 %v2973
        %v3049 = vunpack.c.h.b16 %v2973
        %v3050 = vunpack.c.l.b16 %v2974
        %v3051 = vunpack.c.h.b16 %v2974
        %v3052 = vunpack.c.l.b16 %v2975
        %v3053 = vunpack.c.h.b16 %v2975
        %v3054 = vunpack.c.l.b16 %v2976
        %v3055 = vunpack.c.h.b16 %v2976
        %v3056 = vunpack.c.l.b16 %v2977
        %v3057 = vunpack.c.h.b16 %v2977
        %v3058 = vunpack.c.l.b16 %v2978
        %v3059 = vunpack.c.h.b16 %v2978
        %v3060 = vunpack.c.l.b16 %v2979
        %v3061 = vunpack.c.h.b16 %v2979
        %v3062 = vunpack.c.l.b16 %v2980
        %v3063 = vunpack.c.h.b16 %v2980
        %v3064 = vunpack.c.l.b16 %v2981
        %v3065 = vunpack.c.h.b16 %v2981
        %v3066 = vunpack.c.l.b16 %v2982
        %v3067 = vunpack.c.h.b16 %v2982
        %v3068 = vunpack.c.l.b16 %v2983
        %v3069 = vunpack.c.h.b16 %v2983
        %v3070 = vunpack.c.l.b16 %v2984
        %v3071 = vunpack.c.h.b16 %v2984
        %v3072 = vunpack.c.l.b16 %v2985
        %v3073 = vunpack.c.h.b16 %v2985
        %v3074 = vunpack.c.l.b16 %v2986
        %v3075 = vunpack.c.h.b16 %v2986
        %v3076 = vunpack.c.l.b16 %v2987
        %v3077 = vunpack.c.h.b16 %v2987
        %v3078 = vunpack.c.l.b16 %v2988
        %v3079 = vunpack.c.h.b16 %v2988
        %v3080 = vunpack.c.l.b16 %v2989
        %v3081 = vunpack.c.h.b16 %v2989
        %v3082 = vunpack.c.l.b16 %v2990
        %v3083 = vunpack.c.h.b16 %v2990
        %v3084 = vunpack.c.l.b16 %v2991
        %v3085 = vunpack.c.h.b16 %v2991
        %v3086 = vunpack.c.l.b16 %v2992
        %v3087 = vunpack.c.h.b16 %v2992
        %v3088 = vunpack.c.l.b16 %v2993
        %v3089 = vunpack.c.h.b16 %v2993
        %v3090 = vpack.c.b16 %v3028, %v3026
        %v3091 = vpack.c.b16 %v3029, %v3027
        %v3092 = vpack.c.b16 %v3032, %v3030
        %v3093 = vpack.c.b16 %v3033, %v3031
        %v3094 = vpack.c.b16 %v3036, %v3034
        %v3095 = vpack.c.b16 %v3037, %v3035
        %v3096 = vpack.c.b16 %v3040, %v3038
        %v3097 = vpack.c.b16 %v3041, %v3039
        %v3098 = vpack.c.b16 %v3044, %v3042
        %v3099 = vpack.c.b16 %v3045, %v3043
        %v3100 = vpack.c.b16 %v3048, %v3046
        %v3101 = vpack.c.b16 %v3049, %v3047
        %v3102 = vpack.c.b16 %v3052, %v3050
        %v3103 = vpack.c.b16 %v3053, %v3051
        %v3104 = vpack.c.b16 %v3056, %v3054
        %v3105 = vpack.c.b16 %v3057, %v3055
        %v3106 = vpack.c.b16 %v3060, %v3058
        %v3107 = vpack.c.b16 %v3061, %v3059
        %v3108 = vpack.c.b16 %v3064, %v3062
        %v3109 = vpack.c.b16 %v3065, %v3063
        %v3110 = vpack.c.b16 %v3068, %v3066
        %v3111 = vpack.c.b16 %v3069, %v3067
        %v3112 = vpack.c.b16 %v3072, %v3070
        %v3113 = vpack.c.b16 %v3073, %v3071
        %v3114 = vpack.c.b16 %v3076, %v3074
        %v3115 = vpack.c.b16 %v3077, %v3075
        %v3116 = vpack.c.b16 %v3080, %v3078
        %v3117 = vpack.c.b16 %v3081, %v3079
        %v3118 = vpack.c.b16 %v3084, %v3082
        %v3119 = vpack.c.b16 %v3085, %v3083
        %v3120 = vpack.c.b16 %v3088, %v3086
        %v3121 = vpack.c.b16 %v3089, %v3087
        %3154 = vmatprep.subr.bf16.mxu0 %v3105
        %3155 = vmatpush1.bf16.msra.mxu0 %v3104
        %3156 = vmatprep.subr.bf16.mxu0 %v3103
        %3157 = vmatpush1.bf16.msra.mxu0 %v3102
        %3158 = vmatprep.subr.bf16.mxu0 %v3101
        %3159 = vmatpush1.bf16.msra.mxu0 %v3100
        %3160 = vmatprep.subr.bf16.mxu0 %v3099
        %3161 = vmatpush1.bf16.msra.mxu0 %v3098
        %3162 = vmatprep.subr.bf16.mxu0 %v3097
        %3163 = vmatpush1.bf16.msra.mxu0 %v3096
        %3164 = vmatprep.subr.bf16.mxu0 %v3095
        %3165 = vmatpush1.bf16.msra.mxu0 %v3094
        %3166 = vmatprep.subr.bf16.mxu0 %v3093
        %3167 = vmatpush1.bf16.msra.mxu0 %v3092
        %3168 = vmatprep.subr.bf16.mxu0 %v3091
        %3169 = vmatpush1.bf16.msra.mxu0 %v3090
        %3170 = vmatprep.subr.bf16.mxu0 %v3121
        %3171 = vmatpush2.bf16.msra.mxu0 %v3120
        %3172 = vmatprep.subr.bf16.mxu0 %v3119
        %3173 = vmatpush2.bf16.msra.mxu0 %v3118
        %3174 = vmatprep.subr.bf16.mxu0 %v3117
        %3175 = vmatpush2.bf16.msra.mxu0 %v3116
        %3176 = vmatprep.subr.bf16.mxu0 %v3115
        %3177 = vmatpush2.bf16.msra.mxu0 %v3114
        %3178 = vmatprep.subr.bf16.mxu0 %v3113
        %3179 = vmatpush2.bf16.msra.mxu0 %v3112
        %3180 = vmatprep.subr.bf16.mxu0 %v3111
        %3181 = vmatpush2.bf16.msra.mxu0 %v3110
        %3182 = vmatprep.subr.bf16.mxu0 %v3109
        %3183 = vmatpush2.bf16.msra.mxu0 %v3108
        %3184 = vmatprep.subr.bf16.mxu0 %v3107
        %3185 = vmatpush2.bf16.msra.mxu0 %v3106
        %3186 = vmatprep.mubr.bf16.mxu0 %v2961
        %3187 = vmatmul.mubr.bf16.gmra.mxu0 %v2960
        %v3188 = vpop.f32.mrf.mxu0
        %v3189 = vadd.f32 0.0, %v3188
        %v3190 = vpop.f32.mrf.mxu0
        %v3191 = vadd.f32 0.0, %v3190
        %v3192 = vpop.f32.mrf.mxu0
        %v3193 = vadd.f32 0.0, %v3192
        %v3194 = vpop.f32.mrf.mxu0
        %v3195 = vadd.f32 0.0, %v3194
        %3196 = vdwg.mxu0
        %v3197 = vadd.f32 %v477, %v3189
        %v3198 = vadd.f32 %v478, %v3191
        %v3199 = vadd.f32 %v479, %v3193
        %v3200 = vadd.f32 %v480, %v3195
        %v3201 = vld [vmem:[%s5] sm:$0x3]
        %v3202 = vld [vmem:[%s6] sm:$0x3]
        %v3203 = vadd.f32 %v3197, %v3198
        %3204 = vadd.xlane.f32.xlu0 %v3203
        %v3205 = vpop.xlane.xlu0 %3204
        %v3206 = vadd.f32 %v3199, %v3200
        %3207 = vadd.xlane.f32.xlu0 %v3206
        %v3208 = vpop.xlane.xlu0 %3207
        %v3209 = vmul.f32 %v3205, %v424
        %v3210 = vmul.f32 %v3208, %v424
        %v3211 = vsub.f32 %v3197, %v3209
        %v3212 = vsub.f32 %v3198, %v3209
        %v3213 = vsub.f32 %v3199, %v3210
        %v3214 = vsub.f32 %v3200, %v3210
        %v3215 = vmul.f32 %v3211, %v3211
        %v3216 = vmul.f32 %v3212, %v3212
        %v3217 = vmul.f32 %v3213, %v3213
        %v3218 = vmul.f32 %v3214, %v3214
        %v3219 = vadd.f32 %v3215, %v3216
        %3220 = vadd.xlane.f32.xlu0 %v3219
        %v3221 = vpop.xlane.xlu0 %3220
        %v3222 = vadd.f32 %v3217, %v3218
        %3223 = vadd.xlane.f32.xlu0 %v3222
        %v3224 = vpop.xlane.xlu0 %3223
        %v3225 = vmul.f32 %v3221, %v424
        %v3226 = vmul.f32 %v3224, %v424
        %v3227 = vadd.f32 %v3225, 1e-05
        %v3228 = vadd.f32 %v3226, 1e-05
        %v3229 = vrsqrt.pop %v3227
        %v3230 = vrsqrt.pop %v3228
        %v3231 = vmul.f32 %v3211, %v3229
        %v3232 = vmul.f32 %v3212, %v3229
        %v3233 = vmul.f32 %v3213, %v3230
        %v3234 = vmul.f32 %v3214, %v3230
        %v3236 = vlaneseq
        %v3237 = vshrl.u32 %v3236, 7
        %v3238 = vsub.s32 0, %v3237
        %v3239 = vrot.slane %v3201, %v3238
        %v3240 = vlaneseq
        %v3241 = vshrl.u32 %v3240, 7
        %v3242 = vsub.s32 1, %v3241
        %v3243 = vrot.slane %v3201, %v3242
        %v3246 = vmul.f32 %v3231, %v3239
        %v3247 = vmul.f32 %v3232, %v3243
        %v3248 = vmul.f32 %v3233, %v3239
        %v3249 = vmul.f32 %v3234, %v3243
        %v3251 = vlaneseq
        %v3252 = vshrl.u32 %v3251, 7
        %v3253 = vsub.s32 0, %v3252
        %v3254 = vrot.slane %v3202, %v3253
        %v3255 = vlaneseq
        %v3256 = vshrl.u32 %v3255, 7
        %v3257 = vsub.s32 1, %v3256
        %v3258 = vrot.slane %v3202, %v3257
        %v3261 = vadd.f32 %v3246, %v3254
        %v3262 = vadd.f32 %v3247, %v3258
        %v3263 = vadd.f32 %v3248, %v3254
        %v3264 = vadd.f32 %v3249, %v3258
        %v3265 = vld [vmem:[%s7] sm:$0xf]
        %v3266 = vld [vmem:[%s7 + $0x4] sm:$0xf]
        %v3267 = vld [vmem:[%s7 + $0x8] sm:$0xf]
        %v3268 = vld [vmem:[%s7 + $0xc] sm:$0xf]
        %v3269 = vld [vmem:[%s8] sm:$0xf]
        %v3270 = vpack.c.bf16 %v3261, %v3261
        %v3271 = vpack.c.bf16 %v3262, %v3262
        %v3276 = vunpack.c.l.b16 %v3265
        %v3277 = vunpack.c.l.b16 %v3266
        %v3278 = vunpack.c.l.b16 %v3267
        %v3279 = vunpack.c.l.b16 %v3268
        %v3280 = vpack.c.b16 %v3277, %v3276
        %v3281 = vpack.c.b16 %v3279, %v3278
        %v3283 = vsel %vm1270, %v3280, 0
        %v3286 = vsel %vm1270, %v3281, 0
        %v3289 = vsel %vm1319, %v3270, 0
        %v3292 = vsel %vm1319, %v3271, 0
        %3294 = vmatprep.subr.bf16.mxu0 0
        %3295 = vmatpush1.bf16.msra.mxu0 0
        %3296 = vmatprep.subr.bf16.mxu0 0
        %3297 = vmatpush1.bf16.msra.mxu0 0
        %3298 = vmatprep.subr.bf16.mxu0 0
        %3299 = vmatpush1.bf16.msra.mxu0 0
        %3300 = vmatprep.subr.bf16.mxu0 0
        %3301 = vmatpush1.bf16.msra.mxu0 0
        %3302 = vmatprep.subr.bf16.mxu0 0
        %3303 = vmatpush1.bf16.msra.mxu0 0
        %3304 = vmatprep.subr.bf16.mxu0 0
        %3305 = vmatpush1.bf16.msra.mxu0 0
        %3306 = vmatprep.subr.bf16.mxu0 0
        %3307 = vmatpush1.bf16.msra.mxu0 0
        %3308 = vmatprep.subr.bf16.mxu0 %v3292
        %3309 = vmatpush1.bf16.msra.mxu0 %v3289
        %3310 = vmatprep.subr.bf16.mxu0 0
        %3311 = vmatpush2.bf16.msra.mxu0 0
        %3312 = vmatprep.subr.bf16.mxu0 0
        %3313 = vmatpush2.bf16.msra.mxu0 0
        %3314 = vmatprep.subr.bf16.mxu0 0
        %3315 = vmatpush2.bf16.msra.mxu0 0
        %3316 = vmatprep.subr.bf16.mxu0 0
        %3317 = vmatpush2.bf16.msra.mxu0 0
        %3318 = vmatprep.subr.bf16.mxu0 0
        %3319 = vmatpush2.bf16.msra.mxu0 0
        %3320 = vmatprep.subr.bf16.mxu0 0
        %3321 = vmatpush2.bf16.msra.mxu0 0
        %3322 = vmatprep.subr.bf16.mxu0 0
        %3323 = vmatpush2.bf16.msra.mxu0 0
        %3324 = vmatprep.subr.bf16.mxu0 0
        %3325 = vmatpush2.bf16.msra.mxu0 0
        %3326 = vmatprep.mubr.bf16.mxu0 0
        %3327 = vmatmul.mubr.bf16.gmra.mxu0 %v3283
        %v3328 = vpop.f32.mrf.mxu0
        %v3329 = vadd.f32 0.0, %v3328
        %v3330 = vpop.f32.mrf.mxu0
        %v3331 = vadd.f32 0.0, %v3330
        %v3332 = vpop.f32.mrf.mxu0
        %v3333 = vadd.f32 0.0, %v3332
        %v3334 = vpop.f32.mrf.mxu0
        %v3335 = vadd.f32 0.0, %v3334
        %3336 = vmatprep.mubr.bf16.mxu0 0
        %3337 = vmatmul.mubr.bf16.gmra.mxu0 %v3286
        %v3338 = vpop.f32.mrf.mxu0
        %v3339 = vadd.f32 0.0, %v3338
        %v3340 = vpop.f32.mrf.mxu0
        %v3341 = vadd.f32 0.0, %v3340
        %v3342 = vpop.f32.mrf.mxu0
        %v3343 = vadd.f32 0.0, %v3342
        %v3344 = vpop.f32.mrf.mxu0
        %v3345 = vadd.f32 0.0, %v3344
        %3346 = vdwg.mxu0
        %v3347 = vmul.f32 %v3329, %v3329
        %v3348 = vmul.f32 %v3331, %v3331
        %v3349 = vmul.f32 %v3333, %v3333
        %v3350 = vmul.f32 %v3335, %v3335
        %v3351 = vmul.f32 %v3329, %v3347
        %v3352 = vmul.f32 %v3331, %v3348
        %v3353 = vmul.f32 %v3333, %v3349
        %v3354 = vmul.f32 %v3335, %v3350
        %v3355 = vmul.f32 %v3351, 0.044715
        %v3356 = vmul.f32 %v3352, 0.044715
        %v3357 = vmul.f32 %v3353, 0.044715
        %v3358 = vmul.f32 %v3354, 0.044715
        %v3359 = vadd.f32 %v3329, %v3355
        %v3360 = vadd.f32 %v3331, %v3356
        %v3361 = vadd.f32 %v3333, %v3357
        %v3362 = vadd.f32 %v3335, %v3358
        %v3363 = vmul.f32 %v3359, 0.7978846
        %v3364 = vmul.f32 %v3360, 0.7978846
        %v3365 = vmul.f32 %v3361, 0.7978846
        %v3366 = vmul.f32 %v3362, 0.7978846
        %v3367 = vtanh.pop %v3363
        %v3368 = vtanh.pop %v3364
        %v3369 = vtanh.pop %v3365
        %v3370 = vtanh.pop %v3366
        %v3371 = vadd.f32 %v3367, 1.0
        %v3372 = vadd.f32 %v3368, 1.0
        %v3373 = vadd.f32 %v3369, 1.0
        %v3374 = vadd.f32 %v3370, 1.0
        %v3375 = vmul.f32 %v3371, 0.5
        %v3376 = vmul.f32 %v3372, 0.5
        %v3377 = vmul.f32 %v3373, 0.5
        %v3378 = vmul.f32 %v3374, 0.5
        %v3379 = vmul.f32 %v3329, %v3375
        %v3380 = vmul.f32 %v3331, %v3376
        %v3381 = vmul.f32 %v3333, %v3377
        %v3382 = vmul.f32 %v3335, %v3378
        %v3383 = vmul.f32 %v3379, %v3339
        %v3384 = vmul.f32 %v3380, %v3341
        %v3385 = vmul.f32 %v3381, %v3343
        %v3386 = vmul.f32 %v3382, %v3345
        %v3387 = vpack.c.bf16 %v3385, %v3383
        %v3388 = vpack.c.bf16 %v3386, %v3384
        %vm3389 = vcmask 130048
        %v3391 = vsel %vm3389, %v3269, 0
        %3393 = vmatprep.subr.bf16.mxu0 0
        %3394 = vmatpush1.bf16.msra.mxu0 0
        %3395 = vmatprep.subr.bf16.mxu0 0
        %3396 = vmatpush1.bf16.msra.mxu0 0
        %3397 = vmatprep.subr.bf16.mxu0 0
        %3398 = vmatpush1.bf16.msra.mxu0 0
        %3399 = vmatprep.subr.bf16.mxu0 0
        %3400 = vmatpush1.bf16.msra.mxu0 0
        %3401 = vmatprep.subr.bf16.mxu0 0
        %3402 = vmatpush1.bf16.msra.mxu0 0
        %3403 = vmatprep.subr.bf16.mxu0 0
        %3404 = vmatpush1.bf16.msra.mxu0 0
        %3405 = vmatprep.subr.bf16.mxu0 0
        %3406 = vmatpush1.bf16.msra.mxu0 0
        %3407 = vmatprep.subr.bf16.mxu0 %v3388
        %3408 = vmatpush1.bf16.msra.mxu0 %v3387
        %3409 = vmatprep.subr.bf16.mxu0 0
        %3410 = vmatpush2.bf16.msra.mxu0 0
        %3411 = vmatprep.subr.bf16.mxu0 0
        %3412 = vmatpush2.bf16.msra.mxu0 0
        %3413 = vmatprep.subr.bf16.mxu0 0
        %3414 = vmatpush2.bf16.msra.mxu0 0
        %3415 = vmatprep.subr.bf16.mxu0 0
        %3416 = vmatpush2.bf16.msra.mxu0 0
        %3417 = vmatprep.subr.bf16.mxu0 0
        %3418 = vmatpush2.bf16.msra.mxu0 0
        %3419 = vmatprep.subr.bf16.mxu0 0
        %3420 = vmatpush2.bf16.msra.mxu0 0
        %3421 = vmatprep.subr.bf16.mxu0 0
        %3422 = vmatpush2.bf16.msra.mxu0 0
        %3423 = vmatprep.subr.bf16.mxu0 0
        %3424 = vmatpush2.bf16.msra.mxu0 0
        %3425 = vmatprep.mubr.bf16.mxu0 0
        %3426 = vmatmul.mubr.bf16.gmra.mxu0 %v3391
        %v3427 = vpop.f32.mrf.mxu0
        %v3428 = vadd.f32 0.0, %v3427
        %v3429 = vpop.f32.mrf.mxu0
        %v3430 = vadd.f32 0.0, %v3429
        %v3431 = vpop.f32.mrf.mxu0
        %v3432 = vpop.f32.mrf.mxu0
        %3433 = vdwg.mxu0
        %v3434 = vadd.f32 %v3197, %v3428
        %v3435 = vadd.f32 %v3198, %v3430
        %3436 = vst [vmem:[%s408] sm:$0xff] %v3434
        %3437 = vst [vmem:[%s408 + $0x8] sm:$0xff] %v3435
        %v3438 = vpack.c.bf16 %v3263, %v3263
        %v3439 = vpack.c.bf16 %v3264, %v3264
        %v3441 = vsel %vm1319, %v3438, 0
        %v3444 = vsel %vm1319, %v3439, 0
        %3446 = vmatprep.subr.bf16.mxu0 0
        %3447 = vmatpush1.bf16.msra.mxu0 0
        %3448 = vmatprep.subr.bf16.mxu0 0
        %3449 = vmatpush1.bf16.msra.mxu0 0
        %3450 = vmatprep.subr.bf16.mxu0 0
        %3451 = vmatpush1.bf16.msra.mxu0 0
        %3452 = vmatprep.subr.bf16.mxu0 0
        %3453 = vmatpush1.bf16.msra.mxu0 0
        %3454 = vmatprep.subr.bf16.mxu0 0
        %3455 = vmatpush1.bf16.msra.mxu0 0
        %3456 = vmatprep.subr.bf16.mxu0 0
        %3457 = vmatpush1.bf16.msra.mxu0 0
        %3458 = vmatprep.subr.bf16.mxu0 0
        %3459 = vmatpush1.bf16.msra.mxu0 0
        %3460 = vmatprep.subr.bf16.mxu0 %v3444
        %3461 = vmatpush1.bf16.msra.mxu0 %v3441
        %3462 = vmatprep.subr.bf16.mxu0 0
        %3463 = vmatpush2.bf16.msra.mxu0 0
        %3464 = vmatprep.subr.bf16.mxu0 0
        %3465 = vmatpush2.bf16.msra.mxu0 0
        %3466 = vmatprep.subr.bf16.mxu0 0
        %3467 = vmatpush2.bf16.msra.mxu0 0
        %3468 = vmatprep.subr.bf16.mxu0 0
        %3469 = vmatpush2.bf16.msra.mxu0 0
        %3470 = vmatprep.subr.bf16.mxu0 0
        %3471 = vmatpush2.bf16.msra.mxu0 0
        %3472 = vmatprep.subr.bf16.mxu0 0
        %3473 = vmatpush2.bf16.msra.mxu0 0
        %3474 = vmatprep.subr.bf16.mxu0 0
        %3475 = vmatpush2.bf16.msra.mxu0 0
        %3476 = vmatprep.subr.bf16.mxu0 0
        %3477 = vmatpush2.bf16.msra.mxu0 0
        %3478 = vmatprep.mubr.bf16.mxu0 0
        %3479 = vmatmul.mubr.bf16.gmra.mxu0 %v3283
        %v3480 = vpop.f32.mrf.mxu0
        %v3481 = vadd.f32 0.0, %v3480
        %v3482 = vpop.f32.mrf.mxu0
        %v3483 = vadd.f32 0.0, %v3482
        %v3484 = vpop.f32.mrf.mxu0
        %v3485 = vadd.f32 0.0, %v3484
        %v3486 = vpop.f32.mrf.mxu0
        %v3487 = vadd.f32 0.0, %v3486
        %3488 = vmatprep.mubr.bf16.mxu0 0
        %3489 = vmatmul.mubr.bf16.gmra.mxu0 %v3286
        %v3490 = vpop.f32.mrf.mxu0
        %v3491 = vadd.f32 0.0, %v3490
        %v3492 = vpop.f32.mrf.mxu0
        %v3493 = vadd.f32 0.0, %v3492
        %v3494 = vpop.f32.mrf.mxu0
        %v3495 = vadd.f32 0.0, %v3494
        %v3496 = vpop.f32.mrf.mxu0
        %v3497 = vadd.f32 0.0, %v3496
        %3498 = vdwg.mxu0
        %v3499 = vmul.f32 %v3481, %v3481
        %v3500 = vmul.f32 %v3483, %v3483
        %v3501 = vmul.f32 %v3485, %v3485
        %v3502 = vmul.f32 %v3487, %v3487
        %v3503 = vmul.f32 %v3481, %v3499
        %v3504 = vmul.f32 %v3483, %v3500
        %v3505 = vmul.f32 %v3485, %v3501
        %v3506 = vmul.f32 %v3487, %v3502
        %v3507 = vmul.f32 %v3503, 0.044715
        %v3508 = vmul.f32 %v3504, 0.044715
        %v3509 = vmul.f32 %v3505, 0.044715
        %v3510 = vmul.f32 %v3506, 0.044715
        %v3511 = vadd.f32 %v3481, %v3507
        %v3512 = vadd.f32 %v3483, %v3508
        %v3513 = vadd.f32 %v3485, %v3509
        %v3514 = vadd.f32 %v3487, %v3510
        %v3515 = vmul.f32 %v3511, 0.7978846
        %v3516 = vmul.f32 %v3512, 0.7978846
        %v3517 = vmul.f32 %v3513, 0.7978846
        %v3518 = vmul.f32 %v3514, 0.7978846
        %v3519 = vtanh.pop %v3515
        %v3520 = vtanh.pop %v3516
        %v3521 = vtanh.pop %v3517
        %v3522 = vtanh.pop %v3518
        %v3523 = vadd.f32 %v3519, 1.0
        %v3524 = vadd.f32 %v3520, 1.0
        %v3525 = vadd.f32 %v3521, 1.0
        %v3526 = vadd.f32 %v3522, 1.0
        %v3527 = vmul.f32 %v3523, 0.5
        %v3528 = vmul.f32 %v3524, 0.5
        %v3529 = vmul.f32 %v3525, 0.5
        %v3530 = vmul.f32 %v3526, 0.5
        %v3531 = vmul.f32 %v3481, %v3527
        %v3532 = vmul.f32 %v3483, %v3528
        %v3533 = vmul.f32 %v3485, %v3529
        %v3534 = vmul.f32 %v3487, %v3530
        %v3535 = vmul.f32 %v3531, %v3491
        %v3536 = vmul.f32 %v3532, %v3493
        %v3537 = vmul.f32 %v3533, %v3495
        %v3538 = vmul.f32 %v3534, %v3497
        %v3539 = vpack.c.bf16 %v3537, %v3535
        %v3540 = vpack.c.bf16 %v3538, %v3536
        %3541 = vmatprep.subr.bf16.mxu0 0
        %3542 = vmatpush1.bf16.msra.mxu0 0
        %3543 = vmatprep.subr.bf16.mxu0 0
        %3544 = vmatpush1.bf16.msra.mxu0 0
        %3545 = vmatprep.subr.bf16.mxu0 0
        %3546 = vmatpush1.bf16.msra.mxu0 0
        %3547 = vmatprep.subr.bf16.mxu0 0
        %3548 = vmatpush1.bf16.msra.mxu0 0
        %3549 = vmatprep.subr.bf16.mxu0 0
        %3550 = vmatpush1.bf16.msra.mxu0 0
        %3551 = vmatprep.subr.bf16.mxu0 0
        %3552 = vmatpush1.bf16.msra.mxu0 0
        %3553 = vmatprep.subr.bf16.mxu0 0
        %3554 = vmatpush1.bf16.msra.mxu0 0
        %3555 = vmatprep.subr.bf16.mxu0 %v3540
        %3556 = vmatpush1.bf16.msra.mxu0 %v3539
        %3557 = vmatprep.subr.bf16.mxu0 0
        %3558 = vmatpush2.bf16.msra.mxu0 0
        %3559 = vmatprep.subr.bf16.mxu0 0
        %3560 = vmatpush2.bf16.msra.mxu0 0
        %3561 = vmatprep.subr.bf16.mxu0 0
        %3562 = vmatpush2.bf16.msra.mxu0 0
        %3563 = vmatprep.subr.bf16.mxu0 0
        %3564 = vmatpush2.bf16.msra.mxu0 0
        %3565 = vmatprep.subr.bf16.mxu0 0
        %3566 = vmatpush2.bf16.msra.mxu0 0
        %3567 = vmatprep.subr.bf16.mxu0 0
        %3568 = vmatpush2.bf16.msra.mxu0 0
        %3569 = vmatprep.subr.bf16.mxu0 0
        %3570 = vmatpush2.bf16.msra.mxu0 0
        %3571 = vmatprep.subr.bf16.mxu0 0
        %3572 = vmatpush2.bf16.msra.mxu0 0
        %3573 = vmatprep.mubr.bf16.mxu0 0
        %3574 = vmatmul.mubr.bf16.gmra.mxu0 %v3391
        %v3575 = vpop.f32.mrf.mxu0
        %v3576 = vadd.f32 0.0, %v3575
        %v3577 = vpop.f32.mrf.mxu0
        %v3578 = vadd.f32 0.0, %v3577
        %v3579 = vpop.f32.mrf.mxu0
        %v3580 = vpop.f32.mrf.mxu0
        %3581 = vdwg.mxu0
        %v3582 = vadd.f32 %v3199, %v3576
        %v3583 = vadd.f32 %v3200, %v3578
        %3584 = vst [vmem:[%s408 + $0x10] sm:$0xff] %v3582
        %3585 = vst [vmem:[%s408 + $0x18] sm:$0xff] %v3583
        %s3586 = sand.u32 %s252, 1
        %s3587 = scalar_lea.sflag [#allocation6], %s3586
        %s3588 = sand.u32 %s252, 1
        %s3589 = smul.addr %s3588, 32
        %s3590 = scalar_lea.vmem [#allocation10], %s3589
        // Predicated region
        $region73: #{tpu_custom_call.1} parent=59 // pred_check
          %p3591 = pneg %p262
        $region74: #{tpu_custom_call.1} parent=59 // pred_check_branch
          %3593 = sbr.rel (%p3591) target = $region76
        $region75: #{tpu_custom_call.1} parent=59 // pred_region
          %s3594 = smul.u32 2, %s29
          %s3596 = ssub.s32 512, 512
          %3597 = vsyncadd %s3587, %s3596
          %s3598 = smul.addr %s3594, 2
          %s3599 = smul.addr %s3598, 128
          %s3600 = scalar_lea.hbm %s10, %s3599
          %s3601 = sshll.u32 %s3590, 4
          %s3602 = int_to_ptr.vmem [resolvable:$true] %s3601
          %3607 = dma.vmem_to_hbm [thread:$0]  %s3602, 512, %s3600, %s3587, 256, 256, 16
        $region76: #{tpu_custom_call.1} parent=59 // pred_fallthru
          _
      $region60: #{tpu_custom_call.1} parent=5 // pred_fallthru
        _
      %p3608 = scmp.le.s32.totalorder 2, %s24
      // Predicated region
      $region77: #{tpu_custom_call.1} parent=5 // pred_check
        %p3609 = pneg %p3608
      $region78: #{tpu_custom_call.1} parent=5 // pred_check_branch
        %3611 = sbr.rel (%p3609) target = $region80
      $region79: #{tpu_custom_call.1} parent=5 // pred_region
        %s3612 = ssub.s32 %s24, 2
        // Predicated region
        $region81: #{tpu_custom_call.1} parent=79 // pred_check
          %p3613 = pneg %p268
        $region82: #{tpu_custom_call.1} parent=79 // pred_check_branch
          %3615 = sbr.rel (%p3613) target = $region84
        $region83: #{tpu_custom_call.1} parent=79 // pred_region
          %s3616 = sand.u32 %s253, 1
          %s3617 = scalar_lea.sflag [#allocation6], %s3616
          %s3618 = sand.u32 %s253, 1
          %s3619 = smul.addr %s3618, 32
          %s3620 = scalar_lea.vmem [#allocation10], %s3619
          %3621 = dma.done %s3617, 512
        $region84: #{tpu_custom_call.1} parent=79 // pred_fallthru
          _
      $region80: #{tpu_custom_call.1} parent=5 // pred_fallthru
        _
    $region6: #{tpu_custom_call.1} parent=1 // loop_footer
      %s28 = sadd.s32 1, %s24
    $region7: #{tpu_custom_call.1} parent=1 // loop_footer_branch
      %23 = sbr.rel target = $region3
    $region8: #{tpu_custom_call.1} parent=1 // loop_exit
      _
    %3622 = vsyncpa [#allocation5], 1
    %s3623 = scalar_lea.sflag [#allocation5], 1
    %3624 = vsyncpa %s3623, 1
    %3625 = vsyncpa [#allocation8], 1
    %3626 = vsyncpa [#allocation6], 1
    %s3627 = scalar_lea.sflag [#allocation6], 1
    %3628 = vsyncpa %s3627, 1

</llo_original>
